<compile_context>
chip_gen: v7x
topology: tpu7x:2x2x1
jax: 0.10.0
libtpu: 0.0.40
codegen_flags: <defaults>
</compile_context>

<pallas_src>
import functools

import jax
import jax.numpy as jnp
from jax.experimental import pallas as pl
from jax.experimental.pallas import tpu as pltpu


# ----------------------------- fused kernel -----------------------------

def _make_inception_kernel(T, H, W, Cin, C0, C1a, C1b, C2a, C2b, C3b):
    HW = H * W
    Cmid = C1a + C2a

    def kernel(x_ref, w111_ref, b111_ref, w1b_ref, b1b_ref,
               w2b_ref, b2b_ref, w3b_ref, b3b_ref, o_ref,
               b0_acc, b1_acc, b2_acc, pool_acc, pad_ref):
        t = pl.program_id(1)
        kt = pl.program_id(2)

        @pl.when(kt == 0)
        def _init():
            b1_acc[...] = jnp.zeros_like(b1_acc)
            b2_acc[...] = jnp.zeros_like(b2_acc)
            pool_acc[...] = jnp.full(pool_acc.shape, -jnp.inf, pool_acc.dtype)

        xp = x_ref[...]                       # (H+2, W+2, Cin) bf16, zero padded

        # ---- branch 3a: max-pool taps for this temporal offset.  The zero
        # padding (F.pad in the reference) participates in the max.
        pmax = xp[0:H, 0:W, :]
        for kh in range(3):
            for kw in range(3):
                if kh == 0 and kw == 0:
                    continue
                pmax = jnp.maximum(pmax, xp[kh:kh + H, kw:kw + W, :])
        pool_acc[...] = jnp.maximum(pool_acc[...], pmax)

        # ---- branches 0 / 1 / 2: only real (non temporal-pad) planes
        # contribute (the 3x3 convs see zeros on temporal pad planes because
        # the padding is applied AFTER the 1x1 convs in the reference).
        is_real_plane = jnp.logical_and(t + kt > 0, t + kt < T + 1)

        @pl.when(is_real_plane)
        def _conv_branches():
            x2d = xp[1:H + 1, 1:W + 1, :].reshape(HW, Cin)
            # fused 1x1 convs (b0 | b1a | b2a); BN scale folded into weights.
            y = jnp.dot(x2d, w111_ref[...], preferred_element_type=jnp.float32)
            y = jnp.maximum(y + b111_ref[...], 0.0)

            @pl.when(kt == 1)            # center plane == x[n, t] -> branch 0
            def _b0():
                b0_acc[...] = y[:, :C0]

            # spatially zero-padded b1a/b2a plane for the 3x3x3 taps.
            pad_ref[...] = jnp.zeros_like(pad_ref)
            pad_ref[1:H + 1, 1:W + 1, :] = (
                y[:, C0:].astype(pad_ref.dtype).reshape(H, W, Cmid))

            w1_kt = w1b_ref[kt]          # (9, C1a, C1b) for this temporal tap
            w2_kt = w2b_ref[kt]          # (9, C2a, C2b)
            acc1 = b1_acc[...]
            acc2 = b2_acc[...]
            for kh in range(3):
                for kw in range(3):
                    j = kh * 3 + kw
                    win = pad_ref[kh:kh + H, kw:kw + W, :].reshape(HW, Cmid)
                    acc1 = acc1 + jnp.dot(win[:, :C1a], w1_kt[j],
                                          preferred_element_type=jnp.float32)
                    acc2 = acc2 + jnp.dot(win[:, C1a:], w2_kt[j],
                                          preferred_element_type=jnp.float32)
            b1_acc[...] = acc1
            b2_acc[...] = acc2

        @pl.when(kt == 2)
        def _finalize():
            b1 = jnp.maximum(b1_acc[...] + b1b_ref[...], 0.0)
            b2 = jnp.maximum(b2_acc[...] + b2b_ref[...], 0.0)
            pooled = pool_acc[...].reshape(HW, Cin)
            b3 = jnp.dot(pooled, w3b_ref[...],
                         preferred_element_type=jnp.float32)
            b3 = jnp.maximum(b3 + b3b_ref[...], 0.0)
            o_ref[...] = jnp.concatenate(
                [b0_acc[...], b1, b2, b3], axis=-1).astype(o_ref.dtype)

    return kernel


# ----------------------------- forward -----------------------------

@functools.partial(jax.jit, static_argnames=("out_channels",))
def inception_forward(x_ncthw, params, out_channels):
    C0, C1a, C1b, C2a, C2b, C3b = out_channels
    N, Cin, T, H, W = x_ncthw.shape
    HW = H * W
    Cmid = C1a + C2a
    Ctot = C0 + C1b + C2b + C3b

    # NCTHW -> NTHWC (channels on lanes), bf16, zero pad T/H/W by 1 each side.
    x = jnp.transpose(x_ncthw, (0, 2, 3, 4, 1)).astype(jnp.bfloat16)
    x_pad = jnp.pad(x, ((0, 0), (1, 1), (1, 1), (1, 1), (0, 0)))

    kernel = _make_inception_kernel(T, H, W, Cin, C0, C1a, C1b, C2a, C2b, C3b)

    grid = (N, T, 3)
    in_specs = [
        pl.BlockSpec((None, None, H + 2, W + 2, Cin),
                     lambda n, t, kt: (n, t + kt, 0, 0, 0)),
        pl.BlockSpec((Cin, C0 + Cmid), lambda n, t, kt: (0, 0)),
        pl.BlockSpec((1, C0 + Cmid), lambda n, t, kt: (0, 0)),
        pl.BlockSpec((3, 9, C1a, C1b), lambda n, t, kt: (0, 0, 0, 0)),
        pl.BlockSpec((1, C1b), lambda n, t, kt: (0, 0)),
        pl.BlockSpec((3, 9, C2a, C2b), lambda n, t, kt: (0, 0, 0, 0)),
        pl.BlockSpec((1, C2b), lambda n, t, kt: (0, 0)),
        pl.BlockSpec((Cin, C3b), lambda n, t, kt: (0, 0)),
        pl.BlockSpec((1, C3b), lambda n, t, kt: (0, 0)),
    ]
    out_spec = pl.BlockSpec((None, None, HW, Ctot), lambda n, t, kt: (n, t, 0, 0))

    out = pl.pallas_call(
        kernel,
        out_shape=jax.ShapeDtypeStruct((N, T, HW, Ctot), jnp.float32),
        grid_spec=pltpu.PrefetchScalarGridSpec(
            num_scalar_prefetch=0,
            grid=grid,
            in_specs=in_specs,
            out_specs=out_spec,
            scratch_shapes=[
                pltpu.VMEM((HW, C0), jnp.float32),          # b0 result
                pltpu.VMEM((HW, C1b), jnp.float32),         # b1b accumulator
                pltpu.VMEM((HW, C2b), jnp.float32),         # b2b accumulator
                pltpu.VMEM((H, W, Cin), jnp.bfloat16),      # pool max accumulator
                pltpu.VMEM((H + 2, W + 2, Cmid), jnp.bfloat16),  # padded mid plane
            ]),
        compiler_params=pltpu.CompilerParams(
            dimension_semantics=("parallel", "parallel", "arbitrary")),
    )(x_pad, params["w111"], params["b111"], params["w1b"], params["b1b"],
      params["w2b"], params["b2b"], params["w3b"], params["b3b"])

    out = out.reshape(N, T, H, W, Ctot)
    return jnp.transpose(out, (0, 4, 1, 2, 3))   # back to NCTHW


# ----------------------------- parameters -----------------------------

def _bn_fold(key, cout):
    kg, kb, km, kv = jax.random.split(key, 4)
    gamma = 1.0 + 0.1 * jax.random.normal(kg, (cout,), jnp.float32)
    beta = 0.1 * jax.random.normal(kb, (cout,), jnp.float32)
    r_mean = 0.1 * jax.random.normal(km, (cout,), jnp.float32)
    r_var = 1.0 + 0.1 * jnp.abs(jax.random.normal(kv, (cout,), jnp.float32))
    eps = 1e-3                                   # BatchNorm3d(eps=0.001)
    scale = gamma / jnp.sqrt(r_var + eps)
    bias = beta - r_mean * scale
    return scale, bias


def _unit3d_1x1_params(key, cin, cout):
    kw_, kbn = jax.random.split(key)
    w = 0.1 * jax.random.normal(kw_, (cout, cin, 1, 1, 1), jnp.float32)
    scale, bias = _bn_fold(kbn, cout)
    w2d = w.reshape(cout, cin).T * scale[None, :]        # (cin, cout), BN folded
    return w2d, bias


def _unit3d_3x3_params(key, cin, cout):
    kw_, kbn = jax.random.split(key)
    w = 0.1 * jax.random.normal(kw_, (cout, cin, 3, 3, 3), jnp.float32)
    scale, bias = _bn_fold(kbn, cout)
    # (cout, cin, kt, kh, kw) -> (kt, kh, kw, cin, cout) -> (3, 9, cin, cout)
    wk = jnp.transpose(w, (2, 3, 4, 1, 0)).reshape(3, 9, cin, cout) * scale
    return wk, bias


def init_inception_params(key, in_channels, out_channels):
    c0, c1a, c1b, c2a, c2b, c3b = out_channels
    keys = jax.random.split(key, 6)
    w0, bias0 = _unit3d_1x1_params(keys[0], in_channels, c0)
    w1a, bias1a = _unit3d_1x1_params(keys[1], in_channels, c1a)
    w1b, bias1b = _unit3d_3x3_params(keys[2], c1a, c1b)
    w2a, bias2a = _unit3d_1x1_params(keys[3], in_channels, c2a)
    w2b, bias2b = _unit3d_3x3_params(keys[4], c2a, c2b)
    w3b, bias3b = _unit3d_1x1_params(keys[5], in_channels, c3b)
    return dict(
        # fused 1x1 weights for [b0 | b1a | b2a]
        w111=jnp.concatenate([w0, w1a, w2a], axis=1).astype(jnp.bfloat16),
        b111=jnp.concatenate([bias0, bias1a, bias2a]).reshape(1, -1),
        w1b=w1b.astype(jnp.bfloat16), b1b=bias1b.reshape(1, -1),
        w2b=w2b.astype(jnp.bfloat16), b2b=bias2b.reshape(1, -1),
        w3b=w3b.astype(jnp.bfloat16), b3b=bias3b.reshape(1, -1),
    )


# ----------------------------- main -----------------------------

if __name__ == "__main__":
    key = jax.random.PRNGKey(0)
    kx, kp = jax.random.split(key)
    N, Cin, T, H, W = 2, 4, 4, 8, 8
    out_channels = (8, 4, 8, 4, 8, 4)   # (b0, b1a, b1b, b2a, b2b, b3b)
    x = jax.random.normal(kx, (N, Cin, T, H, W), jnp.float32)
    params = init_inception_params(kp, Cin, out_channels)
    y = inception_forward(x, params, out_channels=out_channels)
    jax.block_until_ready(y)
    c_out = out_channels[0] + out_channels[2] + out_channels[4] + out_channels[5]
    assert y.shape == (N, c_out, T, H, W), y.shape
    print("KERNEL_OK")
</pallas_src>

<mosaic_0001>
module attributes {stable_mosaic.version = 11 : i64} {
  func.func @kernel(%arg0: i32, %arg1: i32, %arg2: i32, %arg3: memref<1x1x10x10x4xbf16, #tpu.memory_space<vmem>>, %arg4: memref<4x16xbf16, #tpu.memory_space<vmem>>, %arg5: memref<1x16xf32, #tpu.memory_space<vmem>>, %arg6: memref<3x9x4x8xbf16, #tpu.memory_space<vmem>>, %arg7: memref<1x8xf32, #tpu.memory_space<vmem>>, %arg8: memref<3x9x4x8xbf16, #tpu.memory_space<vmem>>, %arg9: memref<1x8xf32, #tpu.memory_space<vmem>>, %arg10: memref<4x4xbf16, #tpu.memory_space<vmem>>, %arg11: memref<1x4xf32, #tpu.memory_space<vmem>>, %arg12: memref<1x1x64x28xf32, #tpu.memory_space<vmem>>, %arg13: memref<64x8xf32, #tpu.memory_space<vmem>>, %arg14: memref<64x8xf32, #tpu.memory_space<vmem>>, %arg15: memref<64x8xf32, #tpu.memory_space<vmem>>, %arg16: memref<8x8x4xbf16, #tpu.memory_space<vmem>>, %arg17: memref<10x10x8xbf16, #tpu.memory_space<vmem>>) attributes {dimension_semantics = [#tpu.dimension_semantics<parallel>, #tpu.dimension_semantics<parallel>, #tpu.dimension_semantics<arbitrary>], iteration_bounds = array<i64: 2, 4, 3>, scalar_prefetch = 0 : i64, scratch_operands = 5 : i64, tpu.core_type = #tpu.core_type<tc>, window_params = [{transform_indices = @transform_0, window_bounds = array<i64: 1, 1, 10, 10, 4>}, {pipeline_mode = #tpu.pipeline_mode<synchronous>, transform_indices = @transform_1, window_bounds = array<i64: 4, 16>}, {pipeline_mode = #tpu.pipeline_mode<synchronous>, transform_indices = @transform_2, window_bounds = array<i64: 1, 16>}, {pipeline_mode = #tpu.pipeline_mode<synchronous>, transform_indices = @transform_3, window_bounds = array<i64: 3, 9, 4, 8>}, {pipeline_mode = #tpu.pipeline_mode<synchronous>, transform_indices = @transform_4, window_bounds = array<i64: 1, 8>}, {pipeline_mode = #tpu.pipeline_mode<synchronous>, transform_indices = @transform_5, window_bounds = array<i64: 3, 9, 4, 8>}, {pipeline_mode = #tpu.pipeline_mode<synchronous>, transform_indices = @transform_6, window_bounds = array<i64: 1, 8>}, {pipeline_mode = #tpu.pipeline_mode<synchronous>, transform_indices = @transform_7, window_bounds = array<i64: 4, 4>}, {pipeline_mode = #tpu.pipeline_mode<synchronous>, transform_indices = @transform_8, window_bounds = array<i64: 1, 4>}, {transform_indices = @transform_9, window_bounds = array<i64: 1, 1, 64, 28>}]} {
    %c0_i32 = arith.constant 0 : i32
    %0 = arith.cmpi eq, %arg2, %c0_i32 : i32
    %1 = arith.extui %0 : i1 to i32
    %c0_i32_0 = arith.constant 0 : i32
    %2 = arith.cmpi ne, %1, %c0_i32_0 : i32
    scf.if %2 {
      %cst = arith.constant 0.000000e+00 : f32
      %35 = vector.broadcast %cst : f32 to vector<64x8xf32>
      %c0_14 = arith.constant 0 : index
      %c0_15 = arith.constant 0 : index
      %36 = vector.load %arg14[%c0_14, %c0_15] : memref<64x8xf32, #tpu.memory_space<vmem>>, vector<64x8xf32>
      tpu.vector_store %arg14[%c0_14, %c0_15], %35 {strides = array<i32>} : memref<64x8xf32, #tpu.memory_space<vmem>>, vector<64x8xf32>,
      %cst_16 = arith.constant 0.000000e+00 : f32
      %37 = vector.broadcast %cst_16 : f32 to vector<64x8xf32>
      %c0_17 = arith.constant 0 : index
      %c0_18 = arith.constant 0 : index
      %38 = vector.load %arg15[%c0_17, %c0_18] : memref<64x8xf32, #tpu.memory_space<vmem>>, vector<64x8xf32>
      tpu.vector_store %arg15[%c0_17, %c0_18], %37 {strides = array<i32>} : memref<64x8xf32, #tpu.memory_space<vmem>>, vector<64x8xf32>,
      %cst_19 = arith.constant 0xFF80 : bf16
      %39 = vector.broadcast %cst_19 : bf16 to vector<8x8x4xbf16>
      %c0_20 = arith.constant 0 : index
      %c0_21 = arith.constant 0 : index
      %c0_22 = arith.constant 0 : index
      %40 = vector.load %arg16[%c0_20, %c0_21, %c0_22] : memref<8x8x4xbf16, #tpu.memory_space<vmem>>, vector<8x8x4xbf16>
      tpu.vector_store %arg16[%c0_20, %c0_21, %c0_22], %39 {strides = array<i32>} : memref<8x8x4xbf16, #tpu.memory_space<vmem>>, vector<8x8x4xbf16>,
    } else {
    }
    %c0 = arith.constant 0 : index
    %c0_1 = arith.constant 0 : index
    %c0_2 = arith.constant 0 : index
    %c0_3 = arith.constant 0 : index
    %c0_4 = arith.constant 0 : index
    %3 = vector.load %arg3[%c0, %c0_1, %c0_2, %c0_3, %c0_4] : memref<1x1x10x10x4xbf16, #tpu.memory_space<vmem>>, vector<1x1x10x10x4xbf16>
    %4 = vector.shape_cast %3 : vector<1x1x10x10x4xbf16> to vector<10x10x4xbf16>
    %5 = vector.extract_strided_slice %4 {offsets = [0, 0, 0], sizes = [8, 8, 4], strides = [1, 1, 1]} : vector<10x10x4xbf16> to vector<8x8x4xbf16>
    %6 = vector.extract_strided_slice %4 {offsets = [0, 1, 0], sizes = [8, 8, 4], strides = [1, 1, 1]} : vector<10x10x4xbf16> to vector<8x8x4xbf16>
    %7 = arith.maximumf %5, %6 : vector<8x8x4xbf16>
    %8 = vector.extract_strided_slice %4 {offsets = [0, 2, 0], sizes = [8, 8, 4], strides = [1, 1, 1]} : vector<10x10x4xbf16> to vector<8x8x4xbf16>
    %9 = arith.maximumf %7, %8 : vector<8x8x4xbf16>
    %10 = vector.extract_strided_slice %4 {offsets = [1, 0, 0], sizes = [8, 8, 4], strides = [1, 1, 1]} : vector<10x10x4xbf16> to vector<8x8x4xbf16>
    %11 = arith.maximumf %9, %10 : vector<8x8x4xbf16>
    %12 = vector.extract_strided_slice %4 {offsets = [1, 1, 0], sizes = [8, 8, 4], strides = [1, 1, 1]} : vector<10x10x4xbf16> to vector<8x8x4xbf16>
    %13 = arith.maximumf %11, %12 : vector<8x8x4xbf16>
    %14 = vector.extract_strided_slice %4 {offsets = [1, 2, 0], sizes = [8, 8, 4], strides = [1, 1, 1]} : vector<10x10x4xbf16> to vector<8x8x4xbf16>
    %15 = arith.maximumf %13, %14 : vector<8x8x4xbf16>
    %16 = vector.extract_strided_slice %4 {offsets = [2, 0, 0], sizes = [8, 8, 4], strides = [1, 1, 1]} : vector<10x10x4xbf16> to vector<8x8x4xbf16>
    %17 = arith.maximumf %15, %16 : vector<8x8x4xbf16>
    %18 = vector.extract_strided_slice %4 {offsets = [2, 1, 0], sizes = [8, 8, 4], strides = [1, 1, 1]} : vector<10x10x4xbf16> to vector<8x8x4xbf16>
    %19 = arith.maximumf %17, %18 : vector<8x8x4xbf16>
    %20 = vector.extract_strided_slice %4 {offsets = [2, 2, 0], sizes = [8, 8, 4], strides = [1, 1, 1]} : vector<10x10x4xbf16> to vector<8x8x4xbf16>
    %21 = arith.maximumf %19, %20 : vector<8x8x4xbf16>
    %c0_5 = arith.constant 0 : index
    %c0_6 = arith.constant 0 : index
    %c0_7 = arith.constant 0 : index
    %22 = vector.load %arg16[%c0_5, %c0_6, %c0_7] : memref<8x8x4xbf16, #tpu.memory_space<vmem>>, vector<8x8x4xbf16>
    %23 = arith.maximumf %22, %21 : vector<8x8x4xbf16>
    %c0_8 = arith.constant 0 : index
    %c0_9 = arith.constant 0 : index
    %c0_10 = arith.constant 0 : index
    %24 = vector.load %arg16[%c0_8, %c0_9, %c0_10] : memref<8x8x4xbf16, #tpu.memory_space<vmem>>, vector<8x8x4xbf16>
    tpu.vector_store %arg16[%c0_8, %c0_9, %c0_10], %23 {strides = array<i32>} : memref<8x8x4xbf16, #tpu.memory_space<vmem>>, vector<8x8x4xbf16>,
    %25 = arith.addi %arg1, %arg2 : i32
    %c0_i32_11 = arith.constant 0 : i32
    %26 = arith.cmpi sgt, %25, %c0_i32_11 : i32
    %27 = arith.addi %arg1, %arg2 : i32
    %c5_i32 = arith.constant 5 : i32
    %28 = arith.cmpi slt, %27, %c5_i32 : i32
    %29 = arith.andi %26, %28 : i1
    %30 = arith.extui %29 : i1 to i32
    %c0_i32_12 = arith.constant 0 : i32
    %31 = arith.cmpi ne, %30, %c0_i32_12 : i32
    scf.if %31 {
      %35 = vector.extract_strided_slice %4 {offsets = [1, 1, 0], sizes = [8, 8, 4], strides = [1, 1, 1]} : vector<10x10x4xbf16> to vector<8x8x4xbf16>
      %36 = vector.shape_cast %35 : vector<8x8x4xbf16> to vector<64x4xbf16>
      %c0_14 = arith.constant 0 : index
      %c0_15 = arith.constant 0 : index
      %37 = vector.load %arg4[%c0_14, %c0_15] : memref<4x16xbf16, #tpu.memory_space<vmem>>, vector<4x16xbf16>
      %cst = arith.constant dense<0.000000e+00> : vector<64x16xf32>
      %38 = tpu.matmul %36, %37, %cst {dimension_numbers = #tpu.dot_dimension_numbers<[1], [0], [0], [1], [0, 0, 1, 1], [], []>} : vector<64x4xbf16>, vector<4x16xbf16>, vector<64x16xf32> -> vector<64x16xf32>
      %c0_16 = arith.constant 0 : index
      %c0_17 = arith.constant 0 : index
      %39 = vector.load %arg5[%c0_16, %c0_17] : memref<1x16xf32, #tpu.memory_space<vmem>>, vector<1x16xf32>
      %40 = vector.broadcast %39 : vector<1x16xf32> to vector<64x16xf32>
      %41 = arith.addf %38, %40 : vector<64x16xf32>
      %cst_18 = arith.constant 0.000000e+00 : f32
      %42 = vector.broadcast %cst_18 : f32 to vector<64x16xf32>
      %43 = arith.maximumf %41, %42 : vector<64x16xf32>
      %c1_i32 = arith.constant 1 : i32
      %44 = arith.cmpi eq, %arg2, %c1_i32 : i32
      %45 = arith.extui %44 : i1 to i32
      %c0_i32_19 = arith.constant 0 : i32
      %46 = arith.cmpi ne, %45, %c0_i32_19 : i32
      scf.if %46 {
        %171 = vector.extract_strided_slice %43 {offsets = [0, 0], sizes = [64, 8], strides = [1, 1]} : vector<64x16xf32> to vector<64x8xf32>
        %c0_84 = arith.constant 0 : index
        %c0_85 = arith.constant 0 : index
        %172 = vector.load %arg13[%c0_84, %c0_85] : memref<64x8xf32, #tpu.memory_space<vmem>>, vector<64x8xf32>
        tpu.vector_store %arg13[%c0_84, %c0_85], %171 {strides = array<i32>} : memref<64x8xf32, #tpu.memory_space<vmem>>, vector<64x8xf32>,
      } else {
      }
      %cst_20 = arith.constant 0.000000e+00 : bf16
      %47 = vector.broadcast %cst_20 : bf16 to vector<10x10x8xbf16>
      %c0_21 = arith.constant 0 : index
      %c0_22 = arith.constant 0 : index
      %c0_23 = arith.constant 0 : index
      %48 = vector.load %arg17[%c0_21, %c0_22, %c0_23] : memref<10x10x8xbf16, #tpu.memory_space<vmem>>, vector<10x10x8xbf16>
      tpu.vector_store %arg17[%c0_21, %c0_22, %c0_23], %47 {strides = array<i32>} : memref<10x10x8xbf16, #tpu.memory_space<vmem>>, vector<10x10x8xbf16>,
      %49 = vector.extract_strided_slice %43 {offsets = [0, 8], sizes = [64, 8], strides = [1, 1]} : vector<64x16xf32> to vector<64x8xf32>
      %50 = arith.truncf %49 : vector<64x8xf32> to vector<64x8xbf16>
      %51 = vector.shape_cast %50 : vector<64x8xbf16> to vector<8x8x8xbf16>
      %c1 = arith.constant 1 : index
      %c1_24 = arith.constant 1 : index
      %c0_25 = arith.constant 0 : index
      %52 = vector.load %arg17[%c1, %c1_24, %c0_25] : memref<10x10x8xbf16, #tpu.memory_space<vmem>>, vector<8x8x8xbf16>
      tpu.vector_store %arg17[%c1, %c1_24, %c0_25], %51 {strides = array<i32>} : memref<10x10x8xbf16, #tpu.memory_space<vmem>>, vector<8x8x8xbf16>,
      %53 = arith.index_cast %arg2 : i32 to index
      %c0_26 = arith.constant 0 : index
      %c0_27 = arith.constant 0 : index
      %c0_28 = arith.constant 0 : index
      %54 = vector.load %arg6[%53, %c0_26, %c0_27, %c0_28] : memref<3x9x4x8xbf16, #tpu.memory_space<vmem>>, vector<1x9x4x8xbf16>
      %55 = vector.shape_cast %54 : vector<1x9x4x8xbf16> to vector<9x4x8xbf16>
      %56 = arith.index_cast %arg2 : i32 to index
      %c0_29 = arith.constant 0 : index
      %c0_30 = arith.constant 0 : index
      %c0_31 = arith.constant 0 : index
      %57 = vector.load %arg8[%56, %c0_29, %c0_30, %c0_31] : memref<3x9x4x8xbf16, #tpu.memory_space<vmem>>, vector<1x9x4x8xbf16>
      %58 = vector.shape_cast %57 : vector<1x9x4x8xbf16> to vector<9x4x8xbf16>
      %c0_32 = arith.constant 0 : index
      %c0_33 = arith.constant 0 : index
      %59 = vector.load %arg14[%c0_32, %c0_33] : memref<64x8xf32, #tpu.memory_space<vmem>>, vector<64x8xf32>
      %c0_34 = arith.constant 0 : index
      %c0_35 = arith.constant 0 : index
      %60 = vector.load %arg15[%c0_34, %c0_35] : memref<64x8xf32, #tpu.memory_space<vmem>>, vector<64x8xf32>
      %c0_36 = arith.constant 0 : index
      %c0_37 = arith.constant 0 : index
      %c0_38 = arith.constant 0 : index
      %61 = vector.load %arg17[%c0_36, %c0_37, %c0_38] : memref<10x10x8xbf16, #tpu.memory_space<vmem>>, vector<8x8x8xbf16>
      %62 = vector.shape_cast %61 : vector<8x8x8xbf16> to vector<64x8xbf16>
      %63 = vector.extract_strided_slice %62 {offsets = [0, 0], sizes = [64, 4], strides = [1, 1]} : vector<64x8xbf16> to vector<64x4xbf16>
      %64 = vector.extract_strided_slice %55 {offsets = [0, 0, 0], sizes = [1, 4, 8], strides = [1, 1, 1]} : vector<9x4x8xbf16> to vector<1x4x8xbf16>
      %65 = vector.shape_cast %64 : vector<1x4x8xbf16> to vector<4x8xbf16>
      %cst_39 = arith.constant dense<0.000000e+00> : vector<64x8xf32>
      %66 = tpu.matmul %63, %65, %cst_39 {dimension_numbers = #tpu.dot_dimension_numbers<[1], [0], [0], [1], [0, 0, 1, 1], [], []>} : vector<64x4xbf16>, vector<4x8xbf16>, vector<64x8xf32> -> vector<64x8xf32>
      %67 = arith.addf %59, %66 : vector<64x8xf32>
      %68 = vector.extract_strided_slice %62 {offsets = [0, 4], sizes = [64, 4], strides = [1, 1]} : vector<64x8xbf16> to vector<64x4xbf16>
      %69 = vector.extract_strided_slice %58 {offsets = [0, 0, 0], sizes = [1, 4, 8], strides = [1, 1, 1]} : vector<9x4x8xbf16> to vector<1x4x8xbf16>
      %70 = vector.shape_cast %69 : vector<1x4x8xbf16> to vector<4x8xbf16>
      %cst_40 = arith.constant dense<0.000000e+00> : vector<64x8xf32>
      %71 = tpu.matmul %68, %70, %cst_40 {dimension_numbers = #tpu.dot_dimension_numbers<[1], [0], [0], [1], [0, 0, 1, 1], [], []>} : vector<64x4xbf16>, vector<4x8xbf16>, vector<64x8xf32> -> vector<64x8xf32>
      %72 = arith.addf %60, %71 : vector<64x8xf32>
      %c0_41 = arith.constant 0 : index
      %c1_42 = arith.constant 1 : index
      %c0_43 = arith.constant 0 : index
      %73 = vector.load %arg17[%c0_41, %c1_42, %c0_43] : memref<10x10x8xbf16, #tpu.memory_space<vmem>>, vector<8x8x8xbf16>
      %74 = vector.shape_cast %73 : vector<8x8x8xbf16> to vector<64x8xbf16>
      %75 = vector.extract_strided_slice %74 {offsets = [0, 0], sizes = [64, 4], strides = [1, 1]} : vector<64x8xbf16> to vector<64x4xbf16>
      %76 = vector.extract_strided_slice %55 {offsets = [1, 0, 0], sizes = [1, 4, 8], strides = [1, 1, 1]} : vector<9x4x8xbf16> to vector<1x4x8xbf16>
      %77 = vector.shape_cast %76 : vector<1x4x8xbf16> to vector<4x8xbf16>
      %cst_44 = arith.constant dense<0.000000e+00> : vector<64x8xf32>
      %78 = tpu.matmul %75, %77, %cst_44 {dimension_numbers = #tpu.dot_dimension_numbers<[1], [0], [0], [1], [0, 0, 1, 1], [], []>} : vector<64x4xbf16>, vector<4x8xbf16>, vector<64x8xf32> -> vector<64x8xf32>
      %79 = arith.addf %67, %78 : vector<64x8xf32>
      %80 = vector.extract_strided_slice %74 {offsets = [0, 4], sizes = [64, 4], strides = [1, 1]} : vector<64x8xbf16> to vector<64x4xbf16>
      %81 = vector.extract_strided_slice %58 {offsets = [1, 0, 0], sizes = [1, 4, 8], strides = [1, 1, 1]} : vector<9x4x8xbf16> to vector<1x4x8xbf16>
      %82 = vector.shape_cast %81 : vector<1x4x8xbf16> to vector<4x8xbf16>
      %cst_45 = arith.constant dense<0.000000e+00> : vector<64x8xf32>
      %83 = tpu.matmul %80, %82, %cst_45 {dimension_numbers = #tpu.dot_dimension_numbers<[1], [0], [0], [1], [0, 0, 1, 1], [], []>} : vector<64x4xbf16>, vector<4x8xbf16>, vector<64x8xf32> -> vector<64x8xf32>
      %84 = arith.addf %72, %83 : vector<64x8xf32>
      %c0_46 = arith.constant 0 : index
      %c2 = arith.constant 2 : index
      %c0_47 = arith.constant 0 : index
      %85 = vector.load %arg17[%c0_46, %c2, %c0_47] : memref<10x10x8xbf16, #tpu.memory_space<vmem>>, vector<8x8x8xbf16>
      %86 = vector.shape_cast %85 : vector<8x8x8xbf16> to vector<64x8xbf16>
      %87 = vector.extract_strided_slice %86 {offsets = [0, 0], sizes = [64, 4], strides = [1, 1]} : vector<64x8xbf16> to vector<64x4xbf16>
      %88 = vector.extract_strided_slice %55 {offsets = [2, 0, 0], sizes = [1, 4, 8], strides = [1, 1, 1]} : vector<9x4x8xbf16> to vector<1x4x8xbf16>
      %89 = vector.shape_cast %88 : vector<1x4x8xbf16> to vector<4x8xbf16>
      %cst_48 = arith.constant dense<0.000000e+00> : vector<64x8xf32>
      %90 = tpu.matmul %87, %89, %cst_48 {dimension_numbers = #tpu.dot_dimension_numbers<[1], [0], [0], [1], [0, 0, 1, 1], [], []>} : vector<64x4xbf16>, vector<4x8xbf16>, vector<64x8xf32> -> vector<64x8xf32>
      %91 = arith.addf %79, %90 : vector<64x8xf32>
      %92 = vector.extract_strided_slice %86 {offsets = [0, 4], sizes = [64, 4], strides = [1, 1]} : vector<64x8xbf16> to vector<64x4xbf16>
      %93 = vector.extract_strided_slice %58 {offsets = [2, 0, 0], sizes = [1, 4, 8], strides = [1, 1, 1]} : vector<9x4x8xbf16> to vector<1x4x8xbf16>
      %94 = vector.shape_cast %93 : vector<1x4x8xbf16> to vector<4x8xbf16>
      %cst_49 = arith.constant dense<0.000000e+00> : vector<64x8xf32>
      %95 = tpu.matmul %92, %94, %cst_49 {dimension_numbers = #tpu.dot_dimension_numbers<[1], [0], [0], [1], [0, 0, 1, 1], [], []>} : vector<64x4xbf16>, vector<4x8xbf16>, vector<64x8xf32> -> vector<64x8xf32>
      %96 = arith.addf %84, %95 : vector<64x8xf32>
      %c1_50 = arith.constant 1 : index
      %c0_51 = arith.constant 0 : index
      %c0_52 = arith.constant 0 : index
      %97 = vector.load %arg17[%c1_50, %c0_51, %c0_52] : memref<10x10x8xbf16, #tpu.memory_space<vmem>>, vector<8x8x8xbf16>
      %98 = vector.shape_cast %97 : vector<8x8x8xbf16> to vector<64x8xbf16>
      %99 = vector.extract_strided_slice %98 {offsets = [0, 0], sizes = [64, 4], strides = [1, 1]} : vector<64x8xbf16> to vector<64x4xbf16>
      %100 = vector.extract_strided_slice %55 {offsets = [3, 0, 0], sizes = [1, 4, 8], strides = [1, 1, 1]} : vector<9x4x8xbf16> to vector<1x4x8xbf16>
      %101 = vector.shape_cast %100 : vector<1x4x8xbf16> to vector<4x8xbf16>
      %cst_53 = arith.constant dense<0.000000e+00> : vector<64x8xf32>
      %102 = tpu.matmul %99, %101, %cst_53 {dimension_numbers = #tpu.dot_dimension_numbers<[1], [0], [0], [1], [0, 0, 1, 1], [], []>} : vector<64x4xbf16>, vector<4x8xbf16>, vector<64x8xf32> -> vector<64x8xf32>
      %103 = arith.addf %91, %102 : vector<64x8xf32>
      %104 = vector.extract_strided_slice %98 {offsets = [0, 4], sizes = [64, 4], strides = [1, 1]} : vector<64x8xbf16> to vector<64x4xbf16>
      %105 = vector.extract_strided_slice %58 {offsets = [3, 0, 0], sizes = [1, 4, 8], strides = [1, 1, 1]} : vector<9x4x8xbf16> to vector<1x4x8xbf16>
      %106 = vector.shape_cast %105 : vector<1x4x8xbf16> to vector<4x8xbf16>
      %cst_54 = arith.constant dense<0.000000e+00> : vector<64x8xf32>
      %107 = tpu.matmul %104, %106, %cst_54 {dimension_numbers = #tpu.dot_dimension_numbers<[1], [0], [0], [1], [0, 0, 1, 1], [], []>} : vector<64x4xbf16>, vector<4x8xbf16>, vector<64x8xf32> -> vector<64x8xf32>
      %108 = arith.addf %96, %107 : vector<64x8xf32>
      %c1_55 = arith.constant 1 : index
      %c1_56 = arith.constant 1 : index
      %c0_57 = arith.constant 0 : index
      %109 = vector.load %arg17[%c1_55, %c1_56, %c0_57] : memref<10x10x8xbf16, #tpu.memory_space<vmem>>, vector<8x8x8xbf16>
      %110 = vector.shape_cast %109 : vector<8x8x8xbf16> to vector<64x8xbf16>
      %111 = vector.extract_strided_slice %110 {offsets = [0, 0], sizes = [64, 4], strides = [1, 1]} : vector<64x8xbf16> to vector<64x4xbf16>
      %112 = vector.extract_strided_slice %55 {offsets = [4, 0, 0], sizes = [1, 4, 8], strides = [1, 1, 1]} : vector<9x4x8xbf16> to vector<1x4x8xbf16>
      %113 = vector.shape_cast %112 : vector<1x4x8xbf16> to vector<4x8xbf16>
      %cst_58 = arith.constant dense<0.000000e+00> : vector<64x8xf32>
      %114 = tpu.matmul %111, %113, %cst_58 {dimension_numbers = #tpu.dot_dimension_numbers<[1], [0], [0], [1], [0, 0, 1, 1], [], []>} : vector<64x4xbf16>, vector<4x8xbf16>, vector<64x8xf32> -> vector<64x8xf32>
      %115 = arith.addf %103, %114 : vector<64x8xf32>
      %116 = vector.extract_strided_slice %110 {offsets = [0, 4], sizes = [64, 4], strides = [1, 1]} : vector<64x8xbf16> to vector<64x4xbf16>
      %117 = vector.extract_strided_slice %58 {offsets = [4, 0, 0], sizes = [1, 4, 8], strides = [1, 1, 1]} : vector<9x4x8xbf16> to vector<1x4x8xbf16>
      %118 = vector.shape_cast %117 : vector<1x4x8xbf16> to vector<4x8xbf16>
      %cst_59 = arith.constant dense<0.000000e+00> : vector<64x8xf32>
      %119 = tpu.matmul %116, %118, %cst_59 {dimension_numbers = #tpu.dot_dimension_numbers<[1], [0], [0], [1], [0, 0, 1, 1], [], []>} : vector<64x4xbf16>, vector<4x8xbf16>, vector<64x8xf32> -> vector<64x8xf32>
      %120 = arith.addf %108, %119 : vector<64x8xf32>
      %c1_60 = arith.constant 1 : index
      %c2_61 = arith.constant 2 : index
      %c0_62 = arith.constant 0 : index
      %121 = vector.load %arg17[%c1_60, %c2_61, %c0_62] : memref<10x10x8xbf16, #tpu.memory_space<vmem>>, vector<8x8x8xbf16>
      %122 = vector.shape_cast %121 : vector<8x8x8xbf16> to vector<64x8xbf16>
      %123 = vector.extract_strided_slice %122 {offsets = [0, 0], sizes = [64, 4], strides = [1, 1]} : vector<64x8xbf16> to vector<64x4xbf16>
      %124 = vector.extract_strided_slice %55 {offsets = [5, 0, 0], sizes = [1, 4, 8], strides = [1, 1, 1]} : vector<9x4x8xbf16> to vector<1x4x8xbf16>
      %125 = vector.shape_cast %124 : vector<1x4x8xbf16> to vector<4x8xbf16>
      %cst_63 = arith.constant dense<0.000000e+00> : vector<64x8xf32>
      %126 = tpu.matmul %123, %125, %cst_63 {dimension_numbers = #tpu.dot_dimension_numbers<[1], [0], [0], [1], [0, 0, 1, 1], [], []>} : vector<64x4xbf16>, vector<4x8xbf16>, vector<64x8xf32> -> vector<64x8xf32>
      %127 = arith.addf %115, %126 : vector<64x8xf32>
      %128 = vector.extract_strided_slice %122 {offsets = [0, 4], sizes = [64, 4], strides = [1, 1]} : vector<64x8xbf16> to vector<64x4xbf16>
      %129 = vector.extract_strided_slice %58 {offsets = [5, 0, 0], sizes = [1, 4, 8], strides = [1, 1, 1]} : vector<9x4x8xbf16> to vector<1x4x8xbf16>
      %130 = vector.shape_cast %129 : vector<1x4x8xbf16> to vector<4x8xbf16>
      %cst_64 = arith.constant dense<0.000000e+00> : vector<64x8xf32>
      %131 = tpu.matmul %128, %130, %cst_64 {dimension_numbers = #tpu.dot_dimension_numbers<[1], [0], [0], [1], [0, 0, 1, 1], [], []>} : vector<64x4xbf16>, vector<4x8xbf16>, vector<64x8xf32> -> vector<64x8xf32>
      %132 = arith.addf %120, %131 : vector<64x8xf32>
      %c2_65 = arith.constant 2 : index
      %c0_66 = arith.constant 0 : index
      %c0_67 = arith.constant 0 : index
      %133 = vector.load %arg17[%c2_65, %c0_66, %c0_67] : memref<10x10x8xbf16, #tpu.memory_space<vmem>>, vector<8x8x8xbf16>
      %134 = vector.shape_cast %133 : vector<8x8x8xbf16> to vector<64x8xbf16>
      %135 = vector.extract_strided_slice %134 {offsets = [0, 0], sizes = [64, 4], strides = [1, 1]} : vector<64x8xbf16> to vector<64x4xbf16>
      %136 = vector.extract_strided_slice %55 {offsets = [6, 0, 0], sizes = [1, 4, 8], strides = [1, 1, 1]} : vector<9x4x8xbf16> to vector<1x4x8xbf16>
      %137 = vector.shape_cast %136 : vector<1x4x8xbf16> to vector<4x8xbf16>
      %cst_68 = arith.constant dense<0.000000e+00> : vector<64x8xf32>
      %138 = tpu.matmul %135, %137, %cst_68 {dimension_numbers = #tpu.dot_dimension_numbers<[1], [0], [0], [1], [0, 0, 1, 1], [], []>} : vector<64x4xbf16>, vector<4x8xbf16>, vector<64x8xf32> -> vector<64x8xf32>
      %139 = arith.addf %127, %138 : vector<64x8xf32>
      %140 = vector.extract_strided_slice %134 {offsets = [0, 4], sizes = [64, 4], strides = [1, 1]} : vector<64x8xbf16> to vector<64x4xbf16>
      %141 = vector.extract_strided_slice %58 {offsets = [6, 0, 0], sizes = [1, 4, 8], strides = [1, 1, 1]} : vector<9x4x8xbf16> to vector<1x4x8xbf16>
      %142 = vector.shape_cast %141 : vector<1x4x8xbf16> to vector<4x8xbf16>
      %cst_69 = arith.constant dense<0.000000e+00> : vector<64x8xf32>
      %143 = tpu.matmul %140, %142, %cst_69 {dimension_numbers = #tpu.dot_dimension_numbers<[1], [0], [0], [1], [0, 0, 1, 1], [], []>} : vector<64x4xbf16>, vector<4x8xbf16>, vector<64x8xf32> -> vector<64x8xf32>
      %144 = arith.addf %132, %143 : vector<64x8xf32>
      %c2_70 = arith.constant 2 : index
      %c1_71 = arith.constant 1 : index
      %c0_72 = arith.constant 0 : index
      %145 = vector.load %arg17[%c2_70, %c1_71, %c0_72] : memref<10x10x8xbf16, #tpu.memory_space<vmem>>, vector<8x8x8xbf16>
      %146 = vector.shape_cast %145 : vector<8x8x8xbf16> to vector<64x8xbf16>
      %147 = vector.extract_strided_slice %146 {offsets = [0, 0], sizes = [64, 4], strides = [1, 1]} : vector<64x8xbf16> to vector<64x4xbf16>
      %148 = vector.extract_strided_slice %55 {offsets = [7, 0, 0], sizes = [1, 4, 8], strides = [1, 1, 1]} : vector<9x4x8xbf16> to vector<1x4x8xbf16>
      %149 = vector.shape_cast %148 : vector<1x4x8xbf16> to vector<4x8xbf16>
      %cst_73 = arith.constant dense<0.000000e+00> : vector<64x8xf32>
      %150 = tpu.matmul %147, %149, %cst_73 {dimension_numbers = #tpu.dot_dimension_numbers<[1], [0], [0], [1], [0, 0, 1, 1], [], []>} : vector<64x4xbf16>, vector<4x8xbf16>, vector<64x8xf32> -> vector<64x8xf32>
      %151 = arith.addf %139, %150 : vector<64x8xf32>
      %152 = vector.extract_strided_slice %146 {offsets = [0, 4], sizes = [64, 4], strides = [1, 1]} : vector<64x8xbf16> to vector<64x4xbf16>
      %153 = vector.extract_strided_slice %58 {offsets = [7, 0, 0], sizes = [1, 4, 8], strides = [1, 1, 1]} : vector<9x4x8xbf16> to vector<1x4x8xbf16>
      %154 = vector.shape_cast %153 : vector<1x4x8xbf16> to vector<4x8xbf16>
      %cst_74 = arith.constant dense<0.000000e+00> : vector<64x8xf32>
      %155 = tpu.matmul %152, %154, %cst_74 {dimension_numbers = #tpu.dot_dimension_numbers<[1], [0], [0], [1], [0, 0, 1, 1], [], []>} : vector<64x4xbf16>, vector<4x8xbf16>, vector<64x8xf32> -> vector<64x8xf32>
      %156 = arith.addf %144, %155 : vector<64x8xf32>
      %c2_75 = arith.constant 2 : index
      %c2_76 = arith.constant 2 : index
      %c0_77 = arith.constant 0 : index
      %157 = vector.load %arg17[%c2_75, %c2_76, %c0_77] : memref<10x10x8xbf16, #tpu.memory_space<vmem>>, vector<8x8x8xbf16>
      %158 = vector.shape_cast %157 : vector<8x8x8xbf16> to vector<64x8xbf16>
      %159 = vector.extract_strided_slice %158 {offsets = [0, 0], sizes = [64, 4], strides = [1, 1]} : vector<64x8xbf16> to vector<64x4xbf16>
      %160 = vector.extract_strided_slice %55 {offsets = [8, 0, 0], sizes = [1, 4, 8], strides = [1, 1, 1]} : vector<9x4x8xbf16> to vector<1x4x8xbf16>
      %161 = vector.shape_cast %160 : vector<1x4x8xbf16> to vector<4x8xbf16>
      %cst_78 = arith.constant dense<0.000000e+00> : vector<64x8xf32>
      %162 = tpu.matmul %159, %161, %cst_78 {dimension_numbers = #tpu.dot_dimension_numbers<[1], [0], [0], [1], [0, 0, 1, 1], [], []>} : vector<64x4xbf16>, vector<4x8xbf16>, vector<64x8xf32> -> vector<64x8xf32>
      %163 = arith.addf %151, %162 : vector<64x8xf32>
      %164 = vector.extract_strided_slice %158 {offsets = [0, 4], sizes = [64, 4], strides = [1, 1]} : vector<64x8xbf16> to vector<64x4xbf16>
      %165 = vector.extract_strided_slice %58 {offsets = [8, 0, 0], sizes = [1, 4, 8], strides = [1, 1, 1]} : vector<9x4x8xbf16> to vector<1x4x8xbf16>
      %166 = vector.shape_cast %165 : vector<1x4x8xbf16> to vector<4x8xbf16>
      %cst_79 = arith.constant dense<0.000000e+00> : vector<64x8xf32>
      %167 = tpu.matmul %164, %166, %cst_79 {dimension_numbers = #tpu.dot_dimension_numbers<[1], [0], [0], [1], [0, 0, 1, 1], [], []>} : vector<64x4xbf16>, vector<4x8xbf16>, vector<64x8xf32> -> vector<64x8xf32>
      %168 = arith.addf %156, %167 : vector<64x8xf32>
      %c0_80 = arith.constant 0 : index
      %c0_81 = arith.constant 0 : index
      %169 = vector.load %arg14[%c0_80, %c0_81] : memref<64x8xf32, #tpu.memory_space<vmem>>, vector<64x8xf32>
      tpu.vector_store %arg14[%c0_80, %c0_81], %163 {strides = array<i32>} : memref<64x8xf32, #tpu.memory_space<vmem>>, vector<64x8xf32>,
      %c0_82 = arith.constant 0 : index
      %c0_83 = arith.constant 0 : index
      %170 = vector.load %arg15[%c0_82, %c0_83] : memref<64x8xf32, #tpu.memory_space<vmem>>, vector<64x8xf32>
      tpu.vector_store %arg15[%c0_82, %c0_83], %168 {strides = array<i32>} : memref<64x8xf32, #tpu.memory_space<vmem>>, vector<64x8xf32>,
    } else {
    }
    %c2_i32 = arith.constant 2 : i32
    %32 = arith.cmpi eq, %arg2, %c2_i32 : i32
    %33 = arith.extui %32 : i1 to i32
    %c0_i32_13 = arith.constant 0 : i32
    %34 = arith.cmpi ne, %33, %c0_i32_13 : i32
    scf.if %34 {
      %c0_14 = arith.constant 0 : index
      %c0_15 = arith.constant 0 : index
      %35 = vector.load %arg14[%c0_14, %c0_15] : memref<64x8xf32, #tpu.memory_space<vmem>>, vector<64x8xf32>
      %c0_16 = arith.constant 0 : index
      %c0_17 = arith.constant 0 : index
      %36 = vector.load %arg7[%c0_16, %c0_17] : memref<1x8xf32, #tpu.memory_space<vmem>>, vector<1x8xf32>
      %37 = vector.broadcast %36 : vector<1x8xf32> to vector<64x8xf32>
      %38 = arith.addf %35, %37 : vector<64x8xf32>
      %cst = arith.constant 0.000000e+00 : f32
      %39 = vector.broadcast %cst : f32 to vector<64x8xf32>
      %40 = arith.maximumf %38, %39 : vector<64x8xf32>
      %c0_18 = arith.constant 0 : index
      %c0_19 = arith.constant 0 : index
      %41 = vector.load %arg15[%c0_18, %c0_19] : memref<64x8xf32, #tpu.memory_space<vmem>>, vector<64x8xf32>
      %c0_20 = arith.constant 0 : index
      %c0_21 = arith.constant 0 : index
      %42 = vector.load %arg9[%c0_20, %c0_21] : memref<1x8xf32, #tpu.memory_space<vmem>>, vector<1x8xf32>
      %43 = vector.broadcast %42 : vector<1x8xf32> to vector<64x8xf32>
      %44 = arith.addf %41, %43 : vector<64x8xf32>
      %cst_22 = arith.constant 0.000000e+00 : f32
      %45 = vector.broadcast %cst_22 : f32 to vector<64x8xf32>
      %46 = arith.maximumf %44, %45 : vector<64x8xf32>
      %c0_23 = arith.constant 0 : index
      %c0_24 = arith.constant 0 : index
      %c0_25 = arith.constant 0 : index
      %47 = vector.load %arg16[%c0_23, %c0_24, %c0_25] : memref<8x8x4xbf16, #tpu.memory_space<vmem>>, vector<8x8x4xbf16>
      %48 = vector.shape_cast %47 : vector<8x8x4xbf16> to vector<64x4xbf16>
      %c0_26 = arith.constant 0 : index
      %c0_27 = arith.constant 0 : index
      %49 = vector.load %arg10[%c0_26, %c0_27] : memref<4x4xbf16, #tpu.memory_space<vmem>>, vector<4x4xbf16>
      %cst_28 = arith.constant dense<0.000000e+00> : vector<64x4xf32>
      %50 = tpu.matmul %48, %49, %cst_28 {dimension_numbers = #tpu.dot_dimension_numbers<[1], [0], [0], [1], [0, 0, 1, 1], [], []>} : vector<64x4xbf16>, vector<4x4xbf16>, vector<64x4xf32> -> vector<64x4xf32>
      %c0_29 = arith.constant 0 : index
      %c0_30 = arith.constant 0 : index
      %51 = vector.load %arg11[%c0_29, %c0_30] : memref<1x4xf32, #tpu.memory_space<vmem>>, vector<1x4xf32>
      %52 = vector.broadcast %51 : vector<1x4xf32> to vector<64x4xf32>
      %53 = arith.addf %50, %52 : vector<64x4xf32>
      %cst_31 = arith.constant 0.000000e+00 : f32
      %54 = vector.broadcast %cst_31 : f32 to vector<64x4xf32>
      %55 = arith.maximumf %53, %54 : vector<64x4xf32>
      %c0_32 = arith.constant 0 : index
      %c0_33 = arith.constant 0 : index
      %56 = vector.load %arg13[%c0_32, %c0_33] : memref<64x8xf32, #tpu.memory_space<vmem>>, vector<64x8xf32>
      %57 = tpu.concatenate %56, %40, %46, %55 in 1 : vector<64x8xf32>, vector<64x8xf32>, vector<64x8xf32>, vector<64x4xf32> -> vector<64x28xf32>
      %c0_34 = arith.constant 0 : index
      %c0_35 = arith.constant 0 : index
      %c0_36 = arith.constant 0 : index
      %c0_37 = arith.constant 0 : index
      %58 = vector.load %arg12[%c0_34, %c0_35, %c0_36, %c0_37] : memref<1x1x64x28xf32, #tpu.memory_space<vmem>>, vector<1x1x64x28xf32>
      %59 = vector.shape_cast %58 : vector<1x1x64x28xf32> to vector<64x28xf32>
      %60 = vector.shape_cast %57 : vector<64x28xf32> to vector<1x1x64x28xf32>
      tpu.vector_store %arg12[%c0_34, %c0_35, %c0_36, %c0_37], %60 {strides = array<i32>} : memref<1x1x64x28xf32, #tpu.memory_space<vmem>>, vector<1x1x64x28xf32>,
    } else {
    }
    return
  }
  func.func @transform_0(%arg0: i32, %arg1: i32, %arg2: i32) -> (i32, i32, i32, i32, i32) {
    %0 = arith.addi %arg1, %arg2 : i32
    %c0_i32 = arith.constant 0 : i32
    %c0_i32_0 = arith.constant 0 : i32
    %c0_i32_1 = arith.constant 0 : i32
    %c0_i32_2 = arith.constant 0 : i32
    return %arg0, %0, %c0_i32, %c0_i32_0, %c0_i32_1 : i32, i32, i32, i32, i32
  }
  func.func @transform_1(%arg0: i32, %arg1: i32, %arg2: i32) -> (i32, i32) {
    %c0_i32 = arith.constant 0 : i32
    %c0_i32_0 = arith.constant 0 : i32
    %c0_i32_1 = arith.constant 0 : i32
    return %c0_i32, %c0_i32_0 : i32, i32
  }
  func.func @transform_2(%arg0: i32, %arg1: i32, %arg2: i32) -> (i32, i32) {
    %c0_i32 = arith.constant 0 : i32
    %c0_i32_0 = arith.constant 0 : i32
    %c0_i32_1 = arith.constant 0 : i32
    return %c0_i32, %c0_i32_0 : i32, i32
  }
  func.func @transform_3(%arg0: i32, %arg1: i32, %arg2: i32) -> (i32, i32, i32, i32) {
    %c0_i32 = arith.constant 0 : i32
    %c0_i32_0 = arith.constant 0 : i32
    %c0_i32_1 = arith.constant 0 : i32
    %c0_i32_2 = arith.constant 0 : i32
    %c0_i32_3 = arith.constant 0 : i32
    return %c0_i32, %c0_i32_0, %c0_i32_1, %c0_i32_2 : i32, i32, i32, i32
  }
  func.func @transform_4(%arg0: i32, %arg1: i32, %arg2: i32) -> (i32, i32) {
    %c0_i32 = arith.constant 0 : i32
    %c0_i32_0 = arith.constant 0 : i32
    %c0_i32_1 = arith.constant 0 : i32
    return %c0_i32, %c0_i32_0 : i32, i32
  }
  func.func @transform_5(%arg0: i32, %arg1: i32, %arg2: i32) -> (i32, i32, i32, i32) {
    %c0_i32 = arith.constant 0 : i32
    %c0_i32_0 = arith.constant 0 : i32
    %c0_i32_1 = arith.constant 0 : i32
    %c0_i32_2 = arith.constant 0 : i32
    %c0_i32_3 = arith.constant 0 : i32
    return %c0_i32, %c0_i32_0, %c0_i32_1, %c0_i32_2 : i32, i32, i32, i32
  }
  func.func @transform_6(%arg0: i32, %arg1: i32, %arg2: i32) -> (i32, i32) {
    %c0_i32 = arith.constant 0 : i32
    %c0_i32_0 = arith.constant 0 : i32
    %c0_i32_1 = arith.constant 0 : i32
    return %c0_i32, %c0_i32_0 : i32, i32
  }
  func.func @transform_7(%arg0: i32, %arg1: i32, %arg2: i32) -> (i32, i32) {
    %c0_i32 = arith.constant 0 : i32
    %c0_i32_0 = arith.constant 0 : i32
    %c0_i32_1 = arith.constant 0 : i32
    return %c0_i32, %c0_i32_0 : i32, i32
  }
  func.func @transform_8(%arg0: i32, %arg1: i32, %arg2: i32) -> (i32, i32) {
    %c0_i32 = arith.constant 0 : i32
    %c0_i32_0 = arith.constant 0 : i32
    %c0_i32_1 = arith.constant 0 : i32
    return %c0_i32, %c0_i32_0 : i32, i32
  }
  func.func @transform_9(%arg0: i32, %arg1: i32, %arg2: i32) -> (i32, i32, i32, i32) {
    %c0_i32 = arith.constant 0 : i32
    %c0_i32_0 = arith.constant 0 : i32
    %c0_i32_1 = arith.constant 0 : i32
    return %arg0, %arg1, %c0_i32, %c0_i32_0 : i32, i32, i32, i32
  }
}

</mosaic_0001>

<llo_original>
// kernel: inception_forward.1
$region0: #{inception_forward.1}
  #allocation0 [shape = 'u32[]', space=smem, size = 0x4, offset = 0x4, fixed_abs, tag = 'smem constant byte address 0x4 - core index']
  #allocation1 [shape = 'u32[144,128]{1,0:T(1,128)}', space=vmem, size = 0x12000, scoped, tag = 'internal scratch']
  #allocation2 [shape = 'f32[64,8]{1,0:T(8,128)}', space=vmem, size = 0x8000, scoped, tag = 'scratch operand']
  #allocation3 [shape = 'f32[64,8]{1,0:T(8,128)}', space=vmem, size = 0x8000, scoped, tag = 'scratch operand']
  #allocation4 [shape = 'f32[64,8]{1,0:T(8,128)}', space=vmem, size = 0x8000, scoped, tag = 'scratch operand']
  #allocation5 [shape = 'bf16[8,8,4]{2,1,0:T(8,128)(2,1)}', space=vmem, size = 0x4000, scoped, tag = 'scratch operand']
  #allocation6 [shape = 'bf16[10,10,8]{2,1,0:T(8,128)(2,1)}', space=vmem, size = 0xa000, scoped, tag = 'scratch operand']
  %s0 = inlined_call_operand.vmem [shape: bf16[2,6,10,10,4], index: 0, kind: input, shape index: {}]
  %s1 = inlined_call_operand.vmem [shape: bf16[4,16], index: 1, kind: input, shape index: {}]
  %s2 = inlined_call_operand.vmem [shape: f32[1,16], index: 2, kind: input, shape index: {}]
  %s3 = inlined_call_operand.vmem [shape: bf16[3,9,4,8], index: 3, kind: input, shape index: {}]
  %s4 = inlined_call_operand.vmem [shape: f32[1,8], index: 4, kind: input, shape index: {}]
  %s5 = inlined_call_operand.vmem [shape: bf16[3,9,4,8], index: 5, kind: input, shape index: {}]
  %s6 = inlined_call_operand.vmem [shape: f32[1,8], index: 6, kind: input, shape index: {}]
  %s7 = inlined_call_operand.vmem [shape: bf16[4,4], index: 7, kind: input, shape index: {}]
  %s8 = inlined_call_operand.vmem [shape: f32[1,4], index: 8, kind: input, shape index: {}]
  %s9 = inlined_call_operand.hbm [shape: f32[2,4,64,28], index: 9, kind: output, shape index: {}]
  %s10 = sld [smem:[#allocation0]]
  $region85: #{inception_forward.1} parent=0
    _
  %s12 = ssub.s32 1, %s10
  %s13 = scalar_select 0, %s12, %s10
  $region1: #{inception_forward.1} parent=0
    #allocation7 [shape = 'u8[65536]{0}', space=vmem, size = 0x10000, scoped, tag = 'output window, operand 0']
    #allocation8 [shape = 's32[2]{0}', space=sflag, size = 0x8, scoped, tag = 'scoped memory for inception_forward.1']
    %14 = vsyncpa [#allocation8], 0
    %s15 = scalar_lea.sflag [#allocation8], 1
    %16 = vsyncpa %s15, 0
    loop: start=0, step=1, limit=26
    $region2: #{inception_forward.1} parent=1 // loop_pre_header
      _
    $region3: #{inception_forward.1} parent=1 // loop_header
      %s18 = sphi 0, %s22
      %p19 = scmp.ge.s32.totalorder %s18, 26
      %s25 = sphi 0, %s44
      %s26 = sphi 0, %s40
      %s27 = sphi 0, %s36
      %s28 = sphi 0, %s25
      %s29 = sphi 0, %s26
      %s30 = sphi 0, %s27
      %s31 = sphi 0, %s28
      %s32 = sphi 0, %s29
      %s33 = sphi 0, %s30
      %s51 = sphi 0, %s53
      %s54 = sphi 0, %s51
      %s55 = sphi 0, %s54
      %s71 = sphi 0, %s55
      %s75 = sphi 0, %s75
      %s77 = sphi 0, %s75
      %s78 = sphi 0, %s77
      %s92 = sphi 0, %s78
      %s96 = sphi 0, %s96
      %s98 = sphi 0, %s96
      %s99 = sphi 0, %s98
      %s113 = sphi 0, %s99
      %s117 = sphi 0, %s117
      %s119 = sphi 0, %s117
      %s120 = sphi 0, %s119
      %s134 = sphi 0, %s120
      %s138 = sphi 0, %s138
      %s140 = sphi 0, %s138
      %s141 = sphi 0, %s140
      %s155 = sphi 0, %s141
      %s159 = sphi 0, %s159
      %s161 = sphi 0, %s159
      %s162 = sphi 0, %s161
      %s176 = sphi 0, %s162
      %s180 = sphi 0, %s180
      %s182 = sphi 0, %s180
      %s183 = sphi 0, %s182
      %s197 = sphi 0, %s183
      %s201 = sphi 0, %s201
      %s203 = sphi 0, %s201
      %s204 = sphi 0, %s203
      %s218 = sphi 0, %s204
      %s222 = sphi 0, %s222
      %s224 = sphi 0, %s222
      %s225 = sphi 0, %s224
      %s239 = sphi 0, %s225
      %s247 = sphi 0, %s249
      %s250 = sphi 0, %s247
      %s251 = sphi 0, %s250
      %s267 = sphi 0, %s251
    $region4: #{inception_forward.1} parent=1 // loop_header_branch
      %21 = sbr.rel (%p19) target = $region8
    $region5: #{inception_forward.1} parent=1 // loop_body
      %s23 = ssub.s32 %s18, 1
      %s24 = ssub.s32 %s18, 2
      %s34 = sadd.s32 1, %s27
      %p35 = scmp.ge.s32.totalorder %s34, 3
      %s36 = scalar_select %p35, 0, %s34
      %s37 = sadd.s32 1, %s26
      %s38 = scalar_select %p35, %s37, %s26
      %p39 = scmp.ge.s32.totalorder %s38, 4
      %s40 = scalar_select %p39, 0, %s38
      %s41 = sadd.s32 1, %s25
      %s42 = scalar_select %p39, %s41, %s25
      %p43 = scmp.ge.s32.totalorder %s42, 2
      %s44 = scalar_select %p43, 0, %s42
      %s45 = sadd.s32 %s26, %s27
      %s46 = sadd.s32 %s40, %s36
      %s47 = ssub.s32 %s25, %s44
      %s48 = ssub.s32 %s45, %s46
      %s49 = sor.u32 %s47, %s48
      %p50 = scmp.eq.s32.totalorder %s49, 0
      %s52 = sadd.s32 %s51, 1
      %s53 = scalar_select %p50, %s51, %s52
      %p56 = pneg %p50
      %p57 = scmp.eq.s32.totalorder %s18, 23
      %p58 = por %p56, %p57
      %p59 = scmp.ne.s32.totalorder %s51, %s54
      %p60 = scmp.eq.s32.totalorder %s18, 0
      %p61 = por %p59, %p60
      %p62 = scmp.ne.s32.totalorder %s51, %s54
      %p63 = scmp.eq.s32.totalorder %s23, 23
      %p64 = por %p62, %p63
      %p65 = scmp.ne.s32.totalorder %s54, %s55
      %p66 = scmp.eq.s32.totalorder %s23, 0
      %p67 = por %p65, %p66
      %p68 = scmp.ne.s32.totalorder %s54, %s55
      %p69 = scmp.eq.s32.totalorder %s24, 23
      %p70 = por %p68, %p69
      %p72 = scmp.ne.s32.totalorder %s55, %s71
      %p73 = scmp.eq.s32.totalorder %s24, 0
      %p74 = por %p72, %p73
      %s76 = sadd.s32 %s75, 1
      %p79 = scmp.eq.s32.totalorder %s18, 23
      %p80 = scmp.ne.s32.totalorder %s75, %s77
      %p81 = scmp.eq.s32.totalorder %s18, 0
      %p82 = por %p80, %p81
      %p83 = scmp.ne.s32.totalorder %s75, %s77
      %p84 = scmp.eq.s32.totalorder %s23, 23
      %p85 = por %p83, %p84
      %p86 = scmp.ne.s32.totalorder %s77, %s78
      %p87 = scmp.eq.s32.totalorder %s23, 0
      %p88 = por %p86, %p87
      %p89 = scmp.ne.s32.totalorder %s77, %s78
      %p90 = scmp.eq.s32.totalorder %s24, 23
      %p91 = por %p89, %p90
      %p93 = scmp.ne.s32.totalorder %s78, %s92
      %p94 = scmp.eq.s32.totalorder %s24, 0
      %p95 = por %p93, %p94
      %s97 = sadd.s32 %s96, 1
      %p100 = scmp.eq.s32.totalorder %s18, 23
      %p101 = scmp.ne.s32.totalorder %s96, %s98
      %p102 = scmp.eq.s32.totalorder %s18, 0
      %p103 = por %p101, %p102
      %p104 = scmp.ne.s32.totalorder %s96, %s98
      %p105 = scmp.eq.s32.totalorder %s23, 23
      %p106 = por %p104, %p105
      %p107 = scmp.ne.s32.totalorder %s98, %s99
      %p108 = scmp.eq.s32.totalorder %s23, 0
      %p109 = por %p107, %p108
      %p110 = scmp.ne.s32.totalorder %s98, %s99
      %p111 = scmp.eq.s32.totalorder %s24, 23
      %p112 = por %p110, %p111
      %p114 = scmp.ne.s32.totalorder %s99, %s113
      %p115 = scmp.eq.s32.totalorder %s24, 0
      %p116 = por %p114, %p115
      %s118 = sadd.s32 %s117, 1
      %p121 = scmp.eq.s32.totalorder %s18, 23
      %p122 = scmp.ne.s32.totalorder %s117, %s119
      %p123 = scmp.eq.s32.totalorder %s18, 0
      %p124 = por %p122, %p123
      %p125 = scmp.ne.s32.totalorder %s117, %s119
      %p126 = scmp.eq.s32.totalorder %s23, 23
      %p127 = por %p125, %p126
      %p128 = scmp.ne.s32.totalorder %s119, %s120
      %p129 = scmp.eq.s32.totalorder %s23, 0
      %p130 = por %p128, %p129
      %p131 = scmp.ne.s32.totalorder %s119, %s120
      %p132 = scmp.eq.s32.totalorder %s24, 23
      %p133 = por %p131, %p132
      %p135 = scmp.ne.s32.totalorder %s120, %s134
      %p136 = scmp.eq.s32.totalorder %s24, 0
      %p137 = por %p135, %p136
      %s139 = sadd.s32 %s138, 1
      %p142 = scmp.eq.s32.totalorder %s18, 23
      %p143 = scmp.ne.s32.totalorder %s138, %s140
      %p144 = scmp.eq.s32.totalorder %s18, 0
      %p145 = por %p143, %p144
      %p146 = scmp.ne.s32.totalorder %s138, %s140
      %p147 = scmp.eq.s32.totalorder %s23, 23
      %p148 = por %p146, %p147
      %p149 = scmp.ne.s32.totalorder %s140, %s141
      %p150 = scmp.eq.s32.totalorder %s23, 0
      %p151 = por %p149, %p150
      %p152 = scmp.ne.s32.totalorder %s140, %s141
      %p153 = scmp.eq.s32.totalorder %s24, 23
      %p154 = por %p152, %p153
      %p156 = scmp.ne.s32.totalorder %s141, %s155
      %p157 = scmp.eq.s32.totalorder %s24, 0
      %p158 = por %p156, %p157
      %s160 = sadd.s32 %s159, 1
      %p163 = scmp.eq.s32.totalorder %s18, 23
      %p164 = scmp.ne.s32.totalorder %s159, %s161
      %p165 = scmp.eq.s32.totalorder %s18, 0
      %p166 = por %p164, %p165
      %p167 = scmp.ne.s32.totalorder %s159, %s161
      %p168 = scmp.eq.s32.totalorder %s23, 23
      %p169 = por %p167, %p168
      %p170 = scmp.ne.s32.totalorder %s161, %s162
      %p171 = scmp.eq.s32.totalorder %s23, 0
      %p172 = por %p170, %p171
      %p173 = scmp.ne.s32.totalorder %s161, %s162
      %p174 = scmp.eq.s32.totalorder %s24, 23
      %p175 = por %p173, %p174
      %p177 = scmp.ne.s32.totalorder %s162, %s176
      %p178 = scmp.eq.s32.totalorder %s24, 0
      %p179 = por %p177, %p178
      %s181 = sadd.s32 %s180, 1
      %p184 = scmp.eq.s32.totalorder %s18, 23
      %p185 = scmp.ne.s32.totalorder %s180, %s182
      %p186 = scmp.eq.s32.totalorder %s18, 0
      %p187 = por %p185, %p186
      %p188 = scmp.ne.s32.totalorder %s180, %s182
      %p189 = scmp.eq.s32.totalorder %s23, 23
      %p190 = por %p188, %p189
      %p191 = scmp.ne.s32.totalorder %s182, %s183
      %p192 = scmp.eq.s32.totalorder %s23, 0
      %p193 = por %p191, %p192
      %p194 = scmp.ne.s32.totalorder %s182, %s183
      %p195 = scmp.eq.s32.totalorder %s24, 23
      %p196 = por %p194, %p195
      %p198 = scmp.ne.s32.totalorder %s183, %s197
      %p199 = scmp.eq.s32.totalorder %s24, 0
      %p200 = por %p198, %p199
      %s202 = sadd.s32 %s201, 1
      %p205 = scmp.eq.s32.totalorder %s18, 23
      %p206 = scmp.ne.s32.totalorder %s201, %s203
      %p207 = scmp.eq.s32.totalorder %s18, 0
      %p208 = por %p206, %p207
      %p209 = scmp.ne.s32.totalorder %s201, %s203
      %p210 = scmp.eq.s32.totalorder %s23, 23
      %p211 = por %p209, %p210
      %p212 = scmp.ne.s32.totalorder %s203, %s204
      %p213 = scmp.eq.s32.totalorder %s23, 0
      %p214 = por %p212, %p213
      %p215 = scmp.ne.s32.totalorder %s203, %s204
      %p216 = scmp.eq.s32.totalorder %s24, 23
      %p217 = por %p215, %p216
      %p219 = scmp.ne.s32.totalorder %s204, %s218
      %p220 = scmp.eq.s32.totalorder %s24, 0
      %p221 = por %p219, %p220
      %s223 = sadd.s32 %s222, 1
      %p226 = scmp.eq.s32.totalorder %s18, 23
      %p227 = scmp.ne.s32.totalorder %s222, %s224
      %p228 = scmp.eq.s32.totalorder %s18, 0
      %p229 = por %p227, %p228
      %p230 = scmp.ne.s32.totalorder %s222, %s224
      %p231 = scmp.eq.s32.totalorder %s23, 23
      %p232 = por %p230, %p231
      %p233 = scmp.ne.s32.totalorder %s224, %s225
      %p234 = scmp.eq.s32.totalorder %s23, 0
      %p235 = por %p233, %p234
      %p236 = scmp.ne.s32.totalorder %s224, %s225
      %p237 = scmp.eq.s32.totalorder %s24, 23
      %p238 = por %p236, %p237
      %p240 = scmp.ne.s32.totalorder %s225, %s239
      %p241 = scmp.eq.s32.totalorder %s24, 0
      %p242 = por %p240, %p241
      %s243 = ssub.s32 %s25, %s44
      %s244 = ssub.s32 %s26, %s40
      %s245 = sor.u32 %s243, %s244
      %p246 = scmp.eq.s32.totalorder %s245, 0
      %s248 = sadd.s32 %s247, 1
      %s249 = scalar_select %p246, %s247, %s248
      %p252 = pneg %p246
      %p253 = scmp.eq.s32.totalorder %s18, 23
      %p254 = por %p252, %p253
      %p255 = scmp.ne.s32.totalorder %s247, %s250
      %p256 = scmp.eq.s32.totalorder %s18, 0
      %p257 = por %p255, %p256
      %p258 = scmp.ne.s32.totalorder %s247, %s250
      %p259 = scmp.eq.s32.totalorder %s23, 23
      %p260 = por %p258, %p259
      %p261 = scmp.ne.s32.totalorder %s250, %s251
      %p262 = scmp.eq.s32.totalorder %s23, 0
      %p263 = por %p261, %p262
      %p264 = scmp.ne.s32.totalorder %s250, %s251
      %p265 = scmp.eq.s32.totalorder %s24, 23
      %p266 = por %p264, %p265
      %p268 = scmp.ne.s32.totalorder %s251, %s267
      %p269 = scmp.eq.s32.totalorder %s24, 0
      %p270 = por %p268, %p269
      %p271 = scmp.le.s32.totalorder 1, %s18
      %p272 = scmp.lt.s32.totalorder %s18, 25
      %p273 = pnand %p271, %p272
      %p274 = pneg %p273
      // Predicated region
      $region9: #{inception_forward.1} parent=5 // pred_check
        _
      $region10: #{inception_forward.1} parent=5 // pred_check_branch
        %276 = sbr.rel (%p273) target = $region12
      $region11: #{inception_forward.1} parent=5 // pred_region
        %s277 = ssub.s32 %s18, 1
        // Predicated region
        $region13: #{inception_forward.1} parent=11 // pred_check
          %p278 = pneg %p88
        $region14: #{inception_forward.1} parent=11 // pred_check_branch
          %280 = sbr.rel (%p278) target = $region16
        $region15: #{inception_forward.1} parent=11 // pred_region
          _
        $region16: #{inception_forward.1} parent=11 // pred_fallthru
          _
        // Predicated region
        $region17: #{inception_forward.1} parent=11 // pred_check
          %p281 = pneg %p109
        $region18: #{inception_forward.1} parent=11 // pred_check_branch
          %283 = sbr.rel (%p281) target = $region20
        $region19: #{inception_forward.1} parent=11 // pred_region
          _
        $region20: #{inception_forward.1} parent=11 // pred_fallthru
          _
        // Predicated region
        $region21: #{inception_forward.1} parent=11 // pred_check
          %p284 = pneg %p130
        $region22: #{inception_forward.1} parent=11 // pred_check_branch
          %286 = sbr.rel (%p284) target = $region24
        $region23: #{inception_forward.1} parent=11 // pred_region
          _
        $region24: #{inception_forward.1} parent=11 // pred_fallthru
          _
        // Predicated region
        $region25: #{inception_forward.1} parent=11 // pred_check
          %p287 = pneg %p151
        $region26: #{inception_forward.1} parent=11 // pred_check_branch
          %289 = sbr.rel (%p287) target = $region28
        $region27: #{inception_forward.1} parent=11 // pred_region
          _
        $region28: #{inception_forward.1} parent=11 // pred_fallthru
          _
        // Predicated region
        $region29: #{inception_forward.1} parent=11 // pred_check
          %p290 = pneg %p172
        $region30: #{inception_forward.1} parent=11 // pred_check_branch
          %292 = sbr.rel (%p290) target = $region32
        $region31: #{inception_forward.1} parent=11 // pred_region
          _
        $region32: #{inception_forward.1} parent=11 // pred_fallthru
          _
        // Predicated region
        $region33: #{inception_forward.1} parent=11 // pred_check
          %p293 = pneg %p193
        $region34: #{inception_forward.1} parent=11 // pred_check_branch
          %295 = sbr.rel (%p293) target = $region36
        $region35: #{inception_forward.1} parent=11 // pred_region
          _
        $region36: #{inception_forward.1} parent=11 // pred_fallthru
          _
        // Predicated region
        $region37: #{inception_forward.1} parent=11 // pred_check
          %p296 = pneg %p214
        $region38: #{inception_forward.1} parent=11 // pred_check_branch
          %298 = sbr.rel (%p296) target = $region40
        $region39: #{inception_forward.1} parent=11 // pred_region
          _
        $region40: #{inception_forward.1} parent=11 // pred_fallthru
          _
        // Predicated region
        $region41: #{inception_forward.1} parent=11 // pred_check
          %p299 = pneg %p235
        $region42: #{inception_forward.1} parent=11 // pred_check_branch
          %301 = sbr.rel (%p299) target = $region44
        $region43: #{inception_forward.1} parent=11 // pred_region
          _
        $region44: #{inception_forward.1} parent=11 // pred_fallthru
          _
      $region12: #{inception_forward.1} parent=5 // pred_fallthru
        _
      %p302 = scmp.lt.s32.totalorder %s18, 24
      // Predicated region
      $region45: #{inception_forward.1} parent=5 // pred_check
        %p303 = pneg %p302
      $region46: #{inception_forward.1} parent=5 // pred_check_branch
        %305 = sbr.rel (%p303) target = $region48
      $region47: #{inception_forward.1} parent=5 // pred_region
        // Predicated region
        $region49: #{inception_forward.1} parent=47 // pred_check
          %p306 = pneg %p61
        $region50: #{inception_forward.1} parent=47 // pred_check_branch
          %308 = sbr.rel (%p306) target = $region52
        $region51: #{inception_forward.1} parent=47 // pred_region
          %s309 = sadd.s32 %s26, %s27
          %p310 = scmp.lt.s32.totalorder %s25, 1
          %s311 = scalar_select %p310, %s25, 1
          %p312 = scmp.lt.s32.totalorder %s309, 5
          %s313 = scalar_select %p312, %s309, 5
          %s314 = smul.addr %s313, 20
          %s315 = smul.addr %s311, 120
          %s316 = sadd.s32 %s314, %s315
          %s317 = smul.addr %s316, 4
          %s318 = scalar_lea.vmem %s0, %s317
          %s319 = sadd.s32 %s26, %s27
        $region52: #{inception_forward.1} parent=47 // pred_fallthru
          _
      $region48: #{inception_forward.1} parent=5 // pred_fallthru
        _
      %p320 = scmp.le.s32.totalorder 1, %s18
      %p321 = scmp.lt.s32.totalorder %s18, 25
      %p322 = pnand %p320, %p321
      %p323 = pneg %p322
      // Predicated region
      $region53: #{inception_forward.1} parent=5 // pred_check
        _
      $region54: #{inception_forward.1} parent=5 // pred_check_branch
        %325 = sbr.rel (%p322) target = $region56
      $region55: #{inception_forward.1} parent=5 // pred_region
        %s326 = ssub.s32 %s18, 1
        %s327 = sadd.s32 %s29, %s30
        %p328 = scmp.lt.s32.totalorder %s28, 1
        %s329 = scalar_select %p328, %s28, 1
        %p330 = scmp.lt.s32.totalorder %s327, 5
        %s331 = scalar_select %p330, %s327, 5
        %s332 = smul.addr %s331, 20
        %s333 = smul.addr %s329, 120
        %s334 = sadd.s32 %s332, %s333
        %s335 = smul.addr %s334, 4
        %s336 = scalar_lea.vmem %s0, %s335
        %p337 = pneg %p67
        %p338 = pneg %p64
        %p339 = pneg %p88
        %p340 = pneg %p85
        %p341 = pneg %p109
        %p342 = pneg %p106
        %p343 = pneg %p130
        %p344 = pneg %p127
        %p345 = pneg %p151
        %p346 = pneg %p148
        %p347 = pneg %p172
        %p348 = pneg %p169
        %p349 = pneg %p193
        %p350 = pneg %p190
        %p351 = pneg %p214
        %p352 = pneg %p211
        %p353 = pneg %p235
        %p354 = pneg %p232
        %p355 = pneg %p263
        %p356 = pneg %p260
        %s357 = sand.u32 %s250, 1
        %s358 = scalar_lea.sflag [#allocation8], %s357
        %s359 = sand.u32 %s250, 1
        %s360 = smul.addr %s359, 64
        %s361 = scalar_lea.vmem [#allocation7], %s360
        %s362 = sadd.s32 %s29, %s30
        %p363 = scmp.lt.s32.totalorder %s28, 1
        %s364 = scalar_select %p363, %s28, 1
        %p365 = scmp.lt.s32.totalorder %s362, 5
        %s366 = scalar_select %p365, %s362, 5
        %s367 = smul.addr %s366, 20
        %s368 = smul.addr %s364, 120
        %s369 = sadd.s32 %s367, %s368
        %s370 = smul.addr %s369, 4
        %s371 = scalar_lea.vmem %s0, %s370
        %s372 = sadd.s32 %s29, %s30
        %p375 = scmp.eq.s32.totalorder %s30, 0
        // Predicated region
        $region57: #{inception_forward.1} parent=55 // pred_check
          %p376 = pneg %p375
        $region58: #{inception_forward.1} parent=55 // pred_check_branch
          %378 = sbr.rel (%p376) target = $region60
        $region59: #{inception_forward.1} parent=55 // pred_region
          %vm379 = vcmask 64512
          %380 = vst.msk [vmem:[#allocation3] sm:$0xff] %vm379, 0.0
          %381 = vst.msk [vmem:[#allocation3 + $0x8] sm:$0xff] %vm379, 0.0
          %382 = vst.msk [vmem:[#allocation3 + $0x10] sm:$0xff] %vm379, 0.0
          %383 = vst.msk [vmem:[#allocation3 + $0x18] sm:$0xff] %vm379, 0.0
          %384 = vst.msk [vmem:[#allocation3 + $0x20] sm:$0xff] %vm379, 0.0
          %385 = vst.msk [vmem:[#allocation3 + $0x28] sm:$0xff] %vm379, 0.0
          %386 = vst.msk [vmem:[#allocation3 + $0x30] sm:$0xff] %vm379, 0.0
          %387 = vst.msk [vmem:[#allocation3 + $0x38] sm:$0xff] %vm379, 0.0
          %388 = vst.msk [vmem:[#allocation4] sm:$0xff] %vm379, 0.0
          %389 = vst.msk [vmem:[#allocation4 + $0x8] sm:$0xff] %vm379, 0.0
          %390 = vst.msk [vmem:[#allocation4 + $0x10] sm:$0xff] %vm379, 0.0
          %391 = vst.msk [vmem:[#allocation4 + $0x18] sm:$0xff] %vm379, 0.0
          %392 = vst.msk [vmem:[#allocation4 + $0x20] sm:$0xff] %vm379, 0.0
          %393 = vst.msk [vmem:[#allocation4 + $0x28] sm:$0xff] %vm379, 0.0
          %394 = vst.msk [vmem:[#allocation4 + $0x30] sm:$0xff] %vm379, 0.0
          %395 = vst.msk [vmem:[#allocation4 + $0x38] sm:$0xff] %vm379, 0.0
          %vm396 = vcmask 27648
          %397 = vst.msk [vmem:[#allocation5] sm:$0xf] %vm396, 4286644096
          %398 = vst.msk [vmem:[#allocation5 + $0x4] sm:$0xf] %vm396, 4286644096
          %399 = vst.msk [vmem:[#allocation5 + $0x8] sm:$0xf] %vm396, 4286644096
          %400 = vst.msk [vmem:[#allocation5 + $0xc] sm:$0xf] %vm396, 4286644096
          %401 = vst.msk [vmem:[#allocation5 + $0x10] sm:$0xf] %vm396, 4286644096
          %402 = vst.msk [vmem:[#allocation5 + $0x14] sm:$0xf] %vm396, 4286644096
          %403 = vst.msk [vmem:[#allocation5 + $0x18] sm:$0xf] %vm396, 4286644096
          %404 = vst.msk [vmem:[#allocation5 + $0x1c] sm:$0xf] %vm396, 4286644096
        $region60: #{inception_forward.1} parent=55 // pred_fallthru
          _
        %v405 = vld [vmem:[%s371] sm:$0xf]
        %v406 = vld [vmem:[%s371 + $0x4] sm:$0x1]
        %v407 = vld [vmem:[%s371 + $0x8] sm:$0xf]
        %v408 = vld [vmem:[%s371 + $0xc] sm:$0x1]
        %v409 = vld [vmem:[%s371 + $0x10] sm:$0xf]
        %v410 = vld [vmem:[%s371 + $0x14] sm:$0x1]
        %v411 = vld [vmem:[%s371 + $0x18] sm:$0xf]
        %v412 = vld [vmem:[%s371 + $0x1c] sm:$0x1]
        %v413 = vld [vmem:[%s371 + $0x20] sm:$0xf]
        %v414 = vld [vmem:[%s371 + $0x24] sm:$0x1]
        %v415 = vld [vmem:[%s371 + $0x28] sm:$0xf]
        %v416 = vld [vmem:[%s371 + $0x2c] sm:$0x1]
        %v417 = vld [vmem:[%s371 + $0x30] sm:$0xf]
        %v418 = vld [vmem:[%s371 + $0x34] sm:$0x1]
        %v419 = vld [vmem:[%s371 + $0x38] sm:$0xf]
        %v420 = vld [vmem:[%s371 + $0x3c] sm:$0x1]
        %v421 = vld [vmem:[%s371 + $0x40] sm:$0xf]
        %v422 = vld [vmem:[%s371 + $0x44] sm:$0x1]
        %v423 = vld [vmem:[%s371 + $0x48] sm:$0xf]
        %v424 = vld [vmem:[%s371 + $0x4c] sm:$0x1]
        %vm425 = vsmask.f32 3328
        %vm426 = vsmask.f32 7440
        %vm427 = vmor %vm425, %vm426
        %v429 = vshrl.u32 %v405, 16
        %v431 = vrot.slane %v429, 4
        %v432 = vshll.u32 %v405, 16
        %v434 = vrot.slane %v432, 5
        %v435 = vor.u32 %v431, %v434
        %v436 = vrot.slane %v435, 4
        %v438 = vshll.u32 %v406, 16
        %v440 = vrot.slane %v438, 5
        %v441 = vsel %vm427, %v436, %v440
        %v443 = vshrl.u32 %v407, 16
        %v445 = vrot.slane %v443, 4
        %v446 = vshll.u32 %v407, 16
        %v448 = vrot.slane %v446, 5
        %v449 = vor.u32 %v445, %v448
        %v450 = vrot.slane %v449, 4
        %v452 = vshll.u32 %v408, 16
        %v454 = vrot.slane %v452, 5
        %v455 = vsel %vm427, %v450, %v454
        %v457 = vshrl.u32 %v409, 16
        %v459 = vrot.slane %v457, 4
        %v460 = vshll.u32 %v409, 16
        %v462 = vrot.slane %v460, 5
        %v463 = vor.u32 %v459, %v462
        %v464 = vrot.slane %v463, 4
        %v466 = vshll.u32 %v410, 16
        %v468 = vrot.slane %v466, 5
        %v469 = vsel %vm427, %v464, %v468
        %v471 = vshrl.u32 %v411, 16
        %v473 = vrot.slane %v471, 4
        %v474 = vshll.u32 %v411, 16
        %v476 = vrot.slane %v474, 5
        %v477 = vor.u32 %v473, %v476
        %v478 = vrot.slane %v477, 4
        %v480 = vshll.u32 %v412, 16
        %v482 = vrot.slane %v480, 5
        %v483 = vsel %vm427, %v478, %v482
        %v485 = vshrl.u32 %v413, 16
        %v487 = vrot.slane %v485, 4
        %v488 = vshll.u32 %v413, 16
        %v490 = vrot.slane %v488, 5
        %v491 = vor.u32 %v487, %v490
        %v492 = vrot.slane %v491, 4
        %v494 = vshll.u32 %v414, 16
        %v496 = vrot.slane %v494, 5
        %v497 = vsel %vm427, %v492, %v496
        %v499 = vshrl.u32 %v415, 16
        %v501 = vrot.slane %v499, 4
        %v502 = vshll.u32 %v415, 16
        %v504 = vrot.slane %v502, 5
        %v505 = vor.u32 %v501, %v504
        %v506 = vrot.slane %v505, 4
        %v508 = vshll.u32 %v416, 16
        %v510 = vrot.slane %v508, 5
        %v511 = vsel %vm427, %v506, %v510
        %v513 = vshrl.u32 %v417, 16
        %v515 = vrot.slane %v513, 4
        %v516 = vshll.u32 %v417, 16
        %v518 = vrot.slane %v516, 5
        %v519 = vor.u32 %v515, %v518
        %v520 = vrot.slane %v519, 4
        %v522 = vshll.u32 %v418, 16
        %v524 = vrot.slane %v522, 5
        %v525 = vsel %vm427, %v520, %v524
        %v527 = vshrl.u32 %v419, 16
        %v529 = vrot.slane %v527, 4
        %v530 = vshll.u32 %v419, 16
        %v532 = vrot.slane %v530, 5
        %v533 = vor.u32 %v529, %v532
        %v534 = vrot.slane %v533, 4
        %v536 = vshll.u32 %v420, 16
        %v538 = vrot.slane %v536, 5
        %v539 = vsel %vm427, %v534, %v538
        %v548 = vmax.bf16 %v405, %v441
        %v549 = vmax.bf16 %v407, %v455
        %v550 = vmax.bf16 %v409, %v469
        %v551 = vmax.bf16 %v411, %v483
        %v552 = vmax.bf16 %v413, %v497
        %v553 = vmax.bf16 %v415, %v511
        %v554 = vmax.bf16 %v417, %v525
        %v555 = vmax.bf16 %v419, %v539
        %vm572 = vcmask 1042432
        %vm573 = vcmask 1046532
        %vm574 = vmor %vm572, %vm573
        %v575 = vrot.slane %v405, 5
        %v576 = vrot.slane %v575, 4
        %v577 = vrot.slane %v406, 5
        %v578 = vsel %vm574, %v576, %v577
        %v579 = vrot.slane %v407, 5
        %v580 = vrot.slane %v579, 4
        %v581 = vrot.slane %v408, 5
        %v582 = vsel %vm574, %v580, %v581
        %v583 = vrot.slane %v409, 5
        %v584 = vrot.slane %v583, 4
        %v585 = vrot.slane %v410, 5
        %v586 = vsel %vm574, %v584, %v585
        %v587 = vrot.slane %v411, 5
        %v588 = vrot.slane %v587, 4
        %v589 = vrot.slane %v412, 5
        %v590 = vsel %vm574, %v588, %v589
        %v591 = vrot.slane %v413, 5
        %v592 = vrot.slane %v591, 4
        %v593 = vrot.slane %v414, 5
        %v594 = vsel %vm574, %v592, %v593
        %v595 = vrot.slane %v415, 5
        %v596 = vrot.slane %v595, 4
        %v597 = vrot.slane %v416, 5
        %v598 = vsel %vm574, %v596, %v597
        %v599 = vrot.slane %v417, 5
        %v600 = vrot.slane %v599, 4
        %v601 = vrot.slane %v418, 5
        %v602 = vsel %vm574, %v600, %v601
        %v603 = vrot.slane %v419, 5
        %v604 = vrot.slane %v603, 4
        %v605 = vrot.slane %v420, 5
        %v606 = vsel %vm574, %v604, %v605
        %v615 = vmax.bf16 %v548, %v578
        %v616 = vmax.bf16 %v549, %v582
        %v617 = vmax.bf16 %v550, %v586
        %v618 = vmax.bf16 %v551, %v590
        %v619 = vmax.bf16 %v552, %v594
        %v620 = vmax.bf16 %v553, %v598
        %v621 = vmax.bf16 %v554, %v602
        %v622 = vmax.bf16 %v555, %v606
        %v623 = vmax.bf16 %v615, %v407
        %v624 = vmax.bf16 %v616, %v409
        %v625 = vmax.bf16 %v617, %v411
        %v626 = vmax.bf16 %v618, %v413
        %v627 = vmax.bf16 %v619, %v415
        %v628 = vmax.bf16 %v620, %v417
        %v629 = vmax.bf16 %v621, %v419
        %v630 = vmax.bf16 %v622, %v421
        %v632 = vshrl.u32 %v421, 16
        %v634 = vrot.slane %v632, 4
        %v635 = vshll.u32 %v421, 16
        %v637 = vrot.slane %v635, 5
        %v638 = vor.u32 %v634, %v637
        %v639 = vrot.slane %v638, 4
        %v641 = vshll.u32 %v422, 16
        %v643 = vrot.slane %v641, 5
        %v644 = vsel %vm427, %v639, %v643
        %v646 = vmax.bf16 %v623, %v455
        %v647 = vmax.bf16 %v624, %v469
        %v648 = vmax.bf16 %v625, %v483
        %v649 = vmax.bf16 %v626, %v497
        %v650 = vmax.bf16 %v627, %v511
        %v651 = vmax.bf16 %v628, %v525
        %v652 = vmax.bf16 %v629, %v539
        %v653 = vmax.bf16 %v630, %v644
        %v656 = vrot.slane %v421, 5
        %v657 = vrot.slane %v656, 4
        %v658 = vrot.slane %v422, 5
        %v659 = vsel %vm574, %v657, %v658
        %v661 = vmax.bf16 %v646, %v582
        %v662 = vmax.bf16 %v647, %v586
        %v663 = vmax.bf16 %v648, %v590
        %v664 = vmax.bf16 %v649, %v594
        %v665 = vmax.bf16 %v650, %v598
        %v666 = vmax.bf16 %v651, %v602
        %v667 = vmax.bf16 %v652, %v606
        %v668 = vmax.bf16 %v653, %v659
        %v669 = vmax.bf16 %v661, %v409
        %v670 = vmax.bf16 %v662, %v411
        %v671 = vmax.bf16 %v663, %v413
        %v672 = vmax.bf16 %v664, %v415
        %v673 = vmax.bf16 %v665, %v417
        %v674 = vmax.bf16 %v666, %v419
        %v675 = vmax.bf16 %v667, %v421
        %v676 = vmax.bf16 %v668, %v423
        %v678 = vshrl.u32 %v423, 16
        %v680 = vrot.slane %v678, 4
        %v681 = vshll.u32 %v423, 16
        %v683 = vrot.slane %v681, 5
        %v684 = vor.u32 %v680, %v683
        %v685 = vrot.slane %v684, 4
        %v687 = vshll.u32 %v424, 16
        %v689 = vrot.slane %v687, 5
        %v690 = vsel %vm427, %v685, %v689
        %v692 = vmax.bf16 %v669, %v469
        %v693 = vmax.bf16 %v670, %v483
        %v694 = vmax.bf16 %v671, %v497
        %v695 = vmax.bf16 %v672, %v511
        %v696 = vmax.bf16 %v673, %v525
        %v697 = vmax.bf16 %v674, %v539
        %v698 = vmax.bf16 %v675, %v644
        %v699 = vmax.bf16 %v676, %v690
        %v702 = vrot.slane %v423, 5
        %v703 = vrot.slane %v702, 4
        %v704 = vrot.slane %v424, 5
        %v705 = vsel %vm574, %v703, %v704
        %v707 = vmax.bf16 %v692, %v586
        %v708 = vmax.bf16 %v693, %v590
        %v709 = vmax.bf16 %v694, %v594
        %v710 = vmax.bf16 %v695, %v598
        %v711 = vmax.bf16 %v696, %v602
        %v712 = vmax.bf16 %v697, %v606
        %v713 = vmax.bf16 %v698, %v659
        %v714 = vmax.bf16 %v699, %v705
        %v715 = vld [vmem:[#allocation5] sm:$0xf]
        %v716 = vld [vmem:[#allocation5 + $0x4] sm:$0xf]
        %v717 = vld [vmem:[#allocation5 + $0x8] sm:$0xf]
        %v718 = vld [vmem:[#allocation5 + $0xc] sm:$0xf]
        %v719 = vld [vmem:[#allocation5 + $0x10] sm:$0xf]
        %v720 = vld [vmem:[#allocation5 + $0x14] sm:$0xf]
        %v721 = vld [vmem:[#allocation5 + $0x18] sm:$0xf]
        %v722 = vld [vmem:[#allocation5 + $0x1c] sm:$0xf]
        %v723 = vmax.bf16 %v715, %v707
        %v724 = vmax.bf16 %v716, %v708
        %v725 = vmax.bf16 %v717, %v709
        %v726 = vmax.bf16 %v718, %v710
        %v727 = vmax.bf16 %v719, %v711
        %v728 = vmax.bf16 %v720, %v712
        %v729 = vmax.bf16 %v721, %v713
        %v730 = vmax.bf16 %v722, %v714
        %vm731 = vcmask 27648
        %732 = vst.msk [vmem:[#allocation5] sm:$0xf] %vm731, %v723
        %733 = vst.msk [vmem:[#allocation5 + $0x4] sm:$0xf] %vm731, %v724
        %734 = vst.msk [vmem:[#allocation5 + $0x8] sm:$0xf] %vm731, %v725
        %735 = vst.msk [vmem:[#allocation5 + $0xc] sm:$0xf] %vm731, %v726
        %736 = vst.msk [vmem:[#allocation5 + $0x10] sm:$0xf] %vm731, %v727
        %737 = vst.msk [vmem:[#allocation5 + $0x14] sm:$0xf] %vm731, %v728
        %738 = vst.msk [vmem:[#allocation5 + $0x18] sm:$0xf] %vm731, %v729
        %739 = vst.msk [vmem:[#allocation5 + $0x1c] sm:$0xf] %vm731, %v730
        %s740 = sadd.s32 %s29, %s30
        %p741 = scmp.gt.s32.totalorder %s740, 0
        %p742 = scmp.lt.s32.totalorder %s740, 5
        %p743 = pnand %p741, %p742
        %p744 = pneg %p743
        // Predicated region
        $region61: #{inception_forward.1} parent=55 // pred_check
          _
        $region62: #{inception_forward.1} parent=55 // pred_check_branch
          %746 = sbr.rel (%p743) target = $region64
        $region63: #{inception_forward.1} parent=55 // pred_region
          %v747 = vld [vmem:[%s1] sm:$0x3]
          %v748 = vld [vmem:[%s2] sm:$0x1]
          %v750 = vlaneseq
          %v751 = vshrl.u32 %v750, 7
          %v752 = vsub.s32 0, %v751
          %v753 = vrot.slane %v748, %v752
          %v755 = vunpack.c.l.b16 %v455
          %v756 = vunpack.c.l.b16 %v469
          %v757 = vunpack.c.l.b16 %v483
          %v758 = vunpack.c.l.b16 %v497
          %v759 = vunpack.c.l.b16 %v511
          %v760 = vunpack.c.l.b16 %v525
          %v761 = vunpack.c.l.b16 %v539
          %v762 = vunpack.c.l.b16 %v644
          %v763 = vpack.c.b16 %v756, %v755
          %v764 = vpack.c.b16 %v758, %v757
          %v765 = vpack.c.b16 %v760, %v759
          %v766 = vpack.c.b16 %v762, %v761
          %vm767 = vcmask 31744
          %v769 = vsel %vm767, %v763, 0
          %v772 = vsel %vm767, %v764, 0
          %v775 = vsel %vm767, %v765, 0
          %v778 = vsel %vm767, %v766, 0
          %vm780 = vcmask 1041408
          %v782 = vsel %vm780, %v747, 0
          %784 = vmatprep.subr.bf16.mxu0 0
          %785 = vmatpush1.bf16.msra.mxu0 %v782
          %786 = vmatprep.subr.bf16.mxu0 0
          %787 = vmatpush1.bf16.msra.mxu0 0
          %788 = vmatprep.subr.bf16.mxu0 0
          %789 = vmatpush1.bf16.msra.mxu0 0
          %790 = vmatprep.subr.bf16.mxu0 0
          %791 = vmatpush1.bf16.msra.mxu0 0
          %792 = vmatprep.subr.bf16.mxu0 0
          %793 = vmatpush1.bf16.msra.mxu0 0
          %794 = vmatprep.subr.bf16.mxu0 0
          %795 = vmatpush1.bf16.msra.mxu0 0
          %796 = vmatprep.subr.bf16.mxu0 0
          %797 = vmatpush1.bf16.msra.mxu0 0
          %798 = vmatprep.subr.bf16.mxu0 0
          %799 = vmatpush1.bf16.msra.mxu0 0
          %800 = vmatprep.subr.bf16.mxu0 0
          %801 = vmatpush1.bf16.msra.mxu0 0
          %802 = vmatprep.subr.bf16.mxu0 0
          %803 = vmatpush1.bf16.msra.mxu0 0
          %804 = vmatprep.subr.bf16.mxu0 0
          %805 = vmatpush1.bf16.msra.mxu0 0
          %806 = vmatprep.subr.bf16.mxu0 0
          %807 = vmatpush1.bf16.msra.mxu0 0
          %808 = vmatprep.subr.bf16.mxu0 0
          %809 = vmatpush1.bf16.msra.mxu0 0
          %810 = vmatprep.subr.bf16.mxu0 0
          %811 = vmatpush1.bf16.msra.mxu0 0
          %812 = vmatprep.subr.bf16.mxu0 0
          %813 = vmatpush1.bf16.msra.mxu0 0
          %814 = vmatprep.subr.bf16.mxu0 0
          %815 = vmatpush1.bf16.msra.mxu0 0
          %816 = vmatprep.mubr.bf16.mxu0 0
          %817 = vmatmul.mubr.bf16.gmra.mrb[0].mxu0 %v769
          %v818 = vpop.f32.mrb[0].mxu0
          %v819 = vadd.f32 %v753, %v818
          %v820 = vpop.f32.mrb[0].mxu0
          %v821 = vpop.f32.mrb[0].mxu0
          %v822 = vadd.f32 %v753, %v821
          %v823 = vpop.f32.mrb[0].mxu0
          %824 = vmatprep.mubr.bf16.mxu0 0
          %825 = vmatmul.mubr.bf16.gmra.mrb[0].mxu0 %v772
          %v826 = vpop.f32.mrb[0].mxu0
          %v827 = vadd.f32 %v753, %v826
          %v828 = vpop.f32.mrb[0].mxu0
          %v829 = vpop.f32.mrb[0].mxu0
          %v830 = vadd.f32 %v753, %v829
          %v831 = vpop.f32.mrb[0].mxu0
          %832 = vmatprep.mubr.bf16.mxu0 0
          %833 = vmatmul.mubr.bf16.gmra.mrb[0].mxu0 %v775
          %v834 = vpop.f32.mrb[0].mxu0
          %v835 = vadd.f32 %v753, %v834
          %v836 = vpop.f32.mrb[0].mxu0
          %v837 = vpop.f32.mrb[0].mxu0
          %v838 = vadd.f32 %v753, %v837
          %v839 = vpop.f32.mrb[0].mxu0
          %840 = vmatprep.mubr.bf16.mxu0 0
          %841 = vmatmul.mubr.bf16.gmra.mrb[0].mxu0 %v778
          %v842 = vpop.f32.mrb[0].mxu0
          %v843 = vadd.f32 %v753, %v842
          %v844 = vpop.f32.mrb[0].mxu0
          %v845 = vpop.f32.mrb[0].mxu0
          %v846 = vadd.f32 %v753, %v845
          %v847 = vpop.f32.mrb[0].mxu0
          %848 = vdwg.mxu0
          %v849 = vmax.f32 %v819, 0.0
          %v850 = vmax.f32 %v822, 0.0
          %v851 = vmax.f32 %v827, 0.0
          %v852 = vmax.f32 %v830, 0.0
          %v853 = vmax.f32 %v835, 0.0
          %v854 = vmax.f32 %v838, 0.0
          %v855 = vmax.f32 %v843, 0.0
          %v856 = vmax.f32 %v846, 0.0
          %p857 = scmp.eq.s32.totalorder %s30, 1
          // Predicated region
          $region65: #{inception_forward.1} parent=63 // pred_check
            %p858 = pneg %p857
          $region66: #{inception_forward.1} parent=63 // pred_check_branch
            %860 = sbr.rel (%p858) target = $region68
          $region67: #{inception_forward.1} parent=63 // pred_region
            %vm861 = vcmask 64512
            %862 = vst.msk [vmem:[#allocation2] sm:$0xff] %vm861, %v849
            %863 = vst.msk [vmem:[#allocation2 + $0x8] sm:$0xff] %vm861, %v850
            %864 = vst.msk [vmem:[#allocation2 + $0x10] sm:$0xff] %vm861, %v851
            %865 = vst.msk [vmem:[#allocation2 + $0x18] sm:$0xff] %vm861, %v852
            %866 = vst.msk [vmem:[#allocation2 + $0x20] sm:$0xff] %vm861, %v853
            %867 = vst.msk [vmem:[#allocation2 + $0x28] sm:$0xff] %vm861, %v854
            %868 = vst.msk [vmem:[#allocation2 + $0x30] sm:$0xff] %vm861, %v855
            %869 = vst.msk [vmem:[#allocation2 + $0x38] sm:$0xff] %vm861, %v856
          $region68: #{inception_forward.1} parent=63 // pred_fallthru
            _
          %vm870 = vcmask 60416
          %871 = vst.msk [vmem:[#allocation6] sm:$0xf] %vm870, 0
          %vm872 = vcmask 57344
          %873 = vst.msk [vmem:[#allocation6 + $0x4] sm:$0x1] %vm872, 0
          %874 = vst.msk [vmem:[#allocation6 + $0x8] sm:$0xf] %vm870, 0
          %875 = vst.msk [vmem:[#allocation6 + $0xc] sm:$0x1] %vm872, 0
          %876 = vst.msk [vmem:[#allocation6 + $0x10] sm:$0xf] %vm870, 0
          %877 = vst.msk [vmem:[#allocation6 + $0x14] sm:$0x1] %vm872, 0
          %878 = vst.msk [vmem:[#allocation6 + $0x18] sm:$0xf] %vm870, 0
          %879 = vst.msk [vmem:[#allocation6 + $0x1c] sm:$0x1] %vm872, 0
          %880 = vst.msk [vmem:[#allocation6 + $0x20] sm:$0xf] %vm870, 0
          %881 = vst.msk [vmem:[#allocation6 + $0x24] sm:$0x1] %vm872, 0
          %882 = vst.msk [vmem:[#allocation6 + $0x28] sm:$0xf] %vm870, 0
          %883 = vst.msk [vmem:[#allocation6 + $0x2c] sm:$0x1] %vm872, 0
          %884 = vst.msk [vmem:[#allocation6 + $0x30] sm:$0xf] %vm870, 0
          %885 = vst.msk [vmem:[#allocation6 + $0x34] sm:$0x1] %vm872, 0
          %886 = vst.msk [vmem:[#allocation6 + $0x38] sm:$0xf] %vm870, 0
          %887 = vst.msk [vmem:[#allocation6 + $0x3c] sm:$0x1] %vm872, 0
          %888 = vst.msk [vmem:[#allocation6 + $0x40] sm:$0xf] %vm870, 0
          %889 = vst.msk [vmem:[#allocation6 + $0x44] sm:$0x1] %vm872, 0
          %890 = vst.msk [vmem:[#allocation6 + $0x48] sm:$0xf] %vm870, 0
          %891 = vst.msk [vmem:[#allocation6 + $0x4c] sm:$0x1] %vm872, 0
          %v892 = vpack.c.bf16 %v850, %v849
          %v893 = vpack.c.bf16 %v852, %v851
          %v894 = vpack.c.bf16 %v854, %v853
          %v895 = vpack.c.bf16 %v856, %v855
          %v900 = vunpack.c.l.b16 %v892
          %v901 = vunpack.c.h.b16 %v892
          %v902 = vunpack.c.l.b16 %v893
          %v903 = vunpack.c.h.b16 %v893
          %v904 = vunpack.c.l.b16 %v894
          %v905 = vunpack.c.h.b16 %v894
          %v906 = vunpack.c.l.b16 %v895
          %v907 = vunpack.c.h.b16 %v895
          %v908 = vpack.c.b16 %v900, %v900
          %v909 = vpack.c.b16 %v901, %v901
          %v910 = vpack.c.b16 %v902, %v902
          %v911 = vpack.c.b16 %v903, %v903
          %v912 = vpack.c.b16 %v904, %v904
          %v913 = vpack.c.b16 %v905, %v905
          %v914 = vpack.c.b16 %v906, %v906
          %v915 = vpack.c.b16 %v907, %v907
          %v917 = vshrl.u32 %v908, 16
          %v919 = vrot.slane %v917, 7
          %v920 = vshll.u32 %v908, 16
          %v922 = vor.u32 %v919, %v920
          %v923 = vrot.slane %v919, 4
          %v925 = vshrl.u32 %v909, 16
          %v927 = vrot.slane %v925, 7
          %v928 = vshll.u32 %v909, 16
          %v930 = vor.u32 %v927, %v928
          %v931 = vrot.slane %v927, 4
          %v933 = vshrl.u32 %v910, 16
          %v935 = vrot.slane %v933, 7
          %v936 = vshll.u32 %v910, 16
          %v938 = vor.u32 %v935, %v936
          %v939 = vrot.slane %v935, 4
          %v941 = vshrl.u32 %v911, 16
          %v943 = vrot.slane %v941, 7
          %v944 = vshll.u32 %v911, 16
          %v946 = vor.u32 %v943, %v944
          %v947 = vrot.slane %v943, 4
          %v949 = vshrl.u32 %v912, 16
          %v951 = vrot.slane %v949, 7
          %v952 = vshll.u32 %v912, 16
          %v954 = vor.u32 %v951, %v952
          %v955 = vrot.slane %v951, 4
          %v957 = vshrl.u32 %v913, 16
          %v959 = vrot.slane %v957, 7
          %v960 = vshll.u32 %v913, 16
          %v962 = vor.u32 %v959, %v960
          %v963 = vrot.slane %v959, 4
          %v965 = vshrl.u32 %v914, 16
          %v967 = vrot.slane %v965, 7
          %v968 = vshll.u32 %v914, 16
          %v970 = vor.u32 %v967, %v968
          %v971 = vrot.slane %v967, 4
          %v973 = vshrl.u32 %v915, 16
          %v975 = vrot.slane %v973, 7
          %v976 = vshll.u32 %v915, 16
          %v978 = vor.u32 %v975, %v976
          %v979 = vrot.slane %v975, 4
          %980 = vrot.lane.b32.xlu0 %v922, 120
          %v981 = vpop.permute.xlu0 %980
          %982 = vrot.lane.b32.xlu0 %v923, 120
          %v983 = vpop.permute.xlu0 %982
          %984 = vrot.lane.b32.xlu0 %v930, 120
          %v985 = vpop.permute.xlu0 %984
          %986 = vrot.lane.b32.xlu0 %v931, 120
          %v987 = vpop.permute.xlu0 %986
          %988 = vrot.lane.b32.xlu0 %v938, 120
          %v989 = vpop.permute.xlu0 %988
          %990 = vrot.lane.b32.xlu0 %v939, 120
          %v991 = vpop.permute.xlu0 %990
          %992 = vrot.lane.b32.xlu0 %v946, 120
          %v993 = vpop.permute.xlu0 %992
          %994 = vrot.lane.b32.xlu0 %v947, 120
          %v995 = vpop.permute.xlu0 %994
          %996 = vrot.lane.b32.xlu0 %v954, 120
          %v997 = vpop.permute.xlu0 %996
          %998 = vrot.lane.b32.xlu0 %v955, 120
          %v999 = vpop.permute.xlu0 %998
          %1000 = vrot.lane.b32.xlu0 %v962, 120
          %v1001 = vpop.permute.xlu0 %1000
          %1002 = vrot.lane.b32.xlu0 %v963, 120
          %v1003 = vpop.permute.xlu0 %1002
          %1004 = vrot.lane.b32.xlu0 %v970, 120
          %v1005 = vpop.permute.xlu0 %1004
          %1006 = vrot.lane.b32.xlu0 %v971, 120
          %v1007 = vpop.permute.xlu0 %1006
          %1008 = vrot.lane.b32.xlu0 %v978, 120
          %v1009 = vpop.permute.xlu0 %1008
          %1010 = vrot.lane.b32.xlu0 %v979, 120
          %v1011 = vpop.permute.xlu0 %1010
          %s1028 = scalar_lea.vmem [#allocation6], 8
          %vm1029 = vcmask 60416
          %vm1030 = vsmask.f32 7938
          %vm1031 = vmand %vm1029, %vm1030
          %v1032 = vld [vmem:[%s1028] sm:$0xf]
          %v1033 = vsel %vm1031, %v981, %v1032
          %1034 = vst [vmem:[%s1028] sm:$0xf] %v1033
          %vm1035 = vcmask 57344
          %vm1036 = vsmask.f32 256
          %vm1037 = vmand %vm1035, %vm1036
          %v1038 = vld [vmem:[%s1028 + $0x4] sm:$0x1]
          %v1039 = vsel %vm1037, %v983, %v1038
          %1040 = vst [vmem:[%s1028 + $0x4] sm:$0x1] %v1039
          %v1041 = vld [vmem:[%s1028 + $0x8] sm:$0xf]
          %v1042 = vsel %vm1031, %v985, %v1041
          %1043 = vst [vmem:[%s1028 + $0x8] sm:$0xf] %v1042
          %v1044 = vld [vmem:[%s1028 + $0xc] sm:$0x1]
          %v1045 = vsel %vm1037, %v987, %v1044
          %1046 = vst [vmem:[%s1028 + $0xc] sm:$0x1] %v1045
          %v1047 = vld [vmem:[%s1028 + $0x10] sm:$0xf]
          %v1048 = vsel %vm1031, %v989, %v1047
          %1049 = vst [vmem:[%s1028 + $0x10] sm:$0xf] %v1048
          %v1050 = vld [vmem:[%s1028 + $0x14] sm:$0x1]
          %v1051 = vsel %vm1037, %v991, %v1050
          %1052 = vst [vmem:[%s1028 + $0x14] sm:$0x1] %v1051
          %v1053 = vld [vmem:[%s1028 + $0x18] sm:$0xf]
          %v1054 = vsel %vm1031, %v993, %v1053
          %1055 = vst [vmem:[%s1028 + $0x18] sm:$0xf] %v1054
          %v1056 = vld [vmem:[%s1028 + $0x1c] sm:$0x1]
          %v1057 = vsel %vm1037, %v995, %v1056
          %1058 = vst [vmem:[%s1028 + $0x1c] sm:$0x1] %v1057
          %v1059 = vld [vmem:[%s1028 + $0x20] sm:$0xf]
          %v1060 = vsel %vm1031, %v997, %v1059
          %1061 = vst [vmem:[%s1028 + $0x20] sm:$0xf] %v1060
          %v1062 = vld [vmem:[%s1028 + $0x24] sm:$0x1]
          %v1063 = vsel %vm1037, %v999, %v1062
          %1064 = vst [vmem:[%s1028 + $0x24] sm:$0x1] %v1063
          %v1065 = vld [vmem:[%s1028 + $0x28] sm:$0xf]
          %v1066 = vsel %vm1031, %v1001, %v1065
          %1067 = vst [vmem:[%s1028 + $0x28] sm:$0xf] %v1066
          %v1068 = vld [vmem:[%s1028 + $0x2c] sm:$0x1]
          %v1069 = vsel %vm1037, %v1003, %v1068
          %1070 = vst [vmem:[%s1028 + $0x2c] sm:$0x1] %v1069
          %v1071 = vld [vmem:[%s1028 + $0x30] sm:$0xf]
          %v1072 = vsel %vm1031, %v1005, %v1071
          %1073 = vst [vmem:[%s1028 + $0x30] sm:$0xf] %v1072
          %v1074 = vld [vmem:[%s1028 + $0x34] sm:$0x1]
          %v1075 = vsel %vm1037, %v1007, %v1074
          %1076 = vst [vmem:[%s1028 + $0x34] sm:$0x1] %v1075
          %v1077 = vld [vmem:[%s1028 + $0x38] sm:$0xf]
          %v1078 = vsel %vm1031, %v1009, %v1077
          %1079 = vst [vmem:[%s1028 + $0x38] sm:$0xf] %v1078
          %v1080 = vld [vmem:[%s1028 + $0x3c] sm:$0x1]
          %v1081 = vsel %vm1037, %v1011, %v1080
          %1082 = vst [vmem:[%s1028 + $0x3c] sm:$0x1] %v1081
          %s1083 = smul.u32 %s30, 9
          %s1084 = smul.addr %s1083, 2
          %s1085 = scalar_lea.vmem %s3, %s1084
          %v1086 = vld [vmem:[%s1085] sm:$0x3]
          %v1087 = vld [vmem:[%s1085 + $0x2] sm:$0x3]
          %v1088 = vld [vmem:[%s1085 + $0x4] sm:$0x3]
          %v1089 = vld [vmem:[%s1085 + $0x6] sm:$0x3]
          %v1090 = vld [vmem:[%s1085 + $0x8] sm:$0x3]
          %v1091 = vld [vmem:[%s1085 + $0xa] sm:$0x3]
          %v1092 = vld [vmem:[%s1085 + $0xc] sm:$0x3]
          %v1093 = vld [vmem:[%s1085 + $0xe] sm:$0x3]
          %v1094 = vld [vmem:[%s1085 + $0x10] sm:$0x3]
          %s1095 = smul.addr %s1083, 2
          %s1096 = scalar_lea.vmem %s5, %s1095
          %v1097 = vld [vmem:[%s1096] sm:$0x3]
          %v1098 = vld [vmem:[%s1096 + $0x2] sm:$0x3]
          %v1099 = vld [vmem:[%s1096 + $0x4] sm:$0x3]
          %v1100 = vld [vmem:[%s1096 + $0x6] sm:$0x3]
          %v1101 = vld [vmem:[%s1096 + $0x8] sm:$0x3]
          %v1102 = vld [vmem:[%s1096 + $0xa] sm:$0x3]
          %v1103 = vld [vmem:[%s1096 + $0xc] sm:$0x3]
          %v1104 = vld [vmem:[%s1096 + $0xe] sm:$0x3]
          %v1105 = vld [vmem:[%s1096 + $0x10] sm:$0x3]
          %v1106 = vld [vmem:[#allocation3] sm:$0xff]
          %v1107 = vld [vmem:[#allocation3 + $0x8] sm:$0xff]
          %v1108 = vld [vmem:[#allocation3 + $0x10] sm:$0xff]
          %v1109 = vld [vmem:[#allocation3 + $0x18] sm:$0xff]
          %v1110 = vld [vmem:[#allocation3 + $0x20] sm:$0xff]
          %v1111 = vld [vmem:[#allocation3 + $0x28] sm:$0xff]
          %v1112 = vld [vmem:[#allocation3 + $0x30] sm:$0xff]
          %v1113 = vld [vmem:[#allocation3 + $0x38] sm:$0xff]
          %v1114 = vld [vmem:[#allocation4] sm:$0xff]
          %v1115 = vld [vmem:[#allocation4 + $0x8] sm:$0xff]
          %v1116 = vld [vmem:[#allocation4 + $0x10] sm:$0xff]
          %v1117 = vld [vmem:[#allocation4 + $0x18] sm:$0xff]
          %v1118 = vld [vmem:[#allocation4 + $0x20] sm:$0xff]
          %v1119 = vld [vmem:[#allocation4 + $0x28] sm:$0xff]
          %v1120 = vld [vmem:[#allocation4 + $0x30] sm:$0xff]
          %v1121 = vld [vmem:[#allocation4 + $0x38] sm:$0xff]
          %v1122 = vld [vmem:[#allocation6] sm:$0xf]
          %v1123 = vld [vmem:[#allocation6 + $0x8] sm:$0xf]
          %v1124 = vld [vmem:[#allocation6 + $0x10] sm:$0xf]
          %v1125 = vld [vmem:[#allocation6 + $0x18] sm:$0xf]
          %v1126 = vld [vmem:[#allocation6 + $0x20] sm:$0xf]
          %v1127 = vld [vmem:[#allocation6 + $0x28] sm:$0xf]
          %v1128 = vld [vmem:[#allocation6 + $0x30] sm:$0xf]
          %v1129 = vld [vmem:[#allocation6 + $0x38] sm:$0xf]
          %v1138 = vunpack.c.l.b16 %v1122
          %v1139 = vunpack.c.l.b16 %v1123
          %v1140 = vunpack.c.l.b16 %v1124
          %v1141 = vunpack.c.l.b16 %v1125
          %v1142 = vunpack.c.l.b16 %v1126
          %v1143 = vunpack.c.l.b16 %v1127
          %v1144 = vunpack.c.l.b16 %v1128
          %v1145 = vunpack.c.l.b16 %v1129
          %v1146 = vpack.c.b16 %v1139, %v1138
          %v1147 = vpack.c.b16 %v1141, %v1140
          %v1148 = vpack.c.b16 %v1143, %v1142
          %v1149 = vpack.c.b16 %v1145, %v1144
          %v1151 = vsel %vm767, %v1146, 0
          %v1154 = vsel %vm767, %v1147, 0
          %v1157 = vsel %vm767, %v1148, 0
          %v1160 = vsel %vm767, %v1149, 0
          %v1163 = vsel %vm780, %v1086, 0
          %1165 = vmatprep.subr.bf16.mxu0 0
          %1166 = vmatpush1.bf16.msra.mxu0 %v1163
          %1167 = vmatprep.subr.bf16.mxu0 0
          %1168 = vmatpush1.bf16.msra.mxu0 0
          %1169 = vmatprep.subr.bf16.mxu0 0
          %1170 = vmatpush1.bf16.msra.mxu0 0
          %1171 = vmatprep.subr.bf16.mxu0 0
          %1172 = vmatpush1.bf16.msra.mxu0 0
          %1173 = vmatprep.subr.bf16.mxu0 0
          %1174 = vmatpush1.bf16.msra.mxu0 0
          %1175 = vmatprep.subr.bf16.mxu0 0
          %1176 = vmatpush1.bf16.msra.mxu0 0
          %1177 = vmatprep.subr.bf16.mxu0 0
          %1178 = vmatpush1.bf16.msra.mxu0 0
          %1179 = vmatprep.subr.bf16.mxu0 0
          %1180 = vmatpush1.bf16.msra.mxu0 0
          %1181 = vmatprep.subr.bf16.mxu0 0
          %1182 = vmatpush1.bf16.msra.mxu0 0
          %1183 = vmatprep.subr.bf16.mxu0 0
          %1184 = vmatpush1.bf16.msra.mxu0 0
          %1185 = vmatprep.subr.bf16.mxu0 0
          %1186 = vmatpush1.bf16.msra.mxu0 0
          %1187 = vmatprep.subr.bf16.mxu0 0
          %1188 = vmatpush1.bf16.msra.mxu0 0
          %1189 = vmatprep.subr.bf16.mxu0 0
          %1190 = vmatpush1.bf16.msra.mxu0 0
          %1191 = vmatprep.subr.bf16.mxu0 0
          %1192 = vmatpush1.bf16.msra.mxu0 0
          %1193 = vmatprep.subr.bf16.mxu0 0
          %1194 = vmatpush1.bf16.msra.mxu0 0
          %1195 = vmatprep.subr.bf16.mxu0 0
          %1196 = vmatpush1.bf16.msra.mxu0 0
          %1197 = vmatprep.mubr.bf16.mxu0 0
          %1198 = vmatmul.mubr.bf16.gmra.mrb[0].mxu0 %v1151
          %v1199 = vpop.f32.mrb[0].mxu0
          %v1200 = vadd.f32 0.0, %v1199
          %v1201 = vpop.f32.mrb[0].mxu0
          %v1202 = vpop.f32.mrb[0].mxu0
          %v1203 = vadd.f32 0.0, %v1202
          %v1204 = vpop.f32.mrb[0].mxu0
          %1205 = vmatprep.mubr.bf16.mxu0 0
          %1206 = vmatmul.mubr.bf16.gmra.mrb[0].mxu0 %v1154
          %v1207 = vpop.f32.mrb[0].mxu0
          %v1208 = vadd.f32 0.0, %v1207
          %v1209 = vpop.f32.mrb[0].mxu0
          %v1210 = vpop.f32.mrb[0].mxu0
          %v1211 = vadd.f32 0.0, %v1210
          %v1212 = vpop.f32.mrb[0].mxu0
          %1213 = vmatprep.mubr.bf16.mxu0 0
          %1214 = vmatmul.mubr.bf16.gmra.mrb[0].mxu0 %v1157
          %v1215 = vpop.f32.mrb[0].mxu0
          %v1216 = vadd.f32 0.0, %v1215
          %v1217 = vpop.f32.mrb[0].mxu0
          %v1218 = vpop.f32.mrb[0].mxu0
          %v1219 = vadd.f32 0.0, %v1218
          %v1220 = vpop.f32.mrb[0].mxu0
          %1221 = vmatprep.mubr.bf16.mxu0 0
          %1222 = vmatmul.mubr.bf16.gmra.mrb[0].mxu0 %v1160
          %v1223 = vpop.f32.mrb[0].mxu0
          %v1224 = vadd.f32 0.0, %v1223
          %v1225 = vpop.f32.mrb[0].mxu0
          %v1226 = vpop.f32.mrb[0].mxu0
          %v1227 = vadd.f32 0.0, %v1226
          %v1228 = vpop.f32.mrb[0].mxu0
          %1229 = vdwg.mxu0
          %v1230 = vadd.f32 %v1106, %v1200
          %v1231 = vadd.f32 %v1107, %v1203
          %v1232 = vadd.f32 %v1108, %v1208
          %v1233 = vadd.f32 %v1109, %v1211
          %v1234 = vadd.f32 %v1110, %v1216
          %v1235 = vadd.f32 %v1111, %v1219
          %v1236 = vadd.f32 %v1112, %v1224
          %v1237 = vadd.f32 %v1113, %v1227
          %1238 = vrot.lane.b32.xlu0 %v1146, 124
          %v1239 = vpop.permute.xlu0 %1238
          %1240 = vrot.lane.b32.xlu0 %v1147, 124
          %v1241 = vpop.permute.xlu0 %1240
          %1242 = vrot.lane.b32.xlu0 %v1148, 124
          %v1243 = vpop.permute.xlu0 %1242
          %1244 = vrot.lane.b32.xlu0 %v1149, 124
          %v1245 = vpop.permute.xlu0 %1244
          %v1247 = vsel %vm767, %v1239, 0
          %v1250 = vsel %vm767, %v1241, 0
          %v1253 = vsel %vm767, %v1243, 0
          %v1256 = vsel %vm767, %v1245, 0
          %v1259 = vsel %vm780, %v1097, 0
          %1261 = vmatprep.subr.bf16.mxu0 0
          %1262 = vmatpush1.bf16.msra.mxu0 %v1259
          %1263 = vmatprep.subr.bf16.mxu0 0
          %1264 = vmatpush1.bf16.msra.mxu0 0
          %1265 = vmatprep.subr.bf16.mxu0 0
          %1266 = vmatpush1.bf16.msra.mxu0 0
          %1267 = vmatprep.subr.bf16.mxu0 0
          %1268 = vmatpush1.bf16.msra.mxu0 0
          %1269 = vmatprep.subr.bf16.mxu0 0
          %1270 = vmatpush1.bf16.msra.mxu0 0
          %1271 = vmatprep.subr.bf16.mxu0 0
          %1272 = vmatpush1.bf16.msra.mxu0 0
          %1273 = vmatprep.subr.bf16.mxu0 0
          %1274 = vmatpush1.bf16.msra.mxu0 0
          %1275 = vmatprep.subr.bf16.mxu0 0
          %1276 = vmatpush1.bf16.msra.mxu0 0
          %1277 = vmatprep.subr.bf16.mxu0 0
          %1278 = vmatpush1.bf16.msra.mxu0 0
          %1279 = vmatprep.subr.bf16.mxu0 0
          %1280 = vmatpush1.bf16.msra.mxu0 0
          %1281 = vmatprep.subr.bf16.mxu0 0
          %1282 = vmatpush1.bf16.msra.mxu0 0
          %1283 = vmatprep.subr.bf16.mxu0 0
          %1284 = vmatpush1.bf16.msra.mxu0 0
          %1285 = vmatprep.subr.bf16.mxu0 0
          %1286 = vmatpush1.bf16.msra.mxu0 0
          %1287 = vmatprep.subr.bf16.mxu0 0
          %1288 = vmatpush1.bf16.msra.mxu0 0
          %1289 = vmatprep.subr.bf16.mxu0 0
          %1290 = vmatpush1.bf16.msra.mxu0 0
          %1291 = vmatprep.subr.bf16.mxu0 0
          %1292 = vmatpush1.bf16.msra.mxu0 0
          %1293 = vmatprep.mubr.bf16.mxu0 0
          %1294 = vmatmul.mubr.bf16.gmra.mrb[0].mxu0 %v1247
          %v1295 = vpop.f32.mrb[0].mxu0
          %v1296 = vadd.f32 0.0, %v1295
          %v1297 = vpop.f32.mrb[0].mxu0
          %v1298 = vpop.f32.mrb[0].mxu0
          %v1299 = vadd.f32 0.0, %v1298
          %v1300 = vpop.f32.mrb[0].mxu0
          %1301 = vmatprep.mubr.bf16.mxu0 0
          %1302 = vmatmul.mubr.bf16.gmra.mrb[0].mxu0 %v1250
          %v1303 = vpop.f32.mrb[0].mxu0
          %v1304 = vadd.f32 0.0, %v1303
          %v1305 = vpop.f32.mrb[0].mxu0
          %v1306 = vpop.f32.mrb[0].mxu0
          %v1307 = vadd.f32 0.0, %v1306
          %v1308 = vpop.f32.mrb[0].mxu0
          %1309 = vmatprep.mubr.bf16.mxu0 0
          %1310 = vmatmul.mubr.bf16.gmra.mrb[0].mxu0 %v1253
          %v1311 = vpop.f32.mrb[0].mxu0
          %v1312 = vadd.f32 0.0, %v1311
          %v1313 = vpop.f32.mrb[0].mxu0
          %v1314 = vpop.f32.mrb[0].mxu0
          %v1315 = vadd.f32 0.0, %v1314
          %v1316 = vpop.f32.mrb[0].mxu0
          %1317 = vmatprep.mubr.bf16.mxu0 0
          %1318 = vmatmul.mubr.bf16.gmra.mrb[0].mxu0 %v1256
          %v1319 = vpop.f32.mrb[0].mxu0
          %v1320 = vadd.f32 0.0, %v1319
          %v1321 = vpop.f32.mrb[0].mxu0
          %v1322 = vpop.f32.mrb[0].mxu0
          %v1323 = vadd.f32 0.0, %v1322
          %v1324 = vpop.f32.mrb[0].mxu0
          %1325 = vdwg.mxu0
          %v1326 = vadd.f32 %v1114, %v1296
          %v1327 = vadd.f32 %v1115, %v1299
          %v1328 = vadd.f32 %v1116, %v1304
          %v1329 = vadd.f32 %v1117, %v1307
          %v1330 = vadd.f32 %v1118, %v1312
          %v1331 = vadd.f32 %v1119, %v1315
          %v1332 = vadd.f32 %v1120, %v1320
          %v1333 = vadd.f32 %v1121, %v1323
          %v1334 = vld [vmem:[#allocation6] sm:$0xf]
          %v1335 = vld [vmem:[#allocation6 + $0x4] sm:$0x1]
          %v1336 = vld [vmem:[#allocation6 + $0x8] sm:$0xf]
          %v1337 = vld [vmem:[#allocation6 + $0xc] sm:$0x1]
          %v1338 = vld [vmem:[#allocation6 + $0x10] sm:$0xf]
          %v1339 = vld [vmem:[#allocation6 + $0x14] sm:$0x1]
          %v1340 = vld [vmem:[#allocation6 + $0x18] sm:$0xf]
          %v1341 = vld [vmem:[#allocation6 + $0x1c] sm:$0x1]
          %v1342 = vld [vmem:[#allocation6 + $0x20] sm:$0xf]
          %v1343 = vld [vmem:[#allocation6 + $0x24] sm:$0x1]
          %v1344 = vld [vmem:[#allocation6 + $0x28] sm:$0xf]
          %v1345 = vld [vmem:[#allocation6 + $0x2c] sm:$0x1]
          %v1346 = vld [vmem:[#allocation6 + $0x30] sm:$0xf]
          %v1347 = vld [vmem:[#allocation6 + $0x34] sm:$0x1]
          %v1348 = vld [vmem:[#allocation6 + $0x38] sm:$0xf]
          %v1349 = vld [vmem:[#allocation6 + $0x3c] sm:$0x1]
          %v1351 = vshrl.u32 %v1334, 16
          %v1353 = vrot.slane %v1351, 4
          %v1354 = vshll.u32 %v1334, 16
          %v1356 = vrot.slane %v1354, 5
          %v1357 = vor.u32 %v1353, %v1356
          %v1358 = vrot.slane %v1357, 4
          %v1360 = vshll.u32 %v1335, 16
          %v1362 = vrot.slane %v1360, 5
          %v1363 = vsel %vm427, %v1358, %v1362
          %v1365 = vshrl.u32 %v1336, 16
          %v1367 = vrot.slane %v1365, 4
          %v1368 = vshll.u32 %v1336, 16
          %v1370 = vrot.slane %v1368, 5
          %v1371 = vor.u32 %v1367, %v1370
          %v1372 = vrot.slane %v1371, 4
          %v1374 = vshll.u32 %v1337, 16
          %v1376 = vrot.slane %v1374, 5
          %v1377 = vsel %vm427, %v1372, %v1376
          %v1379 = vshrl.u32 %v1338, 16
          %v1381 = vrot.slane %v1379, 4
          %v1382 = vshll.u32 %v1338, 16
          %v1384 = vrot.slane %v1382, 5
          %v1385 = vor.u32 %v1381, %v1384
          %v1386 = vrot.slane %v1385, 4
          %v1388 = vshll.u32 %v1339, 16
          %v1390 = vrot.slane %v1388, 5
          %v1391 = vsel %vm427, %v1386, %v1390
          %v1393 = vshrl.u32 %v1340, 16
          %v1395 = vrot.slane %v1393, 4
          %v1396 = vshll.u32 %v1340, 16
          %v1398 = vrot.slane %v1396, 5
          %v1399 = vor.u32 %v1395, %v1398
          %v1400 = vrot.slane %v1399, 4
          %v1402 = vshll.u32 %v1341, 16
          %v1404 = vrot.slane %v1402, 5
          %v1405 = vsel %vm427, %v1400, %v1404
          %v1407 = vshrl.u32 %v1342, 16
          %v1409 = vrot.slane %v1407, 4
          %v1410 = vshll.u32 %v1342, 16
          %v1412 = vrot.slane %v1410, 5
          %v1413 = vor.u32 %v1409, %v1412
          %v1414 = vrot.slane %v1413, 4
          %v1416 = vshll.u32 %v1343, 16
          %v1418 = vrot.slane %v1416, 5
          %v1419 = vsel %vm427, %v1414, %v1418
          %v1421 = vshrl.u32 %v1344, 16
          %v1423 = vrot.slane %v1421, 4
          %v1424 = vshll.u32 %v1344, 16
          %v1426 = vrot.slane %v1424, 5
          %v1427 = vor.u32 %v1423, %v1426
          %v1428 = vrot.slane %v1427, 4
          %v1430 = vshll.u32 %v1345, 16
          %v1432 = vrot.slane %v1430, 5
          %v1433 = vsel %vm427, %v1428, %v1432
          %v1435 = vshrl.u32 %v1346, 16
          %v1437 = vrot.slane %v1435, 4
          %v1438 = vshll.u32 %v1346, 16
          %v1440 = vrot.slane %v1438, 5
          %v1441 = vor.u32 %v1437, %v1440
          %v1442 = vrot.slane %v1441, 4
          %v1444 = vshll.u32 %v1347, 16
          %v1446 = vrot.slane %v1444, 5
          %v1447 = vsel %vm427, %v1442, %v1446
          %v1449 = vshrl.u32 %v1348, 16
          %v1451 = vrot.slane %v1449, 4
          %v1452 = vshll.u32 %v1348, 16
          %v1454 = vrot.slane %v1452, 5
          %v1455 = vor.u32 %v1451, %v1454
          %v1456 = vrot.slane %v1455, 4
          %v1458 = vshll.u32 %v1349, 16
          %v1460 = vrot.slane %v1458, 5
          %v1461 = vsel %vm427, %v1456, %v1460
          %v1462 = vunpack.c.l.b16 %v1363
          %v1463 = vunpack.c.l.b16 %v1377
          %v1464 = vunpack.c.l.b16 %v1391
          %v1465 = vunpack.c.l.b16 %v1405
          %v1466 = vunpack.c.l.b16 %v1419
          %v1467 = vunpack.c.l.b16 %v1433
          %v1468 = vunpack.c.l.b16 %v1447
          %v1469 = vunpack.c.l.b16 %v1461
          %v1470 = vpack.c.b16 %v1463, %v1462
          %v1471 = vpack.c.b16 %v1465, %v1464
          %v1472 = vpack.c.b16 %v1467, %v1466
          %v1473 = vpack.c.b16 %v1469, %v1468
          %v1475 = vsel %vm767, %v1470, 0
          %v1478 = vsel %vm767, %v1471, 0
          %v1481 = vsel %vm767, %v1472, 0
          %v1484 = vsel %vm767, %v1473, 0
          %v1487 = vsel %vm780, %v1087, 0
          %1489 = vmatprep.subr.bf16.mxu0 0
          %1490 = vmatpush1.bf16.msra.mxu0 %v1487
          %1491 = vmatprep.subr.bf16.mxu0 0
          %1492 = vmatpush1.bf16.msra.mxu0 0
          %1493 = vmatprep.subr.bf16.mxu0 0
          %1494 = vmatpush1.bf16.msra.mxu0 0
          %1495 = vmatprep.subr.bf16.mxu0 0
          %1496 = vmatpush1.bf16.msra.mxu0 0
          %1497 = vmatprep.subr.bf16.mxu0 0
          %1498 = vmatpush1.bf16.msra.mxu0 0
          %1499 = vmatprep.subr.bf16.mxu0 0
          %1500 = vmatpush1.bf16.msra.mxu0 0
          %1501 = vmatprep.subr.bf16.mxu0 0
          %1502 = vmatpush1.bf16.msra.mxu0 0
          %1503 = vmatprep.subr.bf16.mxu0 0
          %1504 = vmatpush1.bf16.msra.mxu0 0
          %1505 = vmatprep.subr.bf16.mxu0 0
          %1506 = vmatpush1.bf16.msra.mxu0 0
          %1507 = vmatprep.subr.bf16.mxu0 0
          %1508 = vmatpush1.bf16.msra.mxu0 0
          %1509 = vmatprep.subr.bf16.mxu0 0
          %1510 = vmatpush1.bf16.msra.mxu0 0
          %1511 = vmatprep.subr.bf16.mxu0 0
          %1512 = vmatpush1.bf16.msra.mxu0 0
          %1513 = vmatprep.subr.bf16.mxu0 0
          %1514 = vmatpush1.bf16.msra.mxu0 0
          %1515 = vmatprep.subr.bf16.mxu0 0
          %1516 = vmatpush1.bf16.msra.mxu0 0
          %1517 = vmatprep.subr.bf16.mxu0 0
          %1518 = vmatpush1.bf16.msra.mxu0 0
          %1519 = vmatprep.subr.bf16.mxu0 0
          %1520 = vmatpush1.bf16.msra.mxu0 0
          %1521 = vmatprep.mubr.bf16.mxu0 0
          %1522 = vmatmul.mubr.bf16.gmra.mrb[0].mxu0 %v1475
          %v1523 = vpop.f32.mrb[0].mxu0
          %v1524 = vadd.f32 0.0, %v1523
          %v1525 = vpop.f32.mrb[0].mxu0
          %v1526 = vpop.f32.mrb[0].mxu0
          %v1527 = vadd.f32 0.0, %v1526
          %v1528 = vpop.f32.mrb[0].mxu0
          %1529 = vmatprep.mubr.bf16.mxu0 0
          %1530 = vmatmul.mubr.bf16.gmra.mrb[0].mxu0 %v1478
          %v1531 = vpop.f32.mrb[0].mxu0
          %v1532 = vadd.f32 0.0, %v1531
          %v1533 = vpop.f32.mrb[0].mxu0
          %v1534 = vpop.f32.mrb[0].mxu0
          %v1535 = vadd.f32 0.0, %v1534
          %v1536 = vpop.f32.mrb[0].mxu0
          %1537 = vmatprep.mubr.bf16.mxu0 0
          %1538 = vmatmul.mubr.bf16.gmra.mrb[0].mxu0 %v1481
          %v1539 = vpop.f32.mrb[0].mxu0
          %v1540 = vadd.f32 0.0, %v1539
          %v1541 = vpop.f32.mrb[0].mxu0
          %v1542 = vpop.f32.mrb[0].mxu0
          %v1543 = vadd.f32 0.0, %v1542
          %v1544 = vpop.f32.mrb[0].mxu0
          %1545 = vmatprep.mubr.bf16.mxu0 0
          %1546 = vmatmul.mubr.bf16.gmra.mrb[0].mxu0 %v1484
          %v1547 = vpop.f32.mrb[0].mxu0
          %v1548 = vadd.f32 0.0, %v1547
          %v1549 = vpop.f32.mrb[0].mxu0
          %v1550 = vpop.f32.mrb[0].mxu0
          %v1551 = vadd.f32 0.0, %v1550
          %v1552 = vpop.f32.mrb[0].mxu0
          %1553 = vdwg.mxu0
          %v1554 = vadd.f32 %v1230, %v1524
          %v1555 = vadd.f32 %v1231, %v1527
          %v1556 = vadd.f32 %v1232, %v1532
          %v1557 = vadd.f32 %v1233, %v1535
          %v1558 = vadd.f32 %v1234, %v1540
          %v1559 = vadd.f32 %v1235, %v1543
          %v1560 = vadd.f32 %v1236, %v1548
          %v1561 = vadd.f32 %v1237, %v1551
          %1562 = vrot.lane.b32.xlu0 %v1470, 124
          %v1563 = vpop.permute.xlu0 %1562
          %1564 = vrot.lane.b32.xlu0 %v1471, 124
          %v1565 = vpop.permute.xlu0 %1564
          %1566 = vrot.lane.b32.xlu0 %v1472, 124
          %v1567 = vpop.permute.xlu0 %1566
          %1568 = vrot.lane.b32.xlu0 %v1473, 124
          %v1569 = vpop.permute.xlu0 %1568
          %v1571 = vsel %vm767, %v1563, 0
          %v1574 = vsel %vm767, %v1565, 0
          %v1577 = vsel %vm767, %v1567, 0
          %v1580 = vsel %vm767, %v1569, 0
          %v1583 = vsel %vm780, %v1098, 0
          %1585 = vmatprep.subr.bf16.mxu0 0
          %1586 = vmatpush1.bf16.msra.mxu0 %v1583
          %1587 = vmatprep.subr.bf16.mxu0 0
          %1588 = vmatpush1.bf16.msra.mxu0 0
          %1589 = vmatprep.subr.bf16.mxu0 0
          %1590 = vmatpush1.bf16.msra.mxu0 0
          %1591 = vmatprep.subr.bf16.mxu0 0
          %1592 = vmatpush1.bf16.msra.mxu0 0
          %1593 = vmatprep.subr.bf16.mxu0 0
          %1594 = vmatpush1.bf16.msra.mxu0 0
          %1595 = vmatprep.subr.bf16.mxu0 0
          %1596 = vmatpush1.bf16.msra.mxu0 0
          %1597 = vmatprep.subr.bf16.mxu0 0
          %1598 = vmatpush1.bf16.msra.mxu0 0
          %1599 = vmatprep.subr.bf16.mxu0 0
          %1600 = vmatpush1.bf16.msra.mxu0 0
          %1601 = vmatprep.subr.bf16.mxu0 0
          %1602 = vmatpush1.bf16.msra.mxu0 0
          %1603 = vmatprep.subr.bf16.mxu0 0
          %1604 = vmatpush1.bf16.msra.mxu0 0
          %1605 = vmatprep.subr.bf16.mxu0 0
          %1606 = vmatpush1.bf16.msra.mxu0 0
          %1607 = vmatprep.subr.bf16.mxu0 0
          %1608 = vmatpush1.bf16.msra.mxu0 0
          %1609 = vmatprep.subr.bf16.mxu0 0
          %1610 = vmatpush1.bf16.msra.mxu0 0
          %1611 = vmatprep.subr.bf16.mxu0 0
          %1612 = vmatpush1.bf16.msra.mxu0 0
          %1613 = vmatprep.subr.bf16.mxu0 0
          %1614 = vmatpush1.bf16.msra.mxu0 0
          %1615 = vmatprep.subr.bf16.mxu0 0
          %1616 = vmatpush1.bf16.msra.mxu0 0
          %1617 = vmatprep.mubr.bf16.mxu0 0
          %1618 = vmatmul.mubr.bf16.gmra.mrb[0].mxu0 %v1571
          %v1619 = vpop.f32.mrb[0].mxu0
          %v1620 = vadd.f32 0.0, %v1619
          %v1621 = vpop.f32.mrb[0].mxu0
          %v1622 = vpop.f32.mrb[0].mxu0
          %v1623 = vadd.f32 0.0, %v1622
          %v1624 = vpop.f32.mrb[0].mxu0
          %1625 = vmatprep.mubr.bf16.mxu0 0
          %1626 = vmatmul.mubr.bf16.gmra.mrb[0].mxu0 %v1574
          %v1627 = vpop.f32.mrb[0].mxu0
          %v1628 = vadd.f32 0.0, %v1627
          %v1629 = vpop.f32.mrb[0].mxu0
          %v1630 = vpop.f32.mrb[0].mxu0
          %v1631 = vadd.f32 0.0, %v1630
          %v1632 = vpop.f32.mrb[0].mxu0
          %1633 = vmatprep.mubr.bf16.mxu0 0
          %1634 = vmatmul.mubr.bf16.gmra.mrb[0].mxu0 %v1577
          %v1635 = vpop.f32.mrb[0].mxu0
          %v1636 = vadd.f32 0.0, %v1635
          %v1637 = vpop.f32.mrb[0].mxu0
          %v1638 = vpop.f32.mrb[0].mxu0
          %v1639 = vadd.f32 0.0, %v1638
          %v1640 = vpop.f32.mrb[0].mxu0
          %1641 = vmatprep.mubr.bf16.mxu0 0
          %1642 = vmatmul.mubr.bf16.gmra.mrb[0].mxu0 %v1580
          %v1643 = vpop.f32.mrb[0].mxu0
          %v1644 = vadd.f32 0.0, %v1643
          %v1645 = vpop.f32.mrb[0].mxu0
          %v1646 = vpop.f32.mrb[0].mxu0
          %v1647 = vadd.f32 0.0, %v1646
          %v1648 = vpop.f32.mrb[0].mxu0
          %1649 = vdwg.mxu0
          %v1650 = vadd.f32 %v1326, %v1620
          %v1651 = vadd.f32 %v1327, %v1623
          %v1652 = vadd.f32 %v1328, %v1628
          %v1653 = vadd.f32 %v1329, %v1631
          %v1654 = vadd.f32 %v1330, %v1636
          %v1655 = vadd.f32 %v1331, %v1639
          %v1656 = vadd.f32 %v1332, %v1644
          %v1657 = vadd.f32 %v1333, %v1647
          %v1658 = vld [vmem:[#allocation6] sm:$0xe]
          %v1659 = vld [vmem:[#allocation6 + $0x8] sm:$0xe]
          %v1660 = vld [vmem:[#allocation6 + $0x10] sm:$0xe]
          %v1661 = vld [vmem:[#allocation6 + $0x18] sm:$0xe]
          %v1662 = vld [vmem:[#allocation6 + $0x20] sm:$0xe]
          %v1663 = vld [vmem:[#allocation6 + $0x28] sm:$0xe]
          %v1664 = vld [vmem:[#allocation6 + $0x30] sm:$0xe]
          %v1665 = vld [vmem:[#allocation6 + $0x38] sm:$0xe]
          %v1682 = vrot.slane %v1658, 5
          %v1683 = vrot.slane %v1682, 4
          %v1684 = vrot.slane %v1335, 5
          %v1685 = vsel %vm574, %v1683, %v1684
          %v1686 = vrot.slane %v1659, 5
          %v1687 = vrot.slane %v1686, 4
          %v1688 = vrot.slane %v1337, 5
          %v1689 = vsel %vm574, %v1687, %v1688
          %v1690 = vrot.slane %v1660, 5
          %v1691 = vrot.slane %v1690, 4
          %v1692 = vrot.slane %v1339, 5
          %v1693 = vsel %vm574, %v1691, %v1692
          %v1694 = vrot.slane %v1661, 5
          %v1695 = vrot.slane %v1694, 4
          %v1696 = vrot.slane %v1341, 5
          %v1697 = vsel %vm574, %v1695, %v1696
          %v1698 = vrot.slane %v1662, 5
          %v1699 = vrot.slane %v1698, 4
          %v1700 = vrot.slane %v1343, 5
          %v1701 = vsel %vm574, %v1699, %v1700
          %v1702 = vrot.slane %v1663, 5
          %v1703 = vrot.slane %v1702, 4
          %v1704 = vrot.slane %v1345, 5
          %v1705 = vsel %vm574, %v1703, %v1704
          %v1706 = vrot.slane %v1664, 5
          %v1707 = vrot.slane %v1706, 4
          %v1708 = vrot.slane %v1347, 5
          %v1709 = vsel %vm574, %v1707, %v1708
          %v1710 = vrot.slane %v1665, 5
          %v1711 = vrot.slane %v1710, 4
          %v1712 = vrot.slane %v1349, 5
          %v1713 = vsel %vm574, %v1711, %v1712
          %v1714 = vunpack.c.l.b16 %v1685
          %v1715 = vunpack.c.l.b16 %v1689
          %v1716 = vunpack.c.l.b16 %v1693
          %v1717 = vunpack.c.l.b16 %v1697
          %v1718 = vunpack.c.l.b16 %v1701
          %v1719 = vunpack.c.l.b16 %v1705
          %v1720 = vunpack.c.l.b16 %v1709
          %v1721 = vunpack.c.l.b16 %v1713
          %v1722 = vpack.c.b16 %v1715, %v1714
          %v1723 = vpack.c.b16 %v1717, %v1716
          %v1724 = vpack.c.b16 %v1719, %v1718
          %v1725 = vpack.c.b16 %v1721, %v1720
          %v1727 = vsel %vm767, %v1722, 0
          %v1730 = vsel %vm767, %v1723, 0
          %v1733 = vsel %vm767, %v1724, 0
          %v1736 = vsel %vm767, %v1725, 0
          %v1739 = vsel %vm780, %v1088, 0
          %1741 = vmatprep.subr.bf16.mxu0 0
          %1742 = vmatpush1.bf16.msra.mxu0 %v1739
          %1743 = vmatprep.subr.bf16.mxu0 0
          %1744 = vmatpush1.bf16.msra.mxu0 0
          %1745 = vmatprep.subr.bf16.mxu0 0
          %1746 = vmatpush1.bf16.msra.mxu0 0
          %1747 = vmatprep.subr.bf16.mxu0 0
          %1748 = vmatpush1.bf16.msra.mxu0 0
          %1749 = vmatprep.subr.bf16.mxu0 0
          %1750 = vmatpush1.bf16.msra.mxu0 0
          %1751 = vmatprep.subr.bf16.mxu0 0
          %1752 = vmatpush1.bf16.msra.mxu0 0
          %1753 = vmatprep.subr.bf16.mxu0 0
          %1754 = vmatpush1.bf16.msra.mxu0 0
          %1755 = vmatprep.subr.bf16.mxu0 0
          %1756 = vmatpush1.bf16.msra.mxu0 0
          %1757 = vmatprep.subr.bf16.mxu0 0
          %1758 = vmatpush1.bf16.msra.mxu0 0
          %1759 = vmatprep.subr.bf16.mxu0 0
          %1760 = vmatpush1.bf16.msra.mxu0 0
          %1761 = vmatprep.subr.bf16.mxu0 0
          %1762 = vmatpush1.bf16.msra.mxu0 0
          %1763 = vmatprep.subr.bf16.mxu0 0
          %1764 = vmatpush1.bf16.msra.mxu0 0
          %1765 = vmatprep.subr.bf16.mxu0 0
          %1766 = vmatpush1.bf16.msra.mxu0 0
          %1767 = vmatprep.subr.bf16.mxu0 0
          %1768 = vmatpush1.bf16.msra.mxu0 0
          %1769 = vmatprep.subr.bf16.mxu0 0
          %1770 = vmatpush1.bf16.msra.mxu0 0
          %1771 = vmatprep.subr.bf16.mxu0 0
          %1772 = vmatpush1.bf16.msra.mxu0 0
          %1773 = vmatprep.mubr.bf16.mxu0 0
          %1774 = vmatmul.mubr.bf16.gmra.mrb[0].mxu0 %v1727
          %v1775 = vpop.f32.mrb[0].mxu0
          %v1776 = vadd.f32 0.0, %v1775
          %v1777 = vpop.f32.mrb[0].mxu0
          %v1778 = vpop.f32.mrb[0].mxu0
          %v1779 = vadd.f32 0.0, %v1778
          %v1780 = vpop.f32.mrb[0].mxu0
          %1781 = vmatprep.mubr.bf16.mxu0 0
          %1782 = vmatmul.mubr.bf16.gmra.mrb[0].mxu0 %v1730
          %v1783 = vpop.f32.mrb[0].mxu0
          %v1784 = vadd.f32 0.0, %v1783
          %v1785 = vpop.f32.mrb[0].mxu0
          %v1786 = vpop.f32.mrb[0].mxu0
          %v1787 = vadd.f32 0.0, %v1786
          %v1788 = vpop.f32.mrb[0].mxu0
          %1789 = vmatprep.mubr.bf16.mxu0 0
          %1790 = vmatmul.mubr.bf16.gmra.mrb[0].mxu0 %v1733
          %v1791 = vpop.f32.mrb[0].mxu0
          %v1792 = vadd.f32 0.0, %v1791
          %v1793 = vpop.f32.mrb[0].mxu0
          %v1794 = vpop.f32.mrb[0].mxu0
          %v1795 = vadd.f32 0.0, %v1794
          %v1796 = vpop.f32.mrb[0].mxu0
          %1797 = vmatprep.mubr.bf16.mxu0 0
          %1798 = vmatmul.mubr.bf16.gmra.mrb[0].mxu0 %v1736
          %v1799 = vpop.f32.mrb[0].mxu0
          %v1800 = vadd.f32 0.0, %v1799
          %v1801 = vpop.f32.mrb[0].mxu0
          %v1802 = vpop.f32.mrb[0].mxu0
          %v1803 = vadd.f32 0.0, %v1802
          %v1804 = vpop.f32.mrb[0].mxu0
          %1805 = vdwg.mxu0
          %v1806 = vadd.f32 %v1554, %v1776
          %v1807 = vadd.f32 %v1555, %v1779
          %v1808 = vadd.f32 %v1556, %v1784
          %v1809 = vadd.f32 %v1557, %v1787
          %v1810 = vadd.f32 %v1558, %v1792
          %v1811 = vadd.f32 %v1559, %v1795
          %v1812 = vadd.f32 %v1560, %v1800
          %v1813 = vadd.f32 %v1561, %v1803
          %1814 = vrot.lane.b32.xlu0 %v1722, 124
          %v1815 = vpop.permute.xlu0 %1814
          %1816 = vrot.lane.b32.xlu0 %v1723, 124
          %v1817 = vpop.permute.xlu0 %1816
          %1818 = vrot.lane.b32.xlu0 %v1724, 124
          %v1819 = vpop.permute.xlu0 %1818
          %1820 = vrot.lane.b32.xlu0 %v1725, 124
          %v1821 = vpop.permute.xlu0 %1820
          %v1823 = vsel %vm767, %v1815, 0
          %v1826 = vsel %vm767, %v1817, 0
          %v1829 = vsel %vm767, %v1819, 0
          %v1832 = vsel %vm767, %v1821, 0
          %v1835 = vsel %vm780, %v1099, 0
          %1837 = vmatprep.subr.bf16.mxu0 0
          %1838 = vmatpush1.bf16.msra.mxu0 %v1835
          %1839 = vmatprep.subr.bf16.mxu0 0
          %1840 = vmatpush1.bf16.msra.mxu0 0
          %1841 = vmatprep.subr.bf16.mxu0 0
          %1842 = vmatpush1.bf16.msra.mxu0 0
          %1843 = vmatprep.subr.bf16.mxu0 0
          %1844 = vmatpush1.bf16.msra.mxu0 0
          %1845 = vmatprep.subr.bf16.mxu0 0
          %1846 = vmatpush1.bf16.msra.mxu0 0
          %1847 = vmatprep.subr.bf16.mxu0 0
          %1848 = vmatpush1.bf16.msra.mxu0 0
          %1849 = vmatprep.subr.bf16.mxu0 0
          %1850 = vmatpush1.bf16.msra.mxu0 0
          %1851 = vmatprep.subr.bf16.mxu0 0
          %1852 = vmatpush1.bf16.msra.mxu0 0
          %1853 = vmatprep.subr.bf16.mxu0 0
          %1854 = vmatpush1.bf16.msra.mxu0 0
          %1855 = vmatprep.subr.bf16.mxu0 0
          %1856 = vmatpush1.bf16.msra.mxu0 0
          %1857 = vmatprep.subr.bf16.mxu0 0
          %1858 = vmatpush1.bf16.msra.mxu0 0
          %1859 = vmatprep.subr.bf16.mxu0 0
          %1860 = vmatpush1.bf16.msra.mxu0 0
          %1861 = vmatprep.subr.bf16.mxu0 0
          %1862 = vmatpush1.bf16.msra.mxu0 0
          %1863 = vmatprep.subr.bf16.mxu0 0
          %1864 = vmatpush1.bf16.msra.mxu0 0
          %1865 = vmatprep.subr.bf16.mxu0 0
          %1866 = vmatpush1.bf16.msra.mxu0 0
          %1867 = vmatprep.subr.bf16.mxu0 0
          %1868 = vmatpush1.bf16.msra.mxu0 0
          %1869 = vmatprep.mubr.bf16.mxu0 0
          %1870 = vmatmul.mubr.bf16.gmra.mrb[0].mxu0 %v1823
          %v1871 = vpop.f32.mrb[0].mxu0
          %v1872 = vadd.f32 0.0, %v1871
          %v1873 = vpop.f32.mrb[0].mxu0
          %v1874 = vpop.f32.mrb[0].mxu0
          %v1875 = vadd.f32 0.0, %v1874
          %v1876 = vpop.f32.mrb[0].mxu0
          %1877 = vmatprep.mubr.bf16.mxu0 0
          %1878 = vmatmul.mubr.bf16.gmra.mrb[0].mxu0 %v1826
          %v1879 = vpop.f32.mrb[0].mxu0
          %v1880 = vadd.f32 0.0, %v1879
          %v1881 = vpop.f32.mrb[0].mxu0
          %v1882 = vpop.f32.mrb[0].mxu0
          %v1883 = vadd.f32 0.0, %v1882
          %v1884 = vpop.f32.mrb[0].mxu0
          %1885 = vmatprep.mubr.bf16.mxu0 0
          %1886 = vmatmul.mubr.bf16.gmra.mrb[0].mxu0 %v1829
          %v1887 = vpop.f32.mrb[0].mxu0
          %v1888 = vadd.f32 0.0, %v1887
          %v1889 = vpop.f32.mrb[0].mxu0
          %v1890 = vpop.f32.mrb[0].mxu0
          %v1891 = vadd.f32 0.0, %v1890
          %v1892 = vpop.f32.mrb[0].mxu0
          %1893 = vmatprep.mubr.bf16.mxu0 0
          %1894 = vmatmul.mubr.bf16.gmra.mrb[0].mxu0 %v1832
          %v1895 = vpop.f32.mrb[0].mxu0
          %v1896 = vadd.f32 0.0, %v1895
          %v1897 = vpop.f32.mrb[0].mxu0
          %v1898 = vpop.f32.mrb[0].mxu0
          %v1899 = vadd.f32 0.0, %v1898
          %v1900 = vpop.f32.mrb[0].mxu0
          %1901 = vdwg.mxu0
          %v1902 = vadd.f32 %v1650, %v1872
          %v1903 = vadd.f32 %v1651, %v1875
          %v1904 = vadd.f32 %v1652, %v1880
          %v1905 = vadd.f32 %v1653, %v1883
          %v1906 = vadd.f32 %v1654, %v1888
          %v1907 = vadd.f32 %v1655, %v1891
          %v1908 = vadd.f32 %v1656, %v1896
          %v1909 = vadd.f32 %v1657, %v1899
          %v1910 = vld [vmem:[%s1028] sm:$0xf]
          %v1911 = vld [vmem:[%s1028 + $0x8] sm:$0xf]
          %v1912 = vld [vmem:[%s1028 + $0x10] sm:$0xf]
          %v1913 = vld [vmem:[%s1028 + $0x18] sm:$0xf]
          %v1914 = vld [vmem:[%s1028 + $0x20] sm:$0xf]
          %v1915 = vld [vmem:[%s1028 + $0x28] sm:$0xf]
          %v1916 = vld [vmem:[%s1028 + $0x30] sm:$0xf]
          %v1917 = vld [vmem:[%s1028 + $0x38] sm:$0xf]
          %v1926 = vunpack.c.l.b16 %v1910
          %v1927 = vunpack.c.l.b16 %v1911
          %v1928 = vunpack.c.l.b16 %v1912
          %v1929 = vunpack.c.l.b16 %v1913
          %v1930 = vunpack.c.l.b16 %v1914
          %v1931 = vunpack.c.l.b16 %v1915
          %v1932 = vunpack.c.l.b16 %v1916
          %v1933 = vunpack.c.l.b16 %v1917
          %v1934 = vpack.c.b16 %v1927, %v1926
          %v1935 = vpack.c.b16 %v1929, %v1928
          %v1936 = vpack.c.b16 %v1931, %v1930
          %v1937 = vpack.c.b16 %v1933, %v1932
          %v1939 = vsel %vm767, %v1934, 0
          %v1942 = vsel %vm767, %v1935, 0
          %v1945 = vsel %vm767, %v1936, 0
          %v1948 = vsel %vm767, %v1937, 0
          %v1951 = vsel %vm780, %v1089, 0
          %1953 = vmatprep.subr.bf16.mxu0 0
          %1954 = vmatpush1.bf16.msra.mxu0 %v1951
          %1955 = vmatprep.subr.bf16.mxu0 0
          %1956 = vmatpush1.bf16.msra.mxu0 0
          %1957 = vmatprep.subr.bf16.mxu0 0
          %1958 = vmatpush1.bf16.msra.mxu0 0
          %1959 = vmatprep.subr.bf16.mxu0 0
          %1960 = vmatpush1.bf16.msra.mxu0 0
          %1961 = vmatprep.subr.bf16.mxu0 0
          %1962 = vmatpush1.bf16.msra.mxu0 0
          %1963 = vmatprep.subr.bf16.mxu0 0
          %1964 = vmatpush1.bf16.msra.mxu0 0
          %1965 = vmatprep.subr.bf16.mxu0 0
          %1966 = vmatpush1.bf16.msra.mxu0 0
          %1967 = vmatprep.subr.bf16.mxu0 0
          %1968 = vmatpush1.bf16.msra.mxu0 0
          %1969 = vmatprep.subr.bf16.mxu0 0
          %1970 = vmatpush1.bf16.msra.mxu0 0
          %1971 = vmatprep.subr.bf16.mxu0 0
          %1972 = vmatpush1.bf16.msra.mxu0 0
          %1973 = vmatprep.subr.bf16.mxu0 0
          %1974 = vmatpush1.bf16.msra.mxu0 0
          %1975 = vmatprep.subr.bf16.mxu0 0
          %1976 = vmatpush1.bf16.msra.mxu0 0
          %1977 = vmatprep.subr.bf16.mxu0 0
          %1978 = vmatpush1.bf16.msra.mxu0 0
          %1979 = vmatprep.subr.bf16.mxu0 0
          %1980 = vmatpush1.bf16.msra.mxu0 0
          %1981 = vmatprep.subr.bf16.mxu0 0
          %1982 = vmatpush1.bf16.msra.mxu0 0
          %1983 = vmatprep.subr.bf16.mxu0 0
          %1984 = vmatpush1.bf16.msra.mxu0 0
          %1985 = vmatprep.mubr.bf16.mxu0 0
          %1986 = vmatmul.mubr.bf16.gmra.mrb[0].mxu0 %v1939
          %v1987 = vpop.f32.mrb[0].mxu0
          %v1988 = vadd.f32 0.0, %v1987
          %v1989 = vpop.f32.mrb[0].mxu0
          %v1990 = vpop.f32.mrb[0].mxu0
          %v1991 = vadd.f32 0.0, %v1990
          %v1992 = vpop.f32.mrb[0].mxu0
          %1993 = vmatprep.mubr.bf16.mxu0 0
          %1994 = vmatmul.mubr.bf16.gmra.mrb[0].mxu0 %v1942
          %v1995 = vpop.f32.mrb[0].mxu0
          %v1996 = vadd.f32 0.0, %v1995
          %v1997 = vpop.f32.mrb[0].mxu0
          %v1998 = vpop.f32.mrb[0].mxu0
          %v1999 = vadd.f32 0.0, %v1998
          %v2000 = vpop.f32.mrb[0].mxu0
          %2001 = vmatprep.mubr.bf16.mxu0 0
          %2002 = vmatmul.mubr.bf16.gmra.mrb[0].mxu0 %v1945
          %v2003 = vpop.f32.mrb[0].mxu0
          %v2004 = vadd.f32 0.0, %v2003
          %v2005 = vpop.f32.mrb[0].mxu0
          %v2006 = vpop.f32.mrb[0].mxu0
          %v2007 = vadd.f32 0.0, %v2006
          %v2008 = vpop.f32.mrb[0].mxu0
          %2009 = vmatprep.mubr.bf16.mxu0 0
          %2010 = vmatmul.mubr.bf16.gmra.mrb[0].mxu0 %v1948
          %v2011 = vpop.f32.mrb[0].mxu0
          %v2012 = vadd.f32 0.0, %v2011
          %v2013 = vpop.f32.mrb[0].mxu0
          %v2014 = vpop.f32.mrb[0].mxu0
          %v2015 = vadd.f32 0.0, %v2014
          %v2016 = vpop.f32.mrb[0].mxu0
          %2017 = vdwg.mxu0
          %v2018 = vadd.f32 %v1806, %v1988
          %v2019 = vadd.f32 %v1807, %v1991
          %v2020 = vadd.f32 %v1808, %v1996
          %v2021 = vadd.f32 %v1809, %v1999
          %v2022 = vadd.f32 %v1810, %v2004
          %v2023 = vadd.f32 %v1811, %v2007
          %v2024 = vadd.f32 %v1812, %v2012
          %v2025 = vadd.f32 %v1813, %v2015
          %2026 = vrot.lane.b32.xlu0 %v1934, 124
          %v2027 = vpop.permute.xlu0 %2026
          %2028 = vrot.lane.b32.xlu0 %v1935, 124
          %v2029 = vpop.permute.xlu0 %2028
          %2030 = vrot.lane.b32.xlu0 %v1936, 124
          %v2031 = vpop.permute.xlu0 %2030
          %2032 = vrot.lane.b32.xlu0 %v1937, 124
          %v2033 = vpop.permute.xlu0 %2032
          %v2035 = vsel %vm767, %v2027, 0
          %v2038 = vsel %vm767, %v2029, 0
          %v2041 = vsel %vm767, %v2031, 0
          %v2044 = vsel %vm767, %v2033, 0
          %v2047 = vsel %vm780, %v1100, 0
          %2049 = vmatprep.subr.bf16.mxu0 0
          %2050 = vmatpush1.bf16.msra.mxu0 %v2047
          %2051 = vmatprep.subr.bf16.mxu0 0
          %2052 = vmatpush1.bf16.msra.mxu0 0
          %2053 = vmatprep.subr.bf16.mxu0 0
          %2054 = vmatpush1.bf16.msra.mxu0 0
          %2055 = vmatprep.subr.bf16.mxu0 0
          %2056 = vmatpush1.bf16.msra.mxu0 0
          %2057 = vmatprep.subr.bf16.mxu0 0
          %2058 = vmatpush1.bf16.msra.mxu0 0
          %2059 = vmatprep.subr.bf16.mxu0 0
          %2060 = vmatpush1.bf16.msra.mxu0 0
          %2061 = vmatprep.subr.bf16.mxu0 0
          %2062 = vmatpush1.bf16.msra.mxu0 0
          %2063 = vmatprep.subr.bf16.mxu0 0
          %2064 = vmatpush1.bf16.msra.mxu0 0
          %2065 = vmatprep.subr.bf16.mxu0 0
          %2066 = vmatpush1.bf16.msra.mxu0 0
          %2067 = vmatprep.subr.bf16.mxu0 0
          %2068 = vmatpush1.bf16.msra.mxu0 0
          %2069 = vmatprep.subr.bf16.mxu0 0
          %2070 = vmatpush1.bf16.msra.mxu0 0
          %2071 = vmatprep.subr.bf16.mxu0 0
          %2072 = vmatpush1.bf16.msra.mxu0 0
          %2073 = vmatprep.subr.bf16.mxu0 0
          %2074 = vmatpush1.bf16.msra.mxu0 0
          %2075 = vmatprep.subr.bf16.mxu0 0
          %2076 = vmatpush1.bf16.msra.mxu0 0
          %2077 = vmatprep.subr.bf16.mxu0 0
          %2078 = vmatpush1.bf16.msra.mxu0 0
          %2079 = vmatprep.subr.bf16.mxu0 0
          %2080 = vmatpush1.bf16.msra.mxu0 0
          %2081 = vmatprep.mubr.bf16.mxu0 0
          %2082 = vmatmul.mubr.bf16.gmra.mrb[0].mxu0 %v2035
          %v2083 = vpop.f32.mrb[0].mxu0
          %v2084 = vadd.f32 0.0, %v2083
          %v2085 = vpop.f32.mrb[0].mxu0
          %v2086 = vpop.f32.mrb[0].mxu0
          %v2087 = vadd.f32 0.0, %v2086
          %v2088 = vpop.f32.mrb[0].mxu0
          %2089 = vmatprep.mubr.bf16.mxu0 0
          %2090 = vmatmul.mubr.bf16.gmra.mrb[0].mxu0 %v2038
          %v2091 = vpop.f32.mrb[0].mxu0
          %v2092 = vadd.f32 0.0, %v2091
          %v2093 = vpop.f32.mrb[0].mxu0
          %v2094 = vpop.f32.mrb[0].mxu0
          %v2095 = vadd.f32 0.0, %v2094
          %v2096 = vpop.f32.mrb[0].mxu0
          %2097 = vmatprep.mubr.bf16.mxu0 0
          %2098 = vmatmul.mubr.bf16.gmra.mrb[0].mxu0 %v2041
          %v2099 = vpop.f32.mrb[0].mxu0
          %v2100 = vadd.f32 0.0, %v2099
          %v2101 = vpop.f32.mrb[0].mxu0
          %v2102 = vpop.f32.mrb[0].mxu0
          %v2103 = vadd.f32 0.0, %v2102
          %v2104 = vpop.f32.mrb[0].mxu0
          %2105 = vmatprep.mubr.bf16.mxu0 0
          %2106 = vmatmul.mubr.bf16.gmra.mrb[0].mxu0 %v2044
          %v2107 = vpop.f32.mrb[0].mxu0
          %v2108 = vadd.f32 0.0, %v2107
          %v2109 = vpop.f32.mrb[0].mxu0
          %v2110 = vpop.f32.mrb[0].mxu0
          %v2111 = vadd.f32 0.0, %v2110
          %v2112 = vpop.f32.mrb[0].mxu0
          %2113 = vdwg.mxu0
          %v2114 = vadd.f32 %v1902, %v2084
          %v2115 = vadd.f32 %v1903, %v2087
          %v2116 = vadd.f32 %v1904, %v2092
          %v2117 = vadd.f32 %v1905, %v2095
          %v2118 = vadd.f32 %v1906, %v2100
          %v2119 = vadd.f32 %v1907, %v2103
          %v2120 = vadd.f32 %v1908, %v2108
          %v2121 = vadd.f32 %v1909, %v2111
          %v2122 = vld [vmem:[%s1028] sm:$0xf]
          %v2123 = vld [vmem:[%s1028 + $0x4] sm:$0x1]
          %v2124 = vld [vmem:[%s1028 + $0x8] sm:$0xf]
          %v2125 = vld [vmem:[%s1028 + $0xc] sm:$0x1]
          %v2126 = vld [vmem:[%s1028 + $0x10] sm:$0xf]
          %v2127 = vld [vmem:[%s1028 + $0x14] sm:$0x1]
          %v2128 = vld [vmem:[%s1028 + $0x18] sm:$0xf]
          %v2129 = vld [vmem:[%s1028 + $0x1c] sm:$0x1]
          %v2130 = vld [vmem:[%s1028 + $0x20] sm:$0xf]
          %v2131 = vld [vmem:[%s1028 + $0x24] sm:$0x1]
          %v2132 = vld [vmem:[%s1028 + $0x28] sm:$0xf]
          %v2133 = vld [vmem:[%s1028 + $0x2c] sm:$0x1]
          %v2134 = vld [vmem:[%s1028 + $0x30] sm:$0xf]
          %v2135 = vld [vmem:[%s1028 + $0x34] sm:$0x1]
          %v2136 = vld [vmem:[%s1028 + $0x38] sm:$0xf]
          %v2137 = vld [vmem:[%s1028 + $0x3c] sm:$0x1]
          %v2139 = vshrl.u32 %v2122, 16
          %v2141 = vrot.slane %v2139, 4
          %v2142 = vshll.u32 %v2122, 16
          %v2144 = vrot.slane %v2142, 5
          %v2145 = vor.u32 %v2141, %v2144
          %v2146 = vrot.slane %v2145, 4
          %v2148 = vshll.u32 %v2123, 16
          %v2150 = vrot.slane %v2148, 5
          %v2151 = vsel %vm427, %v2146, %v2150
          %v2153 = vshrl.u32 %v2124, 16
          %v2155 = vrot.slane %v2153, 4
          %v2156 = vshll.u32 %v2124, 16
          %v2158 = vrot.slane %v2156, 5
          %v2159 = vor.u32 %v2155, %v2158
          %v2160 = vrot.slane %v2159, 4
          %v2162 = vshll.u32 %v2125, 16
          %v2164 = vrot.slane %v2162, 5
          %v2165 = vsel %vm427, %v2160, %v2164
          %v2167 = vshrl.u32 %v2126, 16
          %v2169 = vrot.slane %v2167, 4
          %v2170 = vshll.u32 %v2126, 16
          %v2172 = vrot.slane %v2170, 5
          %v2173 = vor.u32 %v2169, %v2172
          %v2174 = vrot.slane %v2173, 4
          %v2176 = vshll.u32 %v2127, 16
          %v2178 = vrot.slane %v2176, 5
          %v2179 = vsel %vm427, %v2174, %v2178
          %v2181 = vshrl.u32 %v2128, 16
          %v2183 = vrot.slane %v2181, 4
          %v2184 = vshll.u32 %v2128, 16
          %v2186 = vrot.slane %v2184, 5
          %v2187 = vor.u32 %v2183, %v2186
          %v2188 = vrot.slane %v2187, 4
          %v2190 = vshll.u32 %v2129, 16
          %v2192 = vrot.slane %v2190, 5
          %v2193 = vsel %vm427, %v2188, %v2192
          %v2195 = vshrl.u32 %v2130, 16
          %v2197 = vrot.slane %v2195, 4
          %v2198 = vshll.u32 %v2130, 16
          %v2200 = vrot.slane %v2198, 5
          %v2201 = vor.u32 %v2197, %v2200
          %v2202 = vrot.slane %v2201, 4
          %v2204 = vshll.u32 %v2131, 16
          %v2206 = vrot.slane %v2204, 5
          %v2207 = vsel %vm427, %v2202, %v2206
          %v2209 = vshrl.u32 %v2132, 16
          %v2211 = vrot.slane %v2209, 4
          %v2212 = vshll.u32 %v2132, 16
          %v2214 = vrot.slane %v2212, 5
          %v2215 = vor.u32 %v2211, %v2214
          %v2216 = vrot.slane %v2215, 4
          %v2218 = vshll.u32 %v2133, 16
          %v2220 = vrot.slane %v2218, 5
          %v2221 = vsel %vm427, %v2216, %v2220
          %v2223 = vshrl.u32 %v2134, 16
          %v2225 = vrot.slane %v2223, 4
          %v2226 = vshll.u32 %v2134, 16
          %v2228 = vrot.slane %v2226, 5
          %v2229 = vor.u32 %v2225, %v2228
          %v2230 = vrot.slane %v2229, 4
          %v2232 = vshll.u32 %v2135, 16
          %v2234 = vrot.slane %v2232, 5
          %v2235 = vsel %vm427, %v2230, %v2234
          %v2237 = vshrl.u32 %v2136, 16
          %v2239 = vrot.slane %v2237, 4
          %v2240 = vshll.u32 %v2136, 16
          %v2242 = vrot.slane %v2240, 5
          %v2243 = vor.u32 %v2239, %v2242
          %v2244 = vrot.slane %v2243, 4
          %v2246 = vshll.u32 %v2137, 16
          %v2248 = vrot.slane %v2246, 5
          %v2249 = vsel %vm427, %v2244, %v2248
          %v2250 = vunpack.c.l.b16 %v2151
          %v2251 = vunpack.c.l.b16 %v2165
          %v2252 = vunpack.c.l.b16 %v2179
          %v2253 = vunpack.c.l.b16 %v2193
          %v2254 = vunpack.c.l.b16 %v2207
          %v2255 = vunpack.c.l.b16 %v2221
          %v2256 = vunpack.c.l.b16 %v2235
          %v2257 = vunpack.c.l.b16 %v2249
          %v2258 = vpack.c.b16 %v2251, %v2250
          %v2259 = vpack.c.b16 %v2253, %v2252
          %v2260 = vpack.c.b16 %v2255, %v2254
          %v2261 = vpack.c.b16 %v2257, %v2256
          %v2263 = vsel %vm767, %v2258, 0
          %v2266 = vsel %vm767, %v2259, 0
          %v2269 = vsel %vm767, %v2260, 0
          %v2272 = vsel %vm767, %v2261, 0
          %v2275 = vsel %vm780, %v1090, 0
          %2277 = vmatprep.subr.bf16.mxu0 0
          %2278 = vmatpush1.bf16.msra.mxu0 %v2275
          %2279 = vmatprep.subr.bf16.mxu0 0
          %2280 = vmatpush1.bf16.msra.mxu0 0
          %2281 = vmatprep.subr.bf16.mxu0 0
          %2282 = vmatpush1.bf16.msra.mxu0 0
          %2283 = vmatprep.subr.bf16.mxu0 0
          %2284 = vmatpush1.bf16.msra.mxu0 0
          %2285 = vmatprep.subr.bf16.mxu0 0
          %2286 = vmatpush1.bf16.msra.mxu0 0
          %2287 = vmatprep.subr.bf16.mxu0 0
          %2288 = vmatpush1.bf16.msra.mxu0 0
          %2289 = vmatprep.subr.bf16.mxu0 0
          %2290 = vmatpush1.bf16.msra.mxu0 0
          %2291 = vmatprep.subr.bf16.mxu0 0
          %2292 = vmatpush1.bf16.msra.mxu0 0
          %2293 = vmatprep.subr.bf16.mxu0 0
          %2294 = vmatpush1.bf16.msra.mxu0 0
          %2295 = vmatprep.subr.bf16.mxu0 0
          %2296 = vmatpush1.bf16.msra.mxu0 0
          %2297 = vmatprep.subr.bf16.mxu0 0
          %2298 = vmatpush1.bf16.msra.mxu0 0
          %2299 = vmatprep.subr.bf16.mxu0 0
          %2300 = vmatpush1.bf16.msra.mxu0 0
          %2301 = vmatprep.subr.bf16.mxu0 0
          %2302 = vmatpush1.bf16.msra.mxu0 0
          %2303 = vmatprep.subr.bf16.mxu0 0
          %2304 = vmatpush1.bf16.msra.mxu0 0
          %2305 = vmatprep.subr.bf16.mxu0 0
          %2306 = vmatpush1.bf16.msra.mxu0 0
          %2307 = vmatprep.subr.bf16.mxu0 0
          %2308 = vmatpush1.bf16.msra.mxu0 0
          %2309 = vmatprep.mubr.bf16.mxu0 0
          %2310 = vmatmul.mubr.bf16.gmra.mrb[0].mxu0 %v2263
          %v2311 = vpop.f32.mrb[0].mxu0
          %v2312 = vadd.f32 0.0, %v2311
          %v2313 = vpop.f32.mrb[0].mxu0
          %v2314 = vpop.f32.mrb[0].mxu0
          %v2315 = vadd.f32 0.0, %v2314
          %v2316 = vpop.f32.mrb[0].mxu0
          %2317 = vmatprep.mubr.bf16.mxu0 0
          %2318 = vmatmul.mubr.bf16.gmra.mrb[0].mxu0 %v2266
          %v2319 = vpop.f32.mrb[0].mxu0
          %v2320 = vadd.f32 0.0, %v2319
          %v2321 = vpop.f32.mrb[0].mxu0
          %v2322 = vpop.f32.mrb[0].mxu0
          %v2323 = vadd.f32 0.0, %v2322
          %v2324 = vpop.f32.mrb[0].mxu0
          %2325 = vmatprep.mubr.bf16.mxu0 0
          %2326 = vmatmul.mubr.bf16.gmra.mrb[0].mxu0 %v2269
          %v2327 = vpop.f32.mrb[0].mxu0
          %v2328 = vadd.f32 0.0, %v2327
          %v2329 = vpop.f32.mrb[0].mxu0
          %v2330 = vpop.f32.mrb[0].mxu0
          %v2331 = vadd.f32 0.0, %v2330
          %v2332 = vpop.f32.mrb[0].mxu0
          %2333 = vmatprep.mubr.bf16.mxu0 0
          %2334 = vmatmul.mubr.bf16.gmra.mrb[0].mxu0 %v2272
          %v2335 = vpop.f32.mrb[0].mxu0
          %v2336 = vadd.f32 0.0, %v2335
          %v2337 = vpop.f32.mrb[0].mxu0
          %v2338 = vpop.f32.mrb[0].mxu0
          %v2339 = vadd.f32 0.0, %v2338
          %v2340 = vpop.f32.mrb[0].mxu0
          %2341 = vdwg.mxu0
          %v2342 = vadd.f32 %v2018, %v2312
          %v2343 = vadd.f32 %v2019, %v2315
          %v2344 = vadd.f32 %v2020, %v2320
          %v2345 = vadd.f32 %v2021, %v2323
          %v2346 = vadd.f32 %v2022, %v2328
          %v2347 = vadd.f32 %v2023, %v2331
          %v2348 = vadd.f32 %v2024, %v2336
          %v2349 = vadd.f32 %v2025, %v2339
          %2350 = vrot.lane.b32.xlu0 %v2258, 124
          %v2351 = vpop.permute.xlu0 %2350
          %2352 = vrot.lane.b32.xlu0 %v2259, 124
          %v2353 = vpop.permute.xlu0 %2352
          %2354 = vrot.lane.b32.xlu0 %v2260, 124
          %v2355 = vpop.permute.xlu0 %2354
          %2356 = vrot.lane.b32.xlu0 %v2261, 124
          %v2357 = vpop.permute.xlu0 %2356
          %v2359 = vsel %vm767, %v2351, 0
          %v2362 = vsel %vm767, %v2353, 0
          %v2365 = vsel %vm767, %v2355, 0
          %v2368 = vsel %vm767, %v2357, 0
          %v2371 = vsel %vm780, %v1101, 0
          %2373 = vmatprep.subr.bf16.mxu0 0
          %2374 = vmatpush1.bf16.msra.mxu0 %v2371
          %2375 = vmatprep.subr.bf16.mxu0 0
          %2376 = vmatpush1.bf16.msra.mxu0 0
          %2377 = vmatprep.subr.bf16.mxu0 0
          %2378 = vmatpush1.bf16.msra.mxu0 0
          %2379 = vmatprep.subr.bf16.mxu0 0
          %2380 = vmatpush1.bf16.msra.mxu0 0
          %2381 = vmatprep.subr.bf16.mxu0 0
          %2382 = vmatpush1.bf16.msra.mxu0 0
          %2383 = vmatprep.subr.bf16.mxu0 0
          %2384 = vmatpush1.bf16.msra.mxu0 0
          %2385 = vmatprep.subr.bf16.mxu0 0
          %2386 = vmatpush1.bf16.msra.mxu0 0
          %2387 = vmatprep.subr.bf16.mxu0 0
          %2388 = vmatpush1.bf16.msra.mxu0 0
          %2389 = vmatprep.subr.bf16.mxu0 0
          %2390 = vmatpush1.bf16.msra.mxu0 0
          %2391 = vmatprep.subr.bf16.mxu0 0
          %2392 = vmatpush1.bf16.msra.mxu0 0
          %2393 = vmatprep.subr.bf16.mxu0 0
          %2394 = vmatpush1.bf16.msra.mxu0 0
          %2395 = vmatprep.subr.bf16.mxu0 0
          %2396 = vmatpush1.bf16.msra.mxu0 0
          %2397 = vmatprep.subr.bf16.mxu0 0
          %2398 = vmatpush1.bf16.msra.mxu0 0
          %2399 = vmatprep.subr.bf16.mxu0 0
          %2400 = vmatpush1.bf16.msra.mxu0 0
          %2401 = vmatprep.subr.bf16.mxu0 0
          %2402 = vmatpush1.bf16.msra.mxu0 0
          %2403 = vmatprep.subr.bf16.mxu0 0
          %2404 = vmatpush1.bf16.msra.mxu0 0
          %2405 = vmatprep.mubr.bf16.mxu0 0
          %2406 = vmatmul.mubr.bf16.gmra.mrb[0].mxu0 %v2359
          %v2407 = vpop.f32.mrb[0].mxu0
          %v2408 = vadd.f32 0.0, %v2407
          %v2409 = vpop.f32.mrb[0].mxu0
          %v2410 = vpop.f32.mrb[0].mxu0
          %v2411 = vadd.f32 0.0, %v2410
          %v2412 = vpop.f32.mrb[0].mxu0
          %2413 = vmatprep.mubr.bf16.mxu0 0
          %2414 = vmatmul.mubr.bf16.gmra.mrb[0].mxu0 %v2362
          %v2415 = vpop.f32.mrb[0].mxu0
          %v2416 = vadd.f32 0.0, %v2415
          %v2417 = vpop.f32.mrb[0].mxu0
          %v2418 = vpop.f32.mrb[0].mxu0
          %v2419 = vadd.f32 0.0, %v2418
          %v2420 = vpop.f32.mrb[0].mxu0
          %2421 = vmatprep.mubr.bf16.mxu0 0
          %2422 = vmatmul.mubr.bf16.gmra.mrb[0].mxu0 %v2365
          %v2423 = vpop.f32.mrb[0].mxu0
          %v2424 = vadd.f32 0.0, %v2423
          %v2425 = vpop.f32.mrb[0].mxu0
          %v2426 = vpop.f32.mrb[0].mxu0
          %v2427 = vadd.f32 0.0, %v2426
          %v2428 = vpop.f32.mrb[0].mxu0
          %2429 = vmatprep.mubr.bf16.mxu0 0
          %2430 = vmatmul.mubr.bf16.gmra.mrb[0].mxu0 %v2368
          %v2431 = vpop.f32.mrb[0].mxu0
          %v2432 = vadd.f32 0.0, %v2431
          %v2433 = vpop.f32.mrb[0].mxu0
          %v2434 = vpop.f32.mrb[0].mxu0
          %v2435 = vadd.f32 0.0, %v2434
          %v2436 = vpop.f32.mrb[0].mxu0
          %2437 = vdwg.mxu0
          %v2438 = vadd.f32 %v2114, %v2408
          %v2439 = vadd.f32 %v2115, %v2411
          %v2440 = vadd.f32 %v2116, %v2416
          %v2441 = vadd.f32 %v2117, %v2419
          %v2442 = vadd.f32 %v2118, %v2424
          %v2443 = vadd.f32 %v2119, %v2427
          %v2444 = vadd.f32 %v2120, %v2432
          %v2445 = vadd.f32 %v2121, %v2435
          %v2446 = vld [vmem:[%s1028] sm:$0xe]
          %v2447 = vld [vmem:[%s1028 + $0x8] sm:$0xe]
          %v2448 = vld [vmem:[%s1028 + $0x10] sm:$0xe]
          %v2449 = vld [vmem:[%s1028 + $0x18] sm:$0xe]
          %v2450 = vld [vmem:[%s1028 + $0x20] sm:$0xe]
          %v2451 = vld [vmem:[%s1028 + $0x28] sm:$0xe]
          %v2452 = vld [vmem:[%s1028 + $0x30] sm:$0xe]
          %v2453 = vld [vmem:[%s1028 + $0x38] sm:$0xe]
          %v2470 = vrot.slane %v2446, 5
          %v2471 = vrot.slane %v2470, 4
          %v2472 = vrot.slane %v2123, 5
          %v2473 = vsel %vm574, %v2471, %v2472
          %v2474 = vrot.slane %v2447, 5
          %v2475 = vrot.slane %v2474, 4
          %v2476 = vrot.slane %v2125, 5
          %v2477 = vsel %vm574, %v2475, %v2476
          %v2478 = vrot.slane %v2448, 5
          %v2479 = vrot.slane %v2478, 4
          %v2480 = vrot.slane %v2127, 5
          %v2481 = vsel %vm574, %v2479, %v2480
          %v2482 = vrot.slane %v2449, 5
          %v2483 = vrot.slane %v2482, 4
          %v2484 = vrot.slane %v2129, 5
          %v2485 = vsel %vm574, %v2483, %v2484
          %v2486 = vrot.slane %v2450, 5
          %v2487 = vrot.slane %v2486, 4
          %v2488 = vrot.slane %v2131, 5
          %v2489 = vsel %vm574, %v2487, %v2488
          %v2490 = vrot.slane %v2451, 5
          %v2491 = vrot.slane %v2490, 4
          %v2492 = vrot.slane %v2133, 5
          %v2493 = vsel %vm574, %v2491, %v2492
          %v2494 = vrot.slane %v2452, 5
          %v2495 = vrot.slane %v2494, 4
          %v2496 = vrot.slane %v2135, 5
          %v2497 = vsel %vm574, %v2495, %v2496
          %v2498 = vrot.slane %v2453, 5
          %v2499 = vrot.slane %v2498, 4
          %v2500 = vrot.slane %v2137, 5
          %v2501 = vsel %vm574, %v2499, %v2500
          %v2502 = vunpack.c.l.b16 %v2473
          %v2503 = vunpack.c.l.b16 %v2477
          %v2504 = vunpack.c.l.b16 %v2481
          %v2505 = vunpack.c.l.b16 %v2485
          %v2506 = vunpack.c.l.b16 %v2489
          %v2507 = vunpack.c.l.b16 %v2493
          %v2508 = vunpack.c.l.b16 %v2497
          %v2509 = vunpack.c.l.b16 %v2501
          %v2510 = vpack.c.b16 %v2503, %v2502
          %v2511 = vpack.c.b16 %v2505, %v2504
          %v2512 = vpack.c.b16 %v2507, %v2506
          %v2513 = vpack.c.b16 %v2509, %v2508
          %v2515 = vsel %vm767, %v2510, 0
          %v2518 = vsel %vm767, %v2511, 0
          %v2521 = vsel %vm767, %v2512, 0
          %v2524 = vsel %vm767, %v2513, 0
          %v2527 = vsel %vm780, %v1091, 0
          %2529 = vmatprep.subr.bf16.mxu0 0
          %2530 = vmatpush1.bf16.msra.mxu0 %v2527
          %2531 = vmatprep.subr.bf16.mxu0 0
          %2532 = vmatpush1.bf16.msra.mxu0 0
          %2533 = vmatprep.subr.bf16.mxu0 0
          %2534 = vmatpush1.bf16.msra.mxu0 0
          %2535 = vmatprep.subr.bf16.mxu0 0
          %2536 = vmatpush1.bf16.msra.mxu0 0
          %2537 = vmatprep.subr.bf16.mxu0 0
          %2538 = vmatpush1.bf16.msra.mxu0 0
          %2539 = vmatprep.subr.bf16.mxu0 0
          %2540 = vmatpush1.bf16.msra.mxu0 0
          %2541 = vmatprep.subr.bf16.mxu0 0
          %2542 = vmatpush1.bf16.msra.mxu0 0
          %2543 = vmatprep.subr.bf16.mxu0 0
          %2544 = vmatpush1.bf16.msra.mxu0 0
          %2545 = vmatprep.subr.bf16.mxu0 0
          %2546 = vmatpush1.bf16.msra.mxu0 0
          %2547 = vmatprep.subr.bf16.mxu0 0
          %2548 = vmatpush1.bf16.msra.mxu0 0
          %2549 = vmatprep.subr.bf16.mxu0 0
          %2550 = vmatpush1.bf16.msra.mxu0 0
          %2551 = vmatprep.subr.bf16.mxu0 0
          %2552 = vmatpush1.bf16.msra.mxu0 0
          %2553 = vmatprep.subr.bf16.mxu0 0
          %2554 = vmatpush1.bf16.msra.mxu0 0
          %2555 = vmatprep.subr.bf16.mxu0 0
          %2556 = vmatpush1.bf16.msra.mxu0 0
          %2557 = vmatprep.subr.bf16.mxu0 0
          %2558 = vmatpush1.bf16.msra.mxu0 0
          %2559 = vmatprep.subr.bf16.mxu0 0
          %2560 = vmatpush1.bf16.msra.mxu0 0
          %2561 = vmatprep.mubr.bf16.mxu0 0
          %2562 = vmatmul.mubr.bf16.gmra.mrb[0].mxu0 %v2515
          %v2563 = vpop.f32.mrb[0].mxu0
          %v2564 = vadd.f32 0.0, %v2563
          %v2565 = vpop.f32.mrb[0].mxu0
          %v2566 = vpop.f32.mrb[0].mxu0
          %v2567 = vadd.f32 0.0, %v2566
          %v2568 = vpop.f32.mrb[0].mxu0
          %2569 = vmatprep.mubr.bf16.mxu0 0
          %2570 = vmatmul.mubr.bf16.gmra.mrb[0].mxu0 %v2518
          %v2571 = vpop.f32.mrb[0].mxu0
          %v2572 = vadd.f32 0.0, %v2571
          %v2573 = vpop.f32.mrb[0].mxu0
          %v2574 = vpop.f32.mrb[0].mxu0
          %v2575 = vadd.f32 0.0, %v2574
          %v2576 = vpop.f32.mrb[0].mxu0
          %2577 = vmatprep.mubr.bf16.mxu0 0
          %2578 = vmatmul.mubr.bf16.gmra.mrb[0].mxu0 %v2521
          %v2579 = vpop.f32.mrb[0].mxu0
          %v2580 = vadd.f32 0.0, %v2579
          %v2581 = vpop.f32.mrb[0].mxu0
          %v2582 = vpop.f32.mrb[0].mxu0
          %v2583 = vadd.f32 0.0, %v2582
          %v2584 = vpop.f32.mrb[0].mxu0
          %2585 = vmatprep.mubr.bf16.mxu0 0
          %2586 = vmatmul.mubr.bf16.gmra.mrb[0].mxu0 %v2524
          %v2587 = vpop.f32.mrb[0].mxu0
          %v2588 = vadd.f32 0.0, %v2587
          %v2589 = vpop.f32.mrb[0].mxu0
          %v2590 = vpop.f32.mrb[0].mxu0
          %v2591 = vadd.f32 0.0, %v2590
          %v2592 = vpop.f32.mrb[0].mxu0
          %2593 = vdwg.mxu0
          %v2594 = vadd.f32 %v2342, %v2564
          %v2595 = vadd.f32 %v2343, %v2567
          %v2596 = vadd.f32 %v2344, %v2572
          %v2597 = vadd.f32 %v2345, %v2575
          %v2598 = vadd.f32 %v2346, %v2580
          %v2599 = vadd.f32 %v2347, %v2583
          %v2600 = vadd.f32 %v2348, %v2588
          %v2601 = vadd.f32 %v2349, %v2591
          %2602 = vrot.lane.b32.xlu0 %v2510, 124
          %v2603 = vpop.permute.xlu0 %2602
          %2604 = vrot.lane.b32.xlu0 %v2511, 124
          %v2605 = vpop.permute.xlu0 %2604
          %2606 = vrot.lane.b32.xlu0 %v2512, 124
          %v2607 = vpop.permute.xlu0 %2606
          %2608 = vrot.lane.b32.xlu0 %v2513, 124
          %v2609 = vpop.permute.xlu0 %2608
          %v2611 = vsel %vm767, %v2603, 0
          %v2614 = vsel %vm767, %v2605, 0
          %v2617 = vsel %vm767, %v2607, 0
          %v2620 = vsel %vm767, %v2609, 0
          %v2623 = vsel %vm780, %v1102, 0
          %2625 = vmatprep.subr.bf16.mxu0 0
          %2626 = vmatpush1.bf16.msra.mxu0 %v2623
          %2627 = vmatprep.subr.bf16.mxu0 0
          %2628 = vmatpush1.bf16.msra.mxu0 0
          %2629 = vmatprep.subr.bf16.mxu0 0
          %2630 = vmatpush1.bf16.msra.mxu0 0
          %2631 = vmatprep.subr.bf16.mxu0 0
          %2632 = vmatpush1.bf16.msra.mxu0 0
          %2633 = vmatprep.subr.bf16.mxu0 0
          %2634 = vmatpush1.bf16.msra.mxu0 0
          %2635 = vmatprep.subr.bf16.mxu0 0
          %2636 = vmatpush1.bf16.msra.mxu0 0
          %2637 = vmatprep.subr.bf16.mxu0 0
          %2638 = vmatpush1.bf16.msra.mxu0 0
          %2639 = vmatprep.subr.bf16.mxu0 0
          %2640 = vmatpush1.bf16.msra.mxu0 0
          %2641 = vmatprep.subr.bf16.mxu0 0
          %2642 = vmatpush1.bf16.msra.mxu0 0
          %2643 = vmatprep.subr.bf16.mxu0 0
          %2644 = vmatpush1.bf16.msra.mxu0 0
          %2645 = vmatprep.subr.bf16.mxu0 0
          %2646 = vmatpush1.bf16.msra.mxu0 0
          %2647 = vmatprep.subr.bf16.mxu0 0
          %2648 = vmatpush1.bf16.msra.mxu0 0
          %2649 = vmatprep.subr.bf16.mxu0 0
          %2650 = vmatpush1.bf16.msra.mxu0 0
          %2651 = vmatprep.subr.bf16.mxu0 0
          %2652 = vmatpush1.bf16.msra.mxu0 0
          %2653 = vmatprep.subr.bf16.mxu0 0
          %2654 = vmatpush1.bf16.msra.mxu0 0
          %2655 = vmatprep.subr.bf16.mxu0 0
          %2656 = vmatpush1.bf16.msra.mxu0 0
          %2657 = vmatprep.mubr.bf16.mxu0 0
          %2658 = vmatmul.mubr.bf16.gmra.mrb[0].mxu0 %v2611
          %v2659 = vpop.f32.mrb[0].mxu0
          %v2660 = vadd.f32 0.0, %v2659
          %v2661 = vpop.f32.mrb[0].mxu0
          %v2662 = vpop.f32.mrb[0].mxu0
          %v2663 = vadd.f32 0.0, %v2662
          %v2664 = vpop.f32.mrb[0].mxu0
          %2665 = vmatprep.mubr.bf16.mxu0 0
          %2666 = vmatmul.mubr.bf16.gmra.mrb[0].mxu0 %v2614
          %v2667 = vpop.f32.mrb[0].mxu0
          %v2668 = vadd.f32 0.0, %v2667
          %v2669 = vpop.f32.mrb[0].mxu0
          %v2670 = vpop.f32.mrb[0].mxu0
          %v2671 = vadd.f32 0.0, %v2670
          %v2672 = vpop.f32.mrb[0].mxu0
          %2673 = vmatprep.mubr.bf16.mxu0 0
          %2674 = vmatmul.mubr.bf16.gmra.mrb[0].mxu0 %v2617
          %v2675 = vpop.f32.mrb[0].mxu0
          %v2676 = vadd.f32 0.0, %v2675
          %v2677 = vpop.f32.mrb[0].mxu0
          %v2678 = vpop.f32.mrb[0].mxu0
          %v2679 = vadd.f32 0.0, %v2678
          %v2680 = vpop.f32.mrb[0].mxu0
          %2681 = vmatprep.mubr.bf16.mxu0 0
          %2682 = vmatmul.mubr.bf16.gmra.mrb[0].mxu0 %v2620
          %v2683 = vpop.f32.mrb[0].mxu0
          %v2684 = vadd.f32 0.0, %v2683
          %v2685 = vpop.f32.mrb[0].mxu0
          %v2686 = vpop.f32.mrb[0].mxu0
          %v2687 = vadd.f32 0.0, %v2686
          %v2688 = vpop.f32.mrb[0].mxu0
          %2689 = vdwg.mxu0
          %v2690 = vadd.f32 %v2438, %v2660
          %v2691 = vadd.f32 %v2439, %v2663
          %v2692 = vadd.f32 %v2440, %v2668
          %v2693 = vadd.f32 %v2441, %v2671
          %v2694 = vadd.f32 %v2442, %v2676
          %v2695 = vadd.f32 %v2443, %v2679
          %v2696 = vadd.f32 %v2444, %v2684
          %v2697 = vadd.f32 %v2445, %v2687
          %s2698 = scalar_lea.vmem [#allocation6], 16
          %v2699 = vld [vmem:[%s2698] sm:$0xf]
          %v2700 = vld [vmem:[%s2698 + $0x8] sm:$0xf]
          %v2701 = vld [vmem:[%s2698 + $0x10] sm:$0xf]
          %v2702 = vld [vmem:[%s2698 + $0x18] sm:$0xf]
          %v2703 = vld [vmem:[%s2698 + $0x20] sm:$0xf]
          %v2704 = vld [vmem:[%s2698 + $0x28] sm:$0xf]
          %v2705 = vld [vmem:[%s2698 + $0x30] sm:$0xf]
          %v2706 = vld [vmem:[%s2698 + $0x38] sm:$0xf]
          %v2715 = vunpack.c.l.b16 %v2699
          %v2716 = vunpack.c.l.b16 %v2700
          %v2717 = vunpack.c.l.b16 %v2701
          %v2718 = vunpack.c.l.b16 %v2702
          %v2719 = vunpack.c.l.b16 %v2703
          %v2720 = vunpack.c.l.b16 %v2704
          %v2721 = vunpack.c.l.b16 %v2705
          %v2722 = vunpack.c.l.b16 %v2706
          %v2723 = vpack.c.b16 %v2716, %v2715
          %v2724 = vpack.c.b16 %v2718, %v2717
          %v2725 = vpack.c.b16 %v2720, %v2719
          %v2726 = vpack.c.b16 %v2722, %v2721
          %v2728 = vsel %vm767, %v2723, 0
          %v2731 = vsel %vm767, %v2724, 0
          %v2734 = vsel %vm767, %v2725, 0
          %v2737 = vsel %vm767, %v2726, 0
          %v2740 = vsel %vm780, %v1092, 0
          %2742 = vmatprep.subr.bf16.mxu0 0
          %2743 = vmatpush1.bf16.msra.mxu0 %v2740
          %2744 = vmatprep.subr.bf16.mxu0 0
          %2745 = vmatpush1.bf16.msra.mxu0 0
          %2746 = vmatprep.subr.bf16.mxu0 0
          %2747 = vmatpush1.bf16.msra.mxu0 0
          %2748 = vmatprep.subr.bf16.mxu0 0
          %2749 = vmatpush1.bf16.msra.mxu0 0
          %2750 = vmatprep.subr.bf16.mxu0 0
          %2751 = vmatpush1.bf16.msra.mxu0 0
          %2752 = vmatprep.subr.bf16.mxu0 0
          %2753 = vmatpush1.bf16.msra.mxu0 0
          %2754 = vmatprep.subr.bf16.mxu0 0
          %2755 = vmatpush1.bf16.msra.mxu0 0
          %2756 = vmatprep.subr.bf16.mxu0 0
          %2757 = vmatpush1.bf16.msra.mxu0 0
          %2758 = vmatprep.subr.bf16.mxu0 0
          %2759 = vmatpush1.bf16.msra.mxu0 0
          %2760 = vmatprep.subr.bf16.mxu0 0
          %2761 = vmatpush1.bf16.msra.mxu0 0
          %2762 = vmatprep.subr.bf16.mxu0 0
          %2763 = vmatpush1.bf16.msra.mxu0 0
          %2764 = vmatprep.subr.bf16.mxu0 0
          %2765 = vmatpush1.bf16.msra.mxu0 0
          %2766 = vmatprep.subr.bf16.mxu0 0
          %2767 = vmatpush1.bf16.msra.mxu0 0
          %2768 = vmatprep.subr.bf16.mxu0 0
          %2769 = vmatpush1.bf16.msra.mxu0 0
          %2770 = vmatprep.subr.bf16.mxu0 0
          %2771 = vmatpush1.bf16.msra.mxu0 0
          %2772 = vmatprep.subr.bf16.mxu0 0
          %2773 = vmatpush1.bf16.msra.mxu0 0
          %2774 = vmatprep.mubr.bf16.mxu0 0
          %2775 = vmatmul.mubr.bf16.gmra.mrb[0].mxu0 %v2728
          %v2776 = vpop.f32.mrb[0].mxu0
          %v2777 = vadd.f32 0.0, %v2776
          %v2778 = vpop.f32.mrb[0].mxu0
          %v2779 = vpop.f32.mrb[0].mxu0
          %v2780 = vadd.f32 0.0, %v2779
          %v2781 = vpop.f32.mrb[0].mxu0
          %2782 = vmatprep.mubr.bf16.mxu0 0
          %2783 = vmatmul.mubr.bf16.gmra.mrb[0].mxu0 %v2731
          %v2784 = vpop.f32.mrb[0].mxu0
          %v2785 = vadd.f32 0.0, %v2784
          %v2786 = vpop.f32.mrb[0].mxu0
          %v2787 = vpop.f32.mrb[0].mxu0
          %v2788 = vadd.f32 0.0, %v2787
          %v2789 = vpop.f32.mrb[0].mxu0
          %2790 = vmatprep.mubr.bf16.mxu0 0
          %2791 = vmatmul.mubr.bf16.gmra.mrb[0].mxu0 %v2734
          %v2792 = vpop.f32.mrb[0].mxu0
          %v2793 = vadd.f32 0.0, %v2792
          %v2794 = vpop.f32.mrb[0].mxu0
          %v2795 = vpop.f32.mrb[0].mxu0
          %v2796 = vadd.f32 0.0, %v2795
          %v2797 = vpop.f32.mrb[0].mxu0
          %2798 = vmatprep.mubr.bf16.mxu0 0
          %2799 = vmatmul.mubr.bf16.gmra.mrb[0].mxu0 %v2737
          %v2800 = vpop.f32.mrb[0].mxu0
          %v2801 = vadd.f32 0.0, %v2800
          %v2802 = vpop.f32.mrb[0].mxu0
          %v2803 = vpop.f32.mrb[0].mxu0
          %v2804 = vadd.f32 0.0, %v2803
          %v2805 = vpop.f32.mrb[0].mxu0
          %2806 = vdwg.mxu0
          %v2807 = vadd.f32 %v2594, %v2777
          %v2808 = vadd.f32 %v2595, %v2780
          %v2809 = vadd.f32 %v2596, %v2785
          %v2810 = vadd.f32 %v2597, %v2788
          %v2811 = vadd.f32 %v2598, %v2793
          %v2812 = vadd.f32 %v2599, %v2796
          %v2813 = vadd.f32 %v2600, %v2801
          %v2814 = vadd.f32 %v2601, %v2804
          %2815 = vrot.lane.b32.xlu0 %v2723, 124
          %v2816 = vpop.permute.xlu0 %2815
          %2817 = vrot.lane.b32.xlu0 %v2724, 124
          %v2818 = vpop.permute.xlu0 %2817
          %2819 = vrot.lane.b32.xlu0 %v2725, 124
          %v2820 = vpop.permute.xlu0 %2819
          %2821 = vrot.lane.b32.xlu0 %v2726, 124
          %v2822 = vpop.permute.xlu0 %2821
          %v2824 = vsel %vm767, %v2816, 0
          %v2827 = vsel %vm767, %v2818, 0
          %v2830 = vsel %vm767, %v2820, 0
          %v2833 = vsel %vm767, %v2822, 0
          %v2836 = vsel %vm780, %v1103, 0
          %2838 = vmatprep.subr.bf16.mxu0 0
          %2839 = vmatpush1.bf16.msra.mxu0 %v2836
          %2840 = vmatprep.subr.bf16.mxu0 0
          %2841 = vmatpush1.bf16.msra.mxu0 0
          %2842 = vmatprep.subr.bf16.mxu0 0
          %2843 = vmatpush1.bf16.msra.mxu0 0
          %2844 = vmatprep.subr.bf16.mxu0 0
          %2845 = vmatpush1.bf16.msra.mxu0 0
          %2846 = vmatprep.subr.bf16.mxu0 0
          %2847 = vmatpush1.bf16.msra.mxu0 0
          %2848 = vmatprep.subr.bf16.mxu0 0
          %2849 = vmatpush1.bf16.msra.mxu0 0
          %2850 = vmatprep.subr.bf16.mxu0 0
          %2851 = vmatpush1.bf16.msra.mxu0 0
          %2852 = vmatprep.subr.bf16.mxu0 0
          %2853 = vmatpush1.bf16.msra.mxu0 0
          %2854 = vmatprep.subr.bf16.mxu0 0
          %2855 = vmatpush1.bf16.msra.mxu0 0
          %2856 = vmatprep.subr.bf16.mxu0 0
          %2857 = vmatpush1.bf16.msra.mxu0 0
          %2858 = vmatprep.subr.bf16.mxu0 0
          %2859 = vmatpush1.bf16.msra.mxu0 0
          %2860 = vmatprep.subr.bf16.mxu0 0
          %2861 = vmatpush1.bf16.msra.mxu0 0
          %2862 = vmatprep.subr.bf16.mxu0 0
          %2863 = vmatpush1.bf16.msra.mxu0 0
          %2864 = vmatprep.subr.bf16.mxu0 0
          %2865 = vmatpush1.bf16.msra.mxu0 0
          %2866 = vmatprep.subr.bf16.mxu0 0
          %2867 = vmatpush1.bf16.msra.mxu0 0
          %2868 = vmatprep.subr.bf16.mxu0 0
          %2869 = vmatpush1.bf16.msra.mxu0 0
          %2870 = vmatprep.mubr.bf16.mxu0 0
          %2871 = vmatmul.mubr.bf16.gmra.mrb[0].mxu0 %v2824
          %v2872 = vpop.f32.mrb[0].mxu0
          %v2873 = vadd.f32 0.0, %v2872
          %v2874 = vpop.f32.mrb[0].mxu0
          %v2875 = vpop.f32.mrb[0].mxu0
          %v2876 = vadd.f32 0.0, %v2875
          %v2877 = vpop.f32.mrb[0].mxu0
          %2878 = vmatprep.mubr.bf16.mxu0 0
          %2879 = vmatmul.mubr.bf16.gmra.mrb[0].mxu0 %v2827
          %v2880 = vpop.f32.mrb[0].mxu0
          %v2881 = vadd.f32 0.0, %v2880
          %v2882 = vpop.f32.mrb[0].mxu0
          %v2883 = vpop.f32.mrb[0].mxu0
          %v2884 = vadd.f32 0.0, %v2883
          %v2885 = vpop.f32.mrb[0].mxu0
          %2886 = vmatprep.mubr.bf16.mxu0 0
          %2887 = vmatmul.mubr.bf16.gmra.mrb[0].mxu0 %v2830
          %v2888 = vpop.f32.mrb[0].mxu0
          %v2889 = vadd.f32 0.0, %v2888
          %v2890 = vpop.f32.mrb[0].mxu0
          %v2891 = vpop.f32.mrb[0].mxu0
          %v2892 = vadd.f32 0.0, %v2891
          %v2893 = vpop.f32.mrb[0].mxu0
          %2894 = vmatprep.mubr.bf16.mxu0 0
          %2895 = vmatmul.mubr.bf16.gmra.mrb[0].mxu0 %v2833
          %v2896 = vpop.f32.mrb[0].mxu0
          %v2897 = vadd.f32 0.0, %v2896
          %v2898 = vpop.f32.mrb[0].mxu0
          %v2899 = vpop.f32.mrb[0].mxu0
          %v2900 = vadd.f32 0.0, %v2899
          %v2901 = vpop.f32.mrb[0].mxu0
          %2902 = vdwg.mxu0
          %v2903 = vadd.f32 %v2690, %v2873
          %v2904 = vadd.f32 %v2691, %v2876
          %v2905 = vadd.f32 %v2692, %v2881
          %v2906 = vadd.f32 %v2693, %v2884
          %v2907 = vadd.f32 %v2694, %v2889
          %v2908 = vadd.f32 %v2695, %v2892
          %v2909 = vadd.f32 %v2696, %v2897
          %v2910 = vadd.f32 %v2697, %v2900
          %v2911 = vld [vmem:[%s2698] sm:$0xf]
          %v2912 = vld [vmem:[%s2698 + $0x4] sm:$0x1]
          %v2913 = vld [vmem:[%s2698 + $0x8] sm:$0xf]
          %v2914 = vld [vmem:[%s2698 + $0xc] sm:$0x1]
          %v2915 = vld [vmem:[%s2698 + $0x10] sm:$0xf]
          %v2916 = vld [vmem:[%s2698 + $0x14] sm:$0x1]
          %v2917 = vld [vmem:[%s2698 + $0x18] sm:$0xf]
          %v2918 = vld [vmem:[%s2698 + $0x1c] sm:$0x1]
          %v2919 = vld [vmem:[%s2698 + $0x20] sm:$0xf]
          %v2920 = vld [vmem:[%s2698 + $0x24] sm:$0x1]
          %v2921 = vld [vmem:[%s2698 + $0x28] sm:$0xf]
          %v2922 = vld [vmem:[%s2698 + $0x2c] sm:$0x1]
          %v2923 = vld [vmem:[%s2698 + $0x30] sm:$0xf]
          %v2924 = vld [vmem:[%s2698 + $0x34] sm:$0x1]
          %v2925 = vld [vmem:[%s2698 + $0x38] sm:$0xf]
          %v2926 = vld [vmem:[%s2698 + $0x3c] sm:$0x1]
          %v2928 = vshrl.u32 %v2911, 16
          %v2930 = vrot.slane %v2928, 4
          %v2931 = vshll.u32 %v2911, 16
          %v2933 = vrot.slane %v2931, 5
          %v2934 = vor.u32 %v2930, %v2933
          %v2935 = vrot.slane %v2934, 4
          %v2937 = vshll.u32 %v2912, 16
          %v2939 = vrot.slane %v2937, 5
          %v2940 = vsel %vm427, %v2935, %v2939
          %v2942 = vshrl.u32 %v2913, 16
          %v2944 = vrot.slane %v2942, 4
          %v2945 = vshll.u32 %v2913, 16
          %v2947 = vrot.slane %v2945, 5
          %v2948 = vor.u32 %v2944, %v2947
          %v2949 = vrot.slane %v2948, 4
          %v2951 = vshll.u32 %v2914, 16
          %v2953 = vrot.slane %v2951, 5
          %v2954 = vsel %vm427, %v2949, %v2953
          %v2956 = vshrl.u32 %v2915, 16
          %v2958 = vrot.slane %v2956, 4
          %v2959 = vshll.u32 %v2915, 16
          %v2961 = vrot.slane %v2959, 5
          %v2962 = vor.u32 %v2958, %v2961
          %v2963 = vrot.slane %v2962, 4
          %v2965 = vshll.u32 %v2916, 16
          %v2967 = vrot.slane %v2965, 5
          %v2968 = vsel %vm427, %v2963, %v2967
          %v2970 = vshrl.u32 %v2917, 16
          %v2972 = vrot.slane %v2970, 4
          %v2973 = vshll.u32 %v2917, 16
          %v2975 = vrot.slane %v2973, 5
          %v2976 = vor.u32 %v2972, %v2975
          %v2977 = vrot.slane %v2976, 4
          %v2979 = vshll.u32 %v2918, 16
          %v2981 = vrot.slane %v2979, 5
          %v2982 = vsel %vm427, %v2977, %v2981
          %v2984 = vshrl.u32 %v2919, 16
          %v2986 = vrot.slane %v2984, 4
          %v2987 = vshll.u32 %v2919, 16
          %v2989 = vrot.slane %v2987, 5
          %v2990 = vor.u32 %v2986, %v2989
          %v2991 = vrot.slane %v2990, 4
          %v2993 = vshll.u32 %v2920, 16
          %v2995 = vrot.slane %v2993, 5
          %v2996 = vsel %vm427, %v2991, %v2995
          %v2998 = vshrl.u32 %v2921, 16
          %v3000 = vrot.slane %v2998, 4
          %v3001 = vshll.u32 %v2921, 16
          %v3003 = vrot.slane %v3001, 5
          %v3004 = vor.u32 %v3000, %v3003
          %v3005 = vrot.slane %v3004, 4
          %v3007 = vshll.u32 %v2922, 16
          %v3009 = vrot.slane %v3007, 5
          %v3010 = vsel %vm427, %v3005, %v3009
          %v3012 = vshrl.u32 %v2923, 16
          %v3014 = vrot.slane %v3012, 4
          %v3015 = vshll.u32 %v2923, 16
          %v3017 = vrot.slane %v3015, 5
          %v3018 = vor.u32 %v3014, %v3017
          %v3019 = vrot.slane %v3018, 4
          %v3021 = vshll.u32 %v2924, 16
          %v3023 = vrot.slane %v3021, 5
          %v3024 = vsel %vm427, %v3019, %v3023
          %v3026 = vshrl.u32 %v2925, 16
          %v3028 = vrot.slane %v3026, 4
          %v3029 = vshll.u32 %v2925, 16
          %v3031 = vrot.slane %v3029, 5
          %v3032 = vor.u32 %v3028, %v3031
          %v3033 = vrot.slane %v3032, 4
          %v3035 = vshll.u32 %v2926, 16
          %v3037 = vrot.slane %v3035, 5
          %v3038 = vsel %vm427, %v3033, %v3037
          %v3039 = vunpack.c.l.b16 %v2940
          %v3040 = vunpack.c.l.b16 %v2954
          %v3041 = vunpack.c.l.b16 %v2968
          %v3042 = vunpack.c.l.b16 %v2982
          %v3043 = vunpack.c.l.b16 %v2996
          %v3044 = vunpack.c.l.b16 %v3010
          %v3045 = vunpack.c.l.b16 %v3024
          %v3046 = vunpack.c.l.b16 %v3038
          %v3047 = vpack.c.b16 %v3040, %v3039
          %v3048 = vpack.c.b16 %v3042, %v3041
          %v3049 = vpack.c.b16 %v3044, %v3043
          %v3050 = vpack.c.b16 %v3046, %v3045
          %v3052 = vsel %vm767, %v3047, 0
          %v3055 = vsel %vm767, %v3048, 0
          %v3058 = vsel %vm767, %v3049, 0
          %v3061 = vsel %vm767, %v3050, 0
          %v3064 = vsel %vm780, %v1093, 0
          %3066 = vmatprep.subr.bf16.mxu0 0
          %3067 = vmatpush1.bf16.msra.mxu0 %v3064
          %3068 = vmatprep.subr.bf16.mxu0 0
          %3069 = vmatpush1.bf16.msra.mxu0 0
          %3070 = vmatprep.subr.bf16.mxu0 0
          %3071 = vmatpush1.bf16.msra.mxu0 0
          %3072 = vmatprep.subr.bf16.mxu0 0
          %3073 = vmatpush1.bf16.msra.mxu0 0
          %3074 = vmatprep.subr.bf16.mxu0 0
          %3075 = vmatpush1.bf16.msra.mxu0 0
          %3076 = vmatprep.subr.bf16.mxu0 0
          %3077 = vmatpush1.bf16.msra.mxu0 0
          %3078 = vmatprep.subr.bf16.mxu0 0
          %3079 = vmatpush1.bf16.msra.mxu0 0
          %3080 = vmatprep.subr.bf16.mxu0 0
          %3081 = vmatpush1.bf16.msra.mxu0 0
          %3082 = vmatprep.subr.bf16.mxu0 0
          %3083 = vmatpush1.bf16.msra.mxu0 0
          %3084 = vmatprep.subr.bf16.mxu0 0
          %3085 = vmatpush1.bf16.msra.mxu0 0
          %3086 = vmatprep.subr.bf16.mxu0 0
          %3087 = vmatpush1.bf16.msra.mxu0 0
          %3088 = vmatprep.subr.bf16.mxu0 0
          %3089 = vmatpush1.bf16.msra.mxu0 0
          %3090 = vmatprep.subr.bf16.mxu0 0
          %3091 = vmatpush1.bf16.msra.mxu0 0
          %3092 = vmatprep.subr.bf16.mxu0 0
          %3093 = vmatpush1.bf16.msra.mxu0 0
          %3094 = vmatprep.subr.bf16.mxu0 0
          %3095 = vmatpush1.bf16.msra.mxu0 0
          %3096 = vmatprep.subr.bf16.mxu0 0
          %3097 = vmatpush1.bf16.msra.mxu0 0
          %3098 = vmatprep.mubr.bf16.mxu0 0
          %3099 = vmatmul.mubr.bf16.gmra.mrb[0].mxu0 %v3052
          %v3100 = vpop.f32.mrb[0].mxu0
          %v3101 = vadd.f32 0.0, %v3100
          %v3102 = vpop.f32.mrb[0].mxu0
          %v3103 = vpop.f32.mrb[0].mxu0
          %v3104 = vadd.f32 0.0, %v3103
          %v3105 = vpop.f32.mrb[0].mxu0
          %3106 = vmatprep.mubr.bf16.mxu0 0
          %3107 = vmatmul.mubr.bf16.gmra.mrb[0].mxu0 %v3055
          %v3108 = vpop.f32.mrb[0].mxu0
          %v3109 = vadd.f32 0.0, %v3108
          %v3110 = vpop.f32.mrb[0].mxu0
          %v3111 = vpop.f32.mrb[0].mxu0
          %v3112 = vadd.f32 0.0, %v3111
          %v3113 = vpop.f32.mrb[0].mxu0
          %3114 = vmatprep.mubr.bf16.mxu0 0
          %3115 = vmatmul.mubr.bf16.gmra.mrb[0].mxu0 %v3058
          %v3116 = vpop.f32.mrb[0].mxu0
          %v3117 = vadd.f32 0.0, %v3116
          %v3118 = vpop.f32.mrb[0].mxu0
          %v3119 = vpop.f32.mrb[0].mxu0
          %v3120 = vadd.f32 0.0, %v3119
          %v3121 = vpop.f32.mrb[0].mxu0
          %3122 = vmatprep.mubr.bf16.mxu0 0
          %3123 = vmatmul.mubr.bf16.gmra.mrb[0].mxu0 %v3061
          %v3124 = vpop.f32.mrb[0].mxu0
          %v3125 = vadd.f32 0.0, %v3124
          %v3126 = vpop.f32.mrb[0].mxu0
          %v3127 = vpop.f32.mrb[0].mxu0
          %v3128 = vadd.f32 0.0, %v3127
          %v3129 = vpop.f32.mrb[0].mxu0
          %3130 = vdwg.mxu0
          %v3131 = vadd.f32 %v2807, %v3101
          %v3132 = vadd.f32 %v2808, %v3104
          %v3133 = vadd.f32 %v2809, %v3109
          %v3134 = vadd.f32 %v2810, %v3112
          %v3135 = vadd.f32 %v2811, %v3117
          %v3136 = vadd.f32 %v2812, %v3120
          %v3137 = vadd.f32 %v2813, %v3125
          %v3138 = vadd.f32 %v2814, %v3128
          %3139 = vrot.lane.b32.xlu0 %v3047, 124
          %v3140 = vpop.permute.xlu0 %3139
          %3141 = vrot.lane.b32.xlu0 %v3048, 124
          %v3142 = vpop.permute.xlu0 %3141
          %3143 = vrot.lane.b32.xlu0 %v3049, 124
          %v3144 = vpop.permute.xlu0 %3143
          %3145 = vrot.lane.b32.xlu0 %v3050, 124
          %v3146 = vpop.permute.xlu0 %3145
          %v3148 = vsel %vm767, %v3140, 0
          %v3151 = vsel %vm767, %v3142, 0
          %v3154 = vsel %vm767, %v3144, 0
          %v3157 = vsel %vm767, %v3146, 0
          %v3160 = vsel %vm780, %v1104, 0
          %3162 = vmatprep.subr.bf16.mxu0 0
          %3163 = vmatpush1.bf16.msra.mxu0 %v3160
          %3164 = vmatprep.subr.bf16.mxu0 0
          %3165 = vmatpush1.bf16.msra.mxu0 0
          %3166 = vmatprep.subr.bf16.mxu0 0
          %3167 = vmatpush1.bf16.msra.mxu0 0
          %3168 = vmatprep.subr.bf16.mxu0 0
          %3169 = vmatpush1.bf16.msra.mxu0 0
          %3170 = vmatprep.subr.bf16.mxu0 0
          %3171 = vmatpush1.bf16.msra.mxu0 0
          %3172 = vmatprep.subr.bf16.mxu0 0
          %3173 = vmatpush1.bf16.msra.mxu0 0
          %3174 = vmatprep.subr.bf16.mxu0 0
          %3175 = vmatpush1.bf16.msra.mxu0 0
          %3176 = vmatprep.subr.bf16.mxu0 0
          %3177 = vmatpush1.bf16.msra.mxu0 0
          %3178 = vmatprep.subr.bf16.mxu0 0
          %3179 = vmatpush1.bf16.msra.mxu0 0
          %3180 = vmatprep.subr.bf16.mxu0 0
          %3181 = vmatpush1.bf16.msra.mxu0 0
          %3182 = vmatprep.subr.bf16.mxu0 0
          %3183 = vmatpush1.bf16.msra.mxu0 0
          %3184 = vmatprep.subr.bf16.mxu0 0
          %3185 = vmatpush1.bf16.msra.mxu0 0
          %3186 = vmatprep.subr.bf16.mxu0 0
          %3187 = vmatpush1.bf16.msra.mxu0 0
          %3188 = vmatprep.subr.bf16.mxu0 0
          %3189 = vmatpush1.bf16.msra.mxu0 0
          %3190 = vmatprep.subr.bf16.mxu0 0
          %3191 = vmatpush1.bf16.msra.mxu0 0
          %3192 = vmatprep.subr.bf16.mxu0 0
          %3193 = vmatpush1.bf16.msra.mxu0 0
          %3194 = vmatprep.mubr.bf16.mxu0 0
          %3195 = vmatmul.mubr.bf16.gmra.mrb[0].mxu0 %v3148
          %v3196 = vpop.f32.mrb[0].mxu0
          %v3197 = vadd.f32 0.0, %v3196
          %v3198 = vpop.f32.mrb[0].mxu0
          %v3199 = vpop.f32.mrb[0].mxu0
          %v3200 = vadd.f32 0.0, %v3199
          %v3201 = vpop.f32.mrb[0].mxu0
          %3202 = vmatprep.mubr.bf16.mxu0 0
          %3203 = vmatmul.mubr.bf16.gmra.mrb[0].mxu0 %v3151
          %v3204 = vpop.f32.mrb[0].mxu0
          %v3205 = vadd.f32 0.0, %v3204
          %v3206 = vpop.f32.mrb[0].mxu0
          %v3207 = vpop.f32.mrb[0].mxu0
          %v3208 = vadd.f32 0.0, %v3207
          %v3209 = vpop.f32.mrb[0].mxu0
          %3210 = vmatprep.mubr.bf16.mxu0 0
          %3211 = vmatmul.mubr.bf16.gmra.mrb[0].mxu0 %v3154
          %v3212 = vpop.f32.mrb[0].mxu0
          %v3213 = vadd.f32 0.0, %v3212
          %v3214 = vpop.f32.mrb[0].mxu0
          %v3215 = vpop.f32.mrb[0].mxu0
          %v3216 = vadd.f32 0.0, %v3215
          %v3217 = vpop.f32.mrb[0].mxu0
          %3218 = vmatprep.mubr.bf16.mxu0 0
          %3219 = vmatmul.mubr.bf16.gmra.mrb[0].mxu0 %v3157
          %v3220 = vpop.f32.mrb[0].mxu0
          %v3221 = vadd.f32 0.0, %v3220
          %v3222 = vpop.f32.mrb[0].mxu0
          %v3223 = vpop.f32.mrb[0].mxu0
          %v3224 = vadd.f32 0.0, %v3223
          %v3225 = vpop.f32.mrb[0].mxu0
          %3226 = vdwg.mxu0
          %v3227 = vadd.f32 %v2903, %v3197
          %v3228 = vadd.f32 %v2904, %v3200
          %v3229 = vadd.f32 %v2905, %v3205
          %v3230 = vadd.f32 %v2906, %v3208
          %v3231 = vadd.f32 %v2907, %v3213
          %v3232 = vadd.f32 %v2908, %v3216
          %v3233 = vadd.f32 %v2909, %v3221
          %v3234 = vadd.f32 %v2910, %v3224
          %v3235 = vld [vmem:[%s2698] sm:$0xe]
          %v3236 = vld [vmem:[%s2698 + $0x8] sm:$0xe]
          %v3237 = vld [vmem:[%s2698 + $0x10] sm:$0xe]
          %v3238 = vld [vmem:[%s2698 + $0x18] sm:$0xe]
          %v3239 = vld [vmem:[%s2698 + $0x20] sm:$0xe]
          %v3240 = vld [vmem:[%s2698 + $0x28] sm:$0xe]
          %v3241 = vld [vmem:[%s2698 + $0x30] sm:$0xe]
          %v3242 = vld [vmem:[%s2698 + $0x38] sm:$0xe]
          %v3259 = vrot.slane %v3235, 5
          %v3260 = vrot.slane %v3259, 4
          %v3261 = vrot.slane %v2912, 5
          %v3262 = vsel %vm574, %v3260, %v3261
          %v3263 = vrot.slane %v3236, 5
          %v3264 = vrot.slane %v3263, 4
          %v3265 = vrot.slane %v2914, 5
          %v3266 = vsel %vm574, %v3264, %v3265
          %v3267 = vrot.slane %v3237, 5
          %v3268 = vrot.slane %v3267, 4
          %v3269 = vrot.slane %v2916, 5
          %v3270 = vsel %vm574, %v3268, %v3269
          %v3271 = vrot.slane %v3238, 5
          %v3272 = vrot.slane %v3271, 4
          %v3273 = vrot.slane %v2918, 5
          %v3274 = vsel %vm574, %v3272, %v3273
          %v3275 = vrot.slane %v3239, 5
          %v3276 = vrot.slane %v3275, 4
          %v3277 = vrot.slane %v2920, 5
          %v3278 = vsel %vm574, %v3276, %v3277
          %v3279 = vrot.slane %v3240, 5
          %v3280 = vrot.slane %v3279, 4
          %v3281 = vrot.slane %v2922, 5
          %v3282 = vsel %vm574, %v3280, %v3281
          %v3283 = vrot.slane %v3241, 5
          %v3284 = vrot.slane %v3283, 4
          %v3285 = vrot.slane %v2924, 5
          %v3286 = vsel %vm574, %v3284, %v3285
          %v3287 = vrot.slane %v3242, 5
          %v3288 = vrot.slane %v3287, 4
          %v3289 = vrot.slane %v2926, 5
          %v3290 = vsel %vm574, %v3288, %v3289
          %v3291 = vunpack.c.l.b16 %v3262
          %v3292 = vunpack.c.l.b16 %v3266
          %v3293 = vunpack.c.l.b16 %v3270
          %v3294 = vunpack.c.l.b16 %v3274
          %v3295 = vunpack.c.l.b16 %v3278
          %v3296 = vunpack.c.l.b16 %v3282
          %v3297 = vunpack.c.l.b16 %v3286
          %v3298 = vunpack.c.l.b16 %v3290
          %v3299 = vpack.c.b16 %v3292, %v3291
          %v3300 = vpack.c.b16 %v3294, %v3293
          %v3301 = vpack.c.b16 %v3296, %v3295
          %v3302 = vpack.c.b16 %v3298, %v3297
          %v3304 = vsel %vm767, %v3299, 0
          %v3307 = vsel %vm767, %v3300, 0
          %v3310 = vsel %vm767, %v3301, 0
          %v3313 = vsel %vm767, %v3302, 0
          %v3316 = vsel %vm780, %v1094, 0
          %3318 = vmatprep.subr.bf16.mxu0 0
          %3319 = vmatpush1.bf16.msra.mxu0 %v3316
          %3320 = vmatprep.subr.bf16.mxu0 0
          %3321 = vmatpush1.bf16.msra.mxu0 0
          %3322 = vmatprep.subr.bf16.mxu0 0
          %3323 = vmatpush1.bf16.msra.mxu0 0
          %3324 = vmatprep.subr.bf16.mxu0 0
          %3325 = vmatpush1.bf16.msra.mxu0 0
          %3326 = vmatprep.subr.bf16.mxu0 0
          %3327 = vmatpush1.bf16.msra.mxu0 0
          %3328 = vmatprep.subr.bf16.mxu0 0
          %3329 = vmatpush1.bf16.msra.mxu0 0
          %3330 = vmatprep.subr.bf16.mxu0 0
          %3331 = vmatpush1.bf16.msra.mxu0 0
          %3332 = vmatprep.subr.bf16.mxu0 0
          %3333 = vmatpush1.bf16.msra.mxu0 0
          %3334 = vmatprep.subr.bf16.mxu0 0
          %3335 = vmatpush1.bf16.msra.mxu0 0
          %3336 = vmatprep.subr.bf16.mxu0 0
          %3337 = vmatpush1.bf16.msra.mxu0 0
          %3338 = vmatprep.subr.bf16.mxu0 0
          %3339 = vmatpush1.bf16.msra.mxu0 0
          %3340 = vmatprep.subr.bf16.mxu0 0
          %3341 = vmatpush1.bf16.msra.mxu0 0
          %3342 = vmatprep.subr.bf16.mxu0 0
          %3343 = vmatpush1.bf16.msra.mxu0 0
          %3344 = vmatprep.subr.bf16.mxu0 0
          %3345 = vmatpush1.bf16.msra.mxu0 0
          %3346 = vmatprep.subr.bf16.mxu0 0
          %3347 = vmatpush1.bf16.msra.mxu0 0
          %3348 = vmatprep.subr.bf16.mxu0 0
          %3349 = vmatpush1.bf16.msra.mxu0 0
          %3350 = vmatprep.mubr.bf16.mxu0 0
          %3351 = vmatmul.mubr.bf16.gmra.mrb[0].mxu0 %v3304
          %v3352 = vpop.f32.mrb[0].mxu0
          %v3353 = vadd.f32 0.0, %v3352
          %v3354 = vpop.f32.mrb[0].mxu0
          %v3355 = vpop.f32.mrb[0].mxu0
          %v3356 = vadd.f32 0.0, %v3355
          %v3357 = vpop.f32.mrb[0].mxu0
          %3358 = vmatprep.mubr.bf16.mxu0 0
          %3359 = vmatmul.mubr.bf16.gmra.mrb[0].mxu0 %v3307
          %v3360 = vpop.f32.mrb[0].mxu0
          %v3361 = vadd.f32 0.0, %v3360
          %v3362 = vpop.f32.mrb[0].mxu0
          %v3363 = vpop.f32.mrb[0].mxu0
          %v3364 = vadd.f32 0.0, %v3363
          %v3365 = vpop.f32.mrb[0].mxu0
          %3366 = vmatprep.mubr.bf16.mxu0 0
          %3367 = vmatmul.mubr.bf16.gmra.mrb[0].mxu0 %v3310
          %v3368 = vpop.f32.mrb[0].mxu0
          %v3369 = vadd.f32 0.0, %v3368
          %v3370 = vpop.f32.mrb[0].mxu0
          %v3371 = vpop.f32.mrb[0].mxu0
          %v3372 = vadd.f32 0.0, %v3371
          %v3373 = vpop.f32.mrb[0].mxu0
          %3374 = vmatprep.mubr.bf16.mxu0 0
          %3375 = vmatmul.mubr.bf16.gmra.mrb[0].mxu0 %v3313
          %v3376 = vpop.f32.mrb[0].mxu0
          %v3377 = vadd.f32 0.0, %v3376
          %v3378 = vpop.f32.mrb[0].mxu0
          %v3379 = vpop.f32.mrb[0].mxu0
          %v3380 = vadd.f32 0.0, %v3379
          %v3381 = vpop.f32.mrb[0].mxu0
          %3382 = vdwg.mxu0
          %v3383 = vadd.f32 %v3131, %v3353
          %v3384 = vadd.f32 %v3132, %v3356
          %v3385 = vadd.f32 %v3133, %v3361
          %v3386 = vadd.f32 %v3134, %v3364
          %v3387 = vadd.f32 %v3135, %v3369
          %v3388 = vadd.f32 %v3136, %v3372
          %v3389 = vadd.f32 %v3137, %v3377
          %v3390 = vadd.f32 %v3138, %v3380
          %3391 = vrot.lane.b32.xlu0 %v3299, 124
          %v3392 = vpop.permute.xlu0 %3391
          %3393 = vrot.lane.b32.xlu0 %v3300, 124
          %v3394 = vpop.permute.xlu0 %3393
          %3395 = vrot.lane.b32.xlu0 %v3301, 124
          %v3396 = vpop.permute.xlu0 %3395
          %3397 = vrot.lane.b32.xlu0 %v3302, 124
          %v3398 = vpop.permute.xlu0 %3397
          %v3400 = vsel %vm767, %v3392, 0
          %v3403 = vsel %vm767, %v3394, 0
          %v3406 = vsel %vm767, %v3396, 0
          %v3409 = vsel %vm767, %v3398, 0
          %v3412 = vsel %vm780, %v1105, 0
          %3414 = vmatprep.subr.bf16.mxu0 0
          %3415 = vmatpush1.bf16.msra.mxu0 %v3412
          %3416 = vmatprep.subr.bf16.mxu0 0
          %3417 = vmatpush1.bf16.msra.mxu0 0
          %3418 = vmatprep.subr.bf16.mxu0 0
          %3419 = vmatpush1.bf16.msra.mxu0 0
          %3420 = vmatprep.subr.bf16.mxu0 0
          %3421 = vmatpush1.bf16.msra.mxu0 0
          %3422 = vmatprep.subr.bf16.mxu0 0
          %3423 = vmatpush1.bf16.msra.mxu0 0
          %3424 = vmatprep.subr.bf16.mxu0 0
          %3425 = vmatpush1.bf16.msra.mxu0 0
          %3426 = vmatprep.subr.bf16.mxu0 0
          %3427 = vmatpush1.bf16.msra.mxu0 0
          %3428 = vmatprep.subr.bf16.mxu0 0
          %3429 = vmatpush1.bf16.msra.mxu0 0
          %3430 = vmatprep.subr.bf16.mxu0 0
          %3431 = vmatpush1.bf16.msra.mxu0 0
          %3432 = vmatprep.subr.bf16.mxu0 0
          %3433 = vmatpush1.bf16.msra.mxu0 0
          %3434 = vmatprep.subr.bf16.mxu0 0
          %3435 = vmatpush1.bf16.msra.mxu0 0
          %3436 = vmatprep.subr.bf16.mxu0 0
          %3437 = vmatpush1.bf16.msra.mxu0 0
          %3438 = vmatprep.subr.bf16.mxu0 0
          %3439 = vmatpush1.bf16.msra.mxu0 0
          %3440 = vmatprep.subr.bf16.mxu0 0
          %3441 = vmatpush1.bf16.msra.mxu0 0
          %3442 = vmatprep.subr.bf16.mxu0 0
          %3443 = vmatpush1.bf16.msra.mxu0 0
          %3444 = vmatprep.subr.bf16.mxu0 0
          %3445 = vmatpush1.bf16.msra.mxu0 0
          %3446 = vmatprep.mubr.bf16.mxu0 0
          %3447 = vmatmul.mubr.bf16.gmra.mrb[0].mxu0 %v3400
          %v3448 = vpop.f32.mrb[0].mxu0
          %v3449 = vadd.f32 0.0, %v3448
          %v3450 = vpop.f32.mrb[0].mxu0
          %v3451 = vpop.f32.mrb[0].mxu0
          %v3452 = vadd.f32 0.0, %v3451
          %v3453 = vpop.f32.mrb[0].mxu0
          %3454 = vmatprep.mubr.bf16.mxu0 0
          %3455 = vmatmul.mubr.bf16.gmra.mrb[0].mxu0 %v3403
          %v3456 = vpop.f32.mrb[0].mxu0
          %v3457 = vadd.f32 0.0, %v3456
          %v3458 = vpop.f32.mrb[0].mxu0
          %v3459 = vpop.f32.mrb[0].mxu0
          %v3460 = vadd.f32 0.0, %v3459
          %v3461 = vpop.f32.mrb[0].mxu0
          %3462 = vmatprep.mubr.bf16.mxu0 0
          %3463 = vmatmul.mubr.bf16.gmra.mrb[0].mxu0 %v3406
          %v3464 = vpop.f32.mrb[0].mxu0
          %v3465 = vadd.f32 0.0, %v3464
          %v3466 = vpop.f32.mrb[0].mxu0
          %v3467 = vpop.f32.mrb[0].mxu0
          %v3468 = vadd.f32 0.0, %v3467
          %v3469 = vpop.f32.mrb[0].mxu0
          %3470 = vmatprep.mubr.bf16.mxu0 0
          %3471 = vmatmul.mubr.bf16.gmra.mrb[0].mxu0 %v3409
          %v3472 = vpop.f32.mrb[0].mxu0
          %v3473 = vadd.f32 0.0, %v3472
          %v3474 = vpop.f32.mrb[0].mxu0
          %v3475 = vpop.f32.mrb[0].mxu0
          %v3476 = vadd.f32 0.0, %v3475
          %v3477 = vpop.f32.mrb[0].mxu0
          %3478 = vdwg.mxu0
          %v3479 = vadd.f32 %v3227, %v3449
          %v3480 = vadd.f32 %v3228, %v3452
          %v3481 = vadd.f32 %v3229, %v3457
          %v3482 = vadd.f32 %v3230, %v3460
          %v3483 = vadd.f32 %v3231, %v3465
          %v3484 = vadd.f32 %v3232, %v3468
          %v3485 = vadd.f32 %v3233, %v3473
          %v3486 = vadd.f32 %v3234, %v3476
          %vm3487 = vcmask 64512
          %3488 = vst.msk [vmem:[#allocation3] sm:$0xff] %vm3487, %v3383
          %3489 = vst.msk [vmem:[#allocation3 + $0x8] sm:$0xff] %vm3487, %v3384
          %3490 = vst.msk [vmem:[#allocation3 + $0x10] sm:$0xff] %vm3487, %v3385
          %3491 = vst.msk [vmem:[#allocation3 + $0x18] sm:$0xff] %vm3487, %v3386
          %3492 = vst.msk [vmem:[#allocation3 + $0x20] sm:$0xff] %vm3487, %v3387
          %3493 = vst.msk [vmem:[#allocation3 + $0x28] sm:$0xff] %vm3487, %v3388
          %3494 = vst.msk [vmem:[#allocation3 + $0x30] sm:$0xff] %vm3487, %v3389
          %3495 = vst.msk [vmem:[#allocation3 + $0x38] sm:$0xff] %vm3487, %v3390
          %3496 = vst.msk [vmem:[#allocation4] sm:$0xff] %vm3487, %v3479
          %3497 = vst.msk [vmem:[#allocation4 + $0x8] sm:$0xff] %vm3487, %v3480
          %3498 = vst.msk [vmem:[#allocation4 + $0x10] sm:$0xff] %vm3487, %v3481
          %3499 = vst.msk [vmem:[#allocation4 + $0x18] sm:$0xff] %vm3487, %v3482
          %3500 = vst.msk [vmem:[#allocation4 + $0x20] sm:$0xff] %vm3487, %v3483
          %3501 = vst.msk [vmem:[#allocation4 + $0x28] sm:$0xff] %vm3487, %v3484
          %3502 = vst.msk [vmem:[#allocation4 + $0x30] sm:$0xff] %vm3487, %v3485
          %3503 = vst.msk [vmem:[#allocation4 + $0x38] sm:$0xff] %vm3487, %v3486
        $region64: #{inception_forward.1} parent=55 // pred_fallthru
          _
        %p3504 = scmp.eq.s32.totalorder %s30, 2
        // Predicated region
        $region69: #{inception_forward.1} parent=55 // pred_check
          %p3505 = pneg %p3504
        $region70: #{inception_forward.1} parent=55 // pred_check_branch
          %3507 = sbr.rel (%p3505) target = $region72
        $region71: #{inception_forward.1} parent=55 // pred_region
          %v3508 = vld [vmem:[#allocation3] sm:$0xff]
          %v3509 = vld [vmem:[#allocation3 + $0x8] sm:$0xff]
          %v3510 = vld [vmem:[#allocation3 + $0x10] sm:$0xff]
          %v3511 = vld [vmem:[#allocation3 + $0x18] sm:$0xff]
          %v3512 = vld [vmem:[#allocation3 + $0x20] sm:$0xff]
          %v3513 = vld [vmem:[#allocation3 + $0x28] sm:$0xff]
          %v3514 = vld [vmem:[#allocation3 + $0x30] sm:$0xff]
          %v3515 = vld [vmem:[#allocation3 + $0x38] sm:$0xff]
          %v3516 = vld [vmem:[%s4] sm:$0x1]
          %v3518 = vlaneseq
          %v3519 = vshrl.u32 %v3518, 7
          %v3520 = vsub.s32 0, %v3519
          %v3521 = vrot.slane %v3516, %v3520
          %v3523 = vadd.f32 %v3508, %v3521
          %v3524 = vadd.f32 %v3509, %v3521
          %v3525 = vadd.f32 %v3510, %v3521
          %v3526 = vadd.f32 %v3511, %v3521
          %v3527 = vadd.f32 %v3512, %v3521
          %v3528 = vadd.f32 %v3513, %v3521
          %v3529 = vadd.f32 %v3514, %v3521
          %v3530 = vadd.f32 %v3515, %v3521
          %v3531 = vmax.f32 %v3523, 0.0
          %v3532 = vmax.f32 %v3524, 0.0
          %v3533 = vmax.f32 %v3525, 0.0
          %v3534 = vmax.f32 %v3526, 0.0
          %v3535 = vmax.f32 %v3527, 0.0
          %v3536 = vmax.f32 %v3528, 0.0
          %v3537 = vmax.f32 %v3529, 0.0
          %v3538 = vmax.f32 %v3530, 0.0
          %v3539 = vld [vmem:[#allocation4] sm:$0xff]
          %v3540 = vld [vmem:[#allocation4 + $0x8] sm:$0xff]
          %v3541 = vld [vmem:[#allocation4 + $0x10] sm:$0xff]
          %v3542 = vld [vmem:[#allocation4 + $0x18] sm:$0xff]
          %v3543 = vld [vmem:[#allocation4 + $0x20] sm:$0xff]
          %v3544 = vld [vmem:[#allocation4 + $0x28] sm:$0xff]
          %v3545 = vld [vmem:[#allocation4 + $0x30] sm:$0xff]
          %v3546 = vld [vmem:[#allocation4 + $0x38] sm:$0xff]
          %v3547 = vld [vmem:[%s6] sm:$0x1]
          %v3549 = vlaneseq
          %v3550 = vshrl.u32 %v3549, 7
          %v3551 = vsub.s32 0, %v3550
          %v3552 = vrot.slane %v3547, %v3551
          %v3554 = vadd.f32 %v3539, %v3552
          %v3555 = vadd.f32 %v3540, %v3552
          %v3556 = vadd.f32 %v3541, %v3552
          %v3557 = vadd.f32 %v3542, %v3552
          %v3558 = vadd.f32 %v3543, %v3552
          %v3559 = vadd.f32 %v3544, %v3552
          %v3560 = vadd.f32 %v3545, %v3552
          %v3561 = vadd.f32 %v3546, %v3552
          %v3562 = vmax.f32 %v3554, 0.0
          %v3563 = vmax.f32 %v3555, 0.0
          %v3564 = vmax.f32 %v3556, 0.0
          %v3565 = vmax.f32 %v3557, 0.0
          %v3566 = vmax.f32 %v3558, 0.0
          %v3567 = vmax.f32 %v3559, 0.0
          %v3568 = vmax.f32 %v3560, 0.0
          %v3569 = vmax.f32 %v3561, 0.0
          %v3570 = vld [vmem:[#allocation5] sm:$0xf]
          %v3571 = vld [vmem:[#allocation5 + $0x4] sm:$0xf]
          %v3572 = vld [vmem:[#allocation5 + $0x8] sm:$0xf]
          %v3573 = vld [vmem:[#allocation5 + $0xc] sm:$0xf]
          %v3574 = vld [vmem:[#allocation5 + $0x10] sm:$0xf]
          %v3575 = vld [vmem:[#allocation5 + $0x14] sm:$0xf]
          %v3576 = vld [vmem:[#allocation5 + $0x18] sm:$0xf]
          %v3577 = vld [vmem:[#allocation5 + $0x1c] sm:$0xf]
          %v3578 = vld [vmem:[%s7] sm:$0x3]
          %v3579 = vld [vmem:[%s8] sm:$0x1]
          %v3581 = vlaneseq
          %v3582 = vshrl.u32 %v3581, 7
          %v3583 = vsub.s32 0, %v3582
          %v3584 = vrot.slane %v3579, %v3583
          %v3594 = vunpack.c.l.b16 %v3570
          %v3595 = vunpack.c.l.b16 %v3571
          %v3596 = vunpack.c.l.b16 %v3572
          %v3597 = vunpack.c.l.b16 %v3573
          %v3598 = vunpack.c.l.b16 %v3574
          %v3599 = vunpack.c.l.b16 %v3575
          %v3600 = vunpack.c.l.b16 %v3576
          %v3601 = vunpack.c.l.b16 %v3577
          %v3602 = vpack.c.b16 %v3595, %v3594
          %v3603 = vpack.c.b16 %v3597, %v3596
          %v3604 = vpack.c.b16 %v3599, %v3598
          %v3605 = vpack.c.b16 %v3601, %v3600
          %vm3606 = vcmask 31744
          %v3608 = vsel %vm3606, %v3602, 0
          %v3611 = vsel %vm3606, %v3603, 0
          %v3614 = vsel %vm3606, %v3604, 0
          %v3617 = vsel %vm3606, %v3605, 0
          %vm3619 = vcmask 1041408
          %v3621 = vsel %vm3619, %v3578, 0
          %3623 = vmatprep.subr.bf16.mxu0 0
          %3624 = vmatpush1.bf16.msra.mxu0 %v3621
          %3625 = vmatprep.subr.bf16.mxu0 0
          %3626 = vmatpush1.bf16.msra.mxu0 0
          %3627 = vmatprep.subr.bf16.mxu0 0
          %3628 = vmatpush1.bf16.msra.mxu0 0
          %3629 = vmatprep.subr.bf16.mxu0 0
          %3630 = vmatpush1.bf16.msra.mxu0 0
          %3631 = vmatprep.subr.bf16.mxu0 0
          %3632 = vmatpush1.bf16.msra.mxu0 0
          %3633 = vmatprep.subr.bf16.mxu0 0
          %3634 = vmatpush1.bf16.msra.mxu0 0
          %3635 = vmatprep.subr.bf16.mxu0 0
          %3636 = vmatpush1.bf16.msra.mxu0 0
          %3637 = vmatprep.subr.bf16.mxu0 0
          %3638 = vmatpush1.bf16.msra.mxu0 0
          %3639 = vmatprep.subr.bf16.mxu0 0
          %3640 = vmatpush1.bf16.msra.mxu0 0
          %3641 = vmatprep.subr.bf16.mxu0 0
          %3642 = vmatpush1.bf16.msra.mxu0 0
          %3643 = vmatprep.subr.bf16.mxu0 0
          %3644 = vmatpush1.bf16.msra.mxu0 0
          %3645 = vmatprep.subr.bf16.mxu0 0
          %3646 = vmatpush1.bf16.msra.mxu0 0
          %3647 = vmatprep.subr.bf16.mxu0 0
          %3648 = vmatpush1.bf16.msra.mxu0 0
          %3649 = vmatprep.subr.bf16.mxu0 0
          %3650 = vmatpush1.bf16.msra.mxu0 0
          %3651 = vmatprep.subr.bf16.mxu0 0
          %3652 = vmatpush1.bf16.msra.mxu0 0
          %3653 = vmatprep.subr.bf16.mxu0 0
          %3654 = vmatpush1.bf16.msra.mxu0 0
          %3655 = vmatprep.mubr.bf16.mxu0 0
          %3656 = vmatmul.mubr.bf16.gmra.mrb[0].mxu0 %v3608
          %v3657 = vpop.f32.mrb[0].mxu0
          %v3658 = vadd.f32 %v3584, %v3657
          %v3659 = vpop.f32.mrb[0].mxu0
          %v3660 = vpop.f32.mrb[0].mxu0
          %v3661 = vadd.f32 %v3584, %v3660
          %v3662 = vpop.f32.mrb[0].mxu0
          %3663 = vmatprep.mubr.bf16.mxu0 0
          %3664 = vmatmul.mubr.bf16.gmra.mrb[0].mxu0 %v3611
          %v3665 = vpop.f32.mrb[0].mxu0
          %v3666 = vadd.f32 %v3584, %v3665
          %v3667 = vpop.f32.mrb[0].mxu0
          %v3668 = vpop.f32.mrb[0].mxu0
          %v3669 = vadd.f32 %v3584, %v3668
          %v3670 = vpop.f32.mrb[0].mxu0
          %3671 = vmatprep.mubr.bf16.mxu0 0
          %3672 = vmatmul.mubr.bf16.gmra.mrb[0].mxu0 %v3614
          %v3673 = vpop.f32.mrb[0].mxu0
          %v3674 = vadd.f32 %v3584, %v3673
          %v3675 = vpop.f32.mrb[0].mxu0
          %v3676 = vpop.f32.mrb[0].mxu0
          %v3677 = vadd.f32 %v3584, %v3676
          %v3678 = vpop.f32.mrb[0].mxu0
          %3679 = vmatprep.mubr.bf16.mxu0 0
          %3680 = vmatmul.mubr.bf16.gmra.mrb[0].mxu0 %v3617
          %v3681 = vpop.f32.mrb[0].mxu0
          %v3682 = vadd.f32 %v3584, %v3681
          %v3683 = vpop.f32.mrb[0].mxu0
          %v3684 = vpop.f32.mrb[0].mxu0
          %v3685 = vadd.f32 %v3584, %v3684
          %v3686 = vpop.f32.mrb[0].mxu0
          %3687 = vdwg.mxu0
          %v3688 = vmax.f32 %v3658, 0.0
          %v3689 = vmax.f32 %v3661, 0.0
          %v3690 = vmax.f32 %v3666, 0.0
          %v3691 = vmax.f32 %v3669, 0.0
          %v3692 = vmax.f32 %v3674, 0.0
          %v3693 = vmax.f32 %v3677, 0.0
          %v3694 = vmax.f32 %v3682, 0.0
          %v3695 = vmax.f32 %v3685, 0.0
          %v3696 = vld [vmem:[#allocation2] sm:$0xff]
          %v3697 = vld [vmem:[#allocation2 + $0x8] sm:$0xff]
          %v3698 = vld [vmem:[#allocation2 + $0x10] sm:$0xff]
          %v3699 = vld [vmem:[#allocation2 + $0x18] sm:$0xff]
          %v3700 = vld [vmem:[#allocation2 + $0x20] sm:$0xff]
          %v3701 = vld [vmem:[#allocation2 + $0x28] sm:$0xff]
          %v3702 = vld [vmem:[#allocation2 + $0x30] sm:$0xff]
          %v3703 = vld [vmem:[#allocation2 + $0x38] sm:$0xff]
          %3712 = vrot.lane.b32.xlu0 %v3531, 8
          %v3713 = vpop.permute.xlu0 %3712
          %3714 = vrot.lane.b32.xlu0 %v3532, 8
          %v3715 = vpop.permute.xlu0 %3714
          %3716 = vrot.lane.b32.xlu0 %v3533, 8
          %v3717 = vpop.permute.xlu0 %3716
          %3718 = vrot.lane.b32.xlu0 %v3534, 8
          %v3719 = vpop.permute.xlu0 %3718
          %3720 = vrot.lane.b32.xlu0 %v3535, 8
          %v3721 = vpop.permute.xlu0 %3720
          %3722 = vrot.lane.b32.xlu0 %v3536, 8
          %v3723 = vpop.permute.xlu0 %3722
          %3724 = vrot.lane.b32.xlu0 %v3537, 8
          %v3725 = vpop.permute.xlu0 %3724
          %3726 = vrot.lane.b32.xlu0 %v3538, 8
          %v3727 = vpop.permute.xlu0 %3726
          %3744 = vrot.lane.b32.xlu0 %v3562, 16
          %v3745 = vpop.permute.xlu0 %3744
          %3746 = vrot.lane.b32.xlu0 %v3563, 16
          %v3747 = vpop.permute.xlu0 %3746
          %3748 = vrot.lane.b32.xlu0 %v3564, 16
          %v3749 = vpop.permute.xlu0 %3748
          %3750 = vrot.lane.b32.xlu0 %v3565, 16
          %v3751 = vpop.permute.xlu0 %3750
          %3752 = vrot.lane.b32.xlu0 %v3566, 16
          %v3753 = vpop.permute.xlu0 %3752
          %3754 = vrot.lane.b32.xlu0 %v3567, 16
          %v3755 = vpop.permute.xlu0 %3754
          %3756 = vrot.lane.b32.xlu0 %v3568, 16
          %v3757 = vpop.permute.xlu0 %3756
          %3758 = vrot.lane.b32.xlu0 %v3569, 16
          %v3759 = vpop.permute.xlu0 %3758
          %3776 = vrot.lane.b32.xlu0 %v3688, 24
          %v3777 = vpop.permute.xlu0 %3776
          %3778 = vrot.lane.b32.xlu0 %v3689, 24
          %v3779 = vpop.permute.xlu0 %3778
          %3780 = vrot.lane.b32.xlu0 %v3690, 24
          %v3781 = vpop.permute.xlu0 %3780
          %3782 = vrot.lane.b32.xlu0 %v3691, 24
          %v3783 = vpop.permute.xlu0 %3782
          %3784 = vrot.lane.b32.xlu0 %v3692, 24
          %v3785 = vpop.permute.xlu0 %3784
          %3786 = vrot.lane.b32.xlu0 %v3693, 24
          %v3787 = vpop.permute.xlu0 %3786
          %3788 = vrot.lane.b32.xlu0 %v3694, 24
          %v3789 = vpop.permute.xlu0 %3788
          %3790 = vrot.lane.b32.xlu0 %v3695, 24
          %v3791 = vpop.permute.xlu0 %3790
          %vm3800 = vcmask 64512
          %v3801 = vsel %vm3800, %v3696, %v3713
          %v3802 = vsel %vm3800, %v3697, %v3715
          %v3803 = vsel %vm3800, %v3698, %v3717
          %v3804 = vsel %vm3800, %v3699, %v3719
          %v3805 = vsel %vm3800, %v3700, %v3721
          %v3806 = vsel %vm3800, %v3701, %v3723
          %v3807 = vsel %vm3800, %v3702, %v3725
          %v3808 = vsel %vm3800, %v3703, %v3727
          %vm3809 = vcmask 130048
          %v3810 = vsel %vm3809, %v3801, %v3745
          %v3811 = vsel %vm3809, %v3802, %v3747
          %v3812 = vsel %vm3809, %v3803, %v3749
          %v3813 = vsel %vm3809, %v3804, %v3751
          %v3814 = vsel %vm3809, %v3805, %v3753
          %v3815 = vsel %vm3809, %v3806, %v3755
          %v3816 = vsel %vm3809, %v3807, %v3757
          %v3817 = vsel %vm3809, %v3808, %v3759
          %vm3818 = vcmask 195584
          %v3819 = vsel %vm3818, %v3810, %v3777
          %v3820 = vsel %vm3818, %v3811, %v3779
          %v3821 = vsel %vm3818, %v3812, %v3781
          %v3822 = vsel %vm3818, %v3813, %v3783
          %v3823 = vsel %vm3818, %v3814, %v3785
          %v3824 = vsel %vm3818, %v3815, %v3787
          %v3825 = vsel %vm3818, %v3816, %v3789
          %v3826 = vsel %vm3818, %v3817, %v3791
          %vm3827 = vcmask 228352
          %3828 = vst.msk [vmem:[%s361] sm:$0xff] %vm3827, %v3819
          %3829 = vst.msk [vmem:[%s361 + $0x8] sm:$0xff] %vm3827, %v3820
          %3830 = vst.msk [vmem:[%s361 + $0x10] sm:$0xff] %vm3827, %v3821
          %3831 = vst.msk [vmem:[%s361 + $0x18] sm:$0xff] %vm3827, %v3822
          %3832 = vst.msk [vmem:[%s361 + $0x20] sm:$0xff] %vm3827, %v3823
          %3833 = vst.msk [vmem:[%s361 + $0x28] sm:$0xff] %vm3827, %v3824
          %3834 = vst.msk [vmem:[%s361 + $0x30] sm:$0xff] %vm3827, %v3825
          %3835 = vst.msk [vmem:[%s361 + $0x38] sm:$0xff] %vm3827, %v3826
        $region72: #{inception_forward.1} parent=55 // pred_fallthru
          _
        %s3836 = sand.u32 %s250, 1
        %s3837 = scalar_lea.sflag [#allocation8], %s3836
        %s3838 = sand.u32 %s250, 1
        %s3839 = smul.addr %s3838, 64
        %s3840 = scalar_lea.vmem [#allocation7], %s3839
        // Predicated region
        $region73: #{inception_forward.1} parent=55 // pred_check
          %p3841 = pneg %p260
        $region74: #{inception_forward.1} parent=55 // pred_check_branch
          %3843 = sbr.rel (%p3841) target = $region76
        $region75: #{inception_forward.1} parent=55 // pred_region
          %s3845 = ssub.s32 1024, 1024
          %3846 = vsyncadd %s3837, %s3845
          %s3847 = smul.addr %s29, 8
          %s3848 = smul.addr %s28, 32
          %s3849 = sadd.s32 %s3847, %s3848
          %s3850 = smul.addr %s3849, 128
          %s3851 = scalar_lea.hbm %s9, %s3850
          %s3852 = sshll.u32 %s3840, 4
          %s3853 = int_to_ptr.vmem [resolvable:$true] %s3852
          %3858 = dma.vmem_to_hbm [thread:$0]  %s3853, 1024, %s3851, %s3837, 128, 128, 8
        $region76: #{inception_forward.1} parent=55 // pred_fallthru
          _
      $region56: #{inception_forward.1} parent=5 // pred_fallthru
        _
      %p3859 = scmp.le.s32.totalorder 2, %s18
      // Predicated region
      $region77: #{inception_forward.1} parent=5 // pred_check
        %p3860 = pneg %p3859
      $region78: #{inception_forward.1} parent=5 // pred_check_branch
        %3862 = sbr.rel (%p3860) target = $region80
      $region79: #{inception_forward.1} parent=5 // pred_region
        %s3863 = ssub.s32 %s18, 2
        // Predicated region
        $region81: #{inception_forward.1} parent=79 // pred_check
          %p3864 = pneg %p266
        $region82: #{inception_forward.1} parent=79 // pred_check_branch
          %3866 = sbr.rel (%p3864) target = $region84
        $region83: #{inception_forward.1} parent=79 // pred_region
          %s3867 = sand.u32 %s251, 1
          %s3868 = scalar_lea.sflag [#allocation8], %s3867
          %s3869 = sand.u32 %s251, 1
          %s3870 = smul.addr %s3869, 64
          %s3871 = scalar_lea.vmem [#allocation7], %s3870
          %3872 = dma.done %s3868, 1024
        $region84: #{inception_forward.1} parent=79 // pred_fallthru
          _
      $region80: #{inception_forward.1} parent=5 // pred_fallthru
        _
    $region6: #{inception_forward.1} parent=1 // loop_footer
      %s22 = sadd.s32 1, %s18
    $region7: #{inception_forward.1} parent=1 // loop_footer_branch
      %17 = sbr.rel target = $region3
    $region8: #{inception_forward.1} parent=1 // loop_exit
      _
    %3873 = vsyncpa [#allocation8], 1
    %s3874 = scalar_lea.sflag [#allocation8], 1
    %3875 = vsyncpa %s3874, 1

</llo_original>
